<compile_context>
chip_gen: v6e
topology: v6e:2x2x1
jax: 0.10.0
libtpu: 0.0.40
codegen_flags: <defaults>
</compile_context>

<pallas_src>
import math

import jax
import jax.numpy as jnp
from jax.experimental import pallas as pl
from jax.experimental.pallas import tpu as pltpu  # noqa: F401  (TPU backend)

# ------------------------- model hyperparameters -------------------------
VOCAB = 100       # synthetic vocab
B = 2             # batch
S = 8             # sequence length
H = 32            # hidden size
NUM_HEADS = 2
HEAD_DIM = H // NUM_HEADS
FFN = 64          # intermediate size
N_LAYERS = 2
LN_EPS = 1e-12
SCALE = 1.0 / math.sqrt(HEAD_DIM)
N_ROWS = B * S                   # all batch rows processed in one block
N_VECS = 2 + 6 * N_LAYERS        # packed (1,H) params: emb LN + 6 per layer


# ------------------------------ helpers ----------------------------------
def _layernorm(x, g, b):
    mu = jnp.mean(x, axis=-1, keepdims=True)
    var = jnp.mean((x - mu) ** 2, axis=-1, keepdims=True)
    return (x - mu) * jax.lax.rsqrt(var + LN_EPS) * g + b


def _gelu(x):
    # tanh-approximation GELU (BERT-compatible activation)
    # TODO(synk): exact erf-based GELU if the reference checkpoint used it.
    c = math.sqrt(2.0 / math.pi)
    return 0.5 * x * (1.0 + jnp.tanh(c * (x + 0.044715 * x * x * x)))


# ------------------------- fused Pallas kernel ----------------------------
def encoder_kernel(x_ref, abias_ref, vecs_ref, bqkv_ref, b1_ref,
                   wq_ref, wk_ref, wv_ref, wo_ref, w1_ref, w2_ref, o_ref):
    """Fused embed-LayerNorm + N_LAYERS transformer layers, whole batch."""

    def vrow(r):                          # (1, H) row from the packed slab
        return vecs_ref[r:r + 1, :]

    abias = abias_ref[...]                # (B, 1, S) additive mask, hoisted

    # embedding LayerNorm
    x = _layernorm(x_ref[...], vrow(0), vrow(1))        # (B*S, H)

    for l in range(N_LAYERS):             # static unroll (N_LAYERS = 2)
        base = 2 + 6 * l
        # ---------------- multi-head self-attention ----------------------
        attn = jnp.zeros((N_ROWS, H), jnp.float32)
        for h in range(NUM_HEADS):        # static unroll; head-stacked weights
            q = (jnp.dot(x, wq_ref[l, h], preferred_element_type=jnp.float32)
                 + bqkv_ref[l, h, 0:1, :]).reshape(B, S, HEAD_DIM)
            k = (jnp.dot(x, wk_ref[l, h], preferred_element_type=jnp.float32)
                 + bqkv_ref[l, h, 1:2, :]).reshape(B, S, HEAD_DIM)
            v = (jnp.dot(x, wv_ref[l, h], preferred_element_type=jnp.float32)
                 + bqkv_ref[l, h, 2:3, :]).reshape(B, S, HEAD_DIM)
            # leading-batch einsum: no kh.T transpose is materialized
            s = jnp.einsum("bqd,bkd->bqk", q, k,
                           preferred_element_type=jnp.float32) * SCALE
            s = s + abias                                 # mask padded keys
            s = s - jnp.max(s, axis=-1, keepdims=True)
            p = jnp.exp(s)
            p = p * pl.reciprocal(jnp.sum(p, axis=-1, keepdims=True),
                                  approx=True)            # EUP vrcp slot
            ctx = jnp.einsum("bqk,bkd->bqd", p, v,
                             preferred_element_type=jnp.float32)
            # accumulate through the output projection -> no lane concat
            attn = attn + jnp.dot(ctx.reshape(N_ROWS, HEAD_DIM), wo_ref[l, h],
                                  preferred_element_type=jnp.float32)
        attn = attn + vrow(base + 0)                      # output bias
        x1 = _layernorm(x + attn, vrow(base + 1), vrow(base + 2))

        # ---------------------- feed-forward ------------------------------
        ff = jnp.dot(x1, w1_ref[l], preferred_element_type=jnp.float32) + b1_ref[l]
        ff = _gelu(ff)
        ff = jnp.dot(ff, w2_ref[l], preferred_element_type=jnp.float32) + vrow(base + 3)
        x = _layernorm(x1 + ff, vrow(base + 4), vrow(base + 5))

    o_ref[...] = x                        # single (B*S, H) slab store


def _cost_estimate():
    flops_layer = (8 * N_ROWS * H * H                       # qkv + wo proj
                   + 4 * NUM_HEADS * B * S * S * HEAD_DIM   # scores + ctx
                   + 4 * N_ROWS * H * FFN)                  # ffn
    flops = N_LAYERS * flops_layer + 10 * (2 * N_LAYERS + 1) * N_ROWS * H
    transc = (N_LAYERS * (B * NUM_HEADS * S * S + N_ROWS * FFN)
              + (2 * N_LAYERS + 1) * N_ROWS)
    bytes_acc = 4 * (2 * N_ROWS * H                          # x in + out
                     + B * S                                 # mask bias
                     + N_VECS * H                            # packed vectors
                     + N_LAYERS * NUM_HEADS * 3 * HEAD_DIM   # qkv biases
                     + N_LAYERS * FFN                        # ffn biases
                     + 4 * N_LAYERS * H * H                  # wq, wk, wv, wo
                     + 2 * N_LAYERS * H * FFN)               # w1, w2
    return pl.CostEstimate(flops=flops, transcendentals=transc,
                           bytes_accessed=bytes_acc)


def encoder_forward(x2d, abias, p):
    # No grid: single invocation, every operand (~70 KB total) resident in
    # VMEM as a full-array block; activation never returns to HBM mid-stack.
    return pl.pallas_call(
        encoder_kernel,
        out_shape=jax.ShapeDtypeStruct((N_ROWS, H), jnp.float32),
        cost_estimate=_cost_estimate(),
    )(x2d, abias, p["vecs"], p["bqkv"], p["b1"],
      p["wq"], p["wk"], p["wv"], p["wo"], p["w1"], p["w2"])


# ----------------------- parameter init (deterministic) -------------------
def init_params(key):
    def nrm(k, shape, scale=0.02):
        return (scale * jax.random.normal(k, shape)).astype(jnp.float32)

    ks = jax.random.split(key, 9)
    # Q/K/V weights stacked (layer, head, H, HEAD_DIM); O weights
    # (layer, head, HEAD_DIM, H) -> free leading-axis indexing in the kernel.
    wq = nrm(ks[3], (N_LAYERS, H, H)).reshape(
        N_LAYERS, H, NUM_HEADS, HEAD_DIM).transpose(0, 2, 1, 3)
    wk = nrm(ks[4], (N_LAYERS, H, H)).reshape(
        N_LAYERS, H, NUM_HEADS, HEAD_DIM).transpose(0, 2, 1, 3)
    wv = nrm(ks[5], (N_LAYERS, H, H)).reshape(
        N_LAYERS, H, NUM_HEADS, HEAD_DIM).transpose(0, 2, 1, 3)
    wo = nrm(ks[6], (N_LAYERS, H, H)).reshape(N_LAYERS, NUM_HEADS, HEAD_DIM, H)

    ones_h = jnp.ones((1, H), jnp.float32)
    zeros_h = jnp.zeros((1, H), jnp.float32)
    # packed slab rows: [emb_g, emb_b] + per layer [bo, g1, b1ln, b2, g2, b2ln]
    per_layer = [zeros_h, ones_h, zeros_h, zeros_h, ones_h, zeros_h]
    vecs = jnp.concatenate([ones_h, zeros_h] + per_layer * N_LAYERS, axis=0)

    return {
        "word_emb": nrm(ks[0], (VOCAB, H)),
        "pos_emb": nrm(ks[1], (S, H)),
        "type_emb": nrm(ks[2], (2, H)),
        "vecs": vecs,                                              # (N_VECS, H)
        "bqkv": jnp.zeros((N_LAYERS, NUM_HEADS, 3, HEAD_DIM), jnp.float32),
        "b1": jnp.zeros((N_LAYERS, 1, FFN), jnp.float32),
        "wq": wq, "wk": wk, "wv": wv, "wo": wo,
        "w1": nrm(ks[7], (N_LAYERS, H, FFN)),
        "w2": nrm(ks[8], (N_LAYERS, FFN, H)),
    }


# ------------------------------- forward ----------------------------------
@jax.jit
def stancex_textual_forward(params, input_ids, attention_mask, token_type_ids):
    # Embedding gathers are glue -> plain JAX; the full encoder -> one kernel.
    emb = (params["word_emb"][input_ids]
           + params["pos_emb"][None, :, :]
           + params["type_emb"][token_type_ids]).astype(jnp.float32)   # (B,S,H)
    # additive attention bias, computed once (hoisted out of the kernel loop)
    abias = ((1.0 - attention_mask.astype(jnp.float32))
             .reshape(B, 1, S) * -1e9)                                  # (B,1,S)

    out2d = encoder_forward(emb.reshape(N_ROWS, H), abias, params)      # (B*S,H)
    last_hidden_state = out2d.reshape(B, S, H)
    pooled_output = last_hidden_state[:, 0, :]                          # CLS
    return {"pooled_output": pooled_output,
            "last_hidden_state": last_hidden_state}


# --------------------------------- main ------------------------------------
if __name__ == "__main__":
    key = jax.random.PRNGKey(0)
    k_param, k_ids = jax.random.split(key)

    params = init_params(k_param)

    input_ids = jax.random.randint(k_ids, (B, S), 0, VOCAB, dtype=jnp.int32)
    token_type_ids = jnp.zeros((B, S), dtype=jnp.int32)
    attention_mask = jnp.ones((B, S), dtype=jnp.int32)
    attention_mask = attention_mask.at[1, S - 2:].set(0)   # exercise padding mask

    out = stancex_textual_forward(params, input_ids, attention_mask,
                                  token_type_ids)
    jax.block_until_ready(out)

    assert out["last_hidden_state"].shape == (B, S, H)
    assert out["pooled_output"].shape == (B, H)
    assert bool(jnp.all(jnp.isfinite(out["last_hidden_state"])))
    print("KERNEL_OK")
</pallas_src>

<mosaic_0001>
module attributes {stable_mosaic.version = 11 : i64} {
  func.func @encoder_kernel(%arg0: memref<16x32xf32, #tpu.memory_space<vmem>>, %arg1: memref<2x1x8xf32, #tpu.memory_space<vmem>>, %arg2: memref<14x32xf32, #tpu.memory_space<vmem>>, %arg3: memref<2x2x3x16xf32, #tpu.memory_space<vmem>>, %arg4: memref<2x1x64xf32, #tpu.memory_space<vmem>>, %arg5: memref<2x2x32x16xf32, #tpu.memory_space<vmem>>, %arg6: memref<2x2x32x16xf32, #tpu.memory_space<vmem>>, %arg7: memref<2x2x32x16xf32, #tpu.memory_space<vmem>>, %arg8: memref<2x2x16x32xf32, #tpu.memory_space<vmem>>, %arg9: memref<2x32x64xf32, #tpu.memory_space<vmem>>, %arg10: memref<2x64x32xf32, #tpu.memory_space<vmem>>, %arg11: memref<16x32xf32, #tpu.memory_space<vmem>>) attributes {dimension_semantics = [], scalar_prefetch = 0 : i64, scratch_operands = 0 : i64, tpu.core_type = #tpu.core_type<tc>} {
    %c0 = arith.constant 0 : index
    %c0_0 = arith.constant 0 : index
    %c0_1 = arith.constant 0 : index
    %0 = vector.load %arg1[%c0, %c0_0, %c0_1] : memref<2x1x8xf32, #tpu.memory_space<vmem>>, vector<2x1x8xf32>
    %c0_2 = arith.constant 0 : index
    %c0_3 = arith.constant 0 : index
    %1 = vector.load %arg0[%c0_2, %c0_3] : memref<16x32xf32, #tpu.memory_space<vmem>>, vector<16x32xf32>
    %c0_4 = arith.constant 0 : index
    %c0_5 = arith.constant 0 : index
    %2 = vector.load %arg2[%c0_4, %c0_5] : memref<14x32xf32, #tpu.memory_space<vmem>>, vector<1x32xf32>
    %c1 = arith.constant 1 : index
    %c0_6 = arith.constant 0 : index
    %3 = vector.load %arg2[%c1, %c0_6] : memref<14x32xf32, #tpu.memory_space<vmem>>, vector<1x32xf32>
    %cst = arith.constant dense<0.000000e+00> : vector<16xf32>
    %4 = vector.multi_reduction <add>, %1, %cst [1] : vector<16x32xf32> to vector<16xf32>
    %5 = vector.shape_cast %4 : vector<16xf32> to vector<16x1xf32>
    %cst_7 = arith.constant 3.200000e+01 : f32
    %6 = vector.broadcast %cst_7 : f32 to vector<16x1xf32>
    %7 = arith.divf %5, %6 : vector<16x1xf32>
    %8 = vector.broadcast %7 : vector<16x1xf32> to vector<16x32xf32>
    %9 = arith.subf %1, %8 : vector<16x32xf32>
    %10 = arith.mulf %9, %9 : vector<16x32xf32>
    %cst_8 = arith.constant dense<0.000000e+00> : vector<16xf32>
    %11 = vector.multi_reduction <add>, %10, %cst_8 [1] : vector<16x32xf32> to vector<16xf32>
    %12 = vector.shape_cast %11 : vector<16xf32> to vector<16x1xf32>
    %cst_9 = arith.constant 3.200000e+01 : f32
    %13 = vector.broadcast %cst_9 : f32 to vector<16x1xf32>
    %14 = arith.divf %12, %13 : vector<16x1xf32>
    %15 = vector.broadcast %7 : vector<16x1xf32> to vector<16x32xf32>
    %16 = arith.subf %1, %15 : vector<16x32xf32>
    %cst_10 = arith.constant 9.99999996E-13 : f32
    %17 = vector.broadcast %cst_10 : f32 to vector<16x1xf32>
    %18 = arith.addf %14, %17 : vector<16x1xf32>
    %19 = math.rsqrt %18 : vector<16x1xf32>
    %20 = vector.broadcast %19 : vector<16x1xf32> to vector<16x32xf32>
    %21 = arith.mulf %16, %20 : vector<16x32xf32>
    %22 = vector.broadcast %2 : vector<1x32xf32> to vector<16x32xf32>
    %23 = arith.mulf %21, %22 : vector<16x32xf32>
    %24 = vector.broadcast %3 : vector<1x32xf32> to vector<16x32xf32>
    %25 = arith.addf %23, %24 : vector<16x32xf32>
    %cst_11 = arith.constant 0.000000e+00 : f32
    %26 = vector.broadcast %cst_11 : f32 to vector<16x32xf32>
    %c0_12 = arith.constant 0 : index
    %c0_13 = arith.constant 0 : index
    %c0_14 = arith.constant 0 : index
    %c0_15 = arith.constant 0 : index
    %27 = vector.load %arg5[%c0_12, %c0_13, %c0_14, %c0_15] : memref<2x2x32x16xf32, #tpu.memory_space<vmem>>, vector<1x1x32x16xf32>
    %28 = vector.shape_cast %27 : vector<1x1x32x16xf32> to vector<32x16xf32>
    %cst_16 = arith.constant dense<0.000000e+00> : vector<16x16xf32>
    %29 = tpu.matmul %25, %28, %cst_16 {dimension_numbers = #tpu.dot_dimension_numbers<[1], [0], [0], [1], [0, 0, 1, 1], [], []>} : vector<16x32xf32>, vector<32x16xf32>, vector<16x16xf32> -> vector<16x16xf32>
    %c0_17 = arith.constant 0 : index
    %c0_18 = arith.constant 0 : index
    %c0_19 = arith.constant 0 : index
    %c0_20 = arith.constant 0 : index
    %30 = vector.load %arg3[%c0_17, %c0_18, %c0_19, %c0_20] : memref<2x2x3x16xf32, #tpu.memory_space<vmem>>, vector<1x1x1x16xf32>
    %31 = vector.shape_cast %30 : vector<1x1x1x16xf32> to vector<1x16xf32>
    %32 = vector.broadcast %31 : vector<1x16xf32> to vector<16x16xf32>
    %33 = arith.addf %29, %32 : vector<16x16xf32>
    %34 = vector.shape_cast %33 : vector<16x16xf32> to vector<2x8x16xf32>
    %c0_21 = arith.constant 0 : index
    %c0_22 = arith.constant 0 : index
    %c0_23 = arith.constant 0 : index
    %c0_24 = arith.constant 0 : index
    %35 = vector.load %arg6[%c0_21, %c0_22, %c0_23, %c0_24] : memref<2x2x32x16xf32, #tpu.memory_space<vmem>>, vector<1x1x32x16xf32>
    %36 = vector.shape_cast %35 : vector<1x1x32x16xf32> to vector<32x16xf32>
    %cst_25 = arith.constant dense<0.000000e+00> : vector<16x16xf32>
    %37 = tpu.matmul %25, %36, %cst_25 {dimension_numbers = #tpu.dot_dimension_numbers<[1], [0], [0], [1], [0, 0, 1, 1], [], []>} : vector<16x32xf32>, vector<32x16xf32>, vector<16x16xf32> -> vector<16x16xf32>
    %c0_26 = arith.constant 0 : index
    %c0_27 = arith.constant 0 : index
    %c1_28 = arith.constant 1 : index
    %c0_29 = arith.constant 0 : index
    %38 = vector.load %arg3[%c0_26, %c0_27, %c1_28, %c0_29] : memref<2x2x3x16xf32, #tpu.memory_space<vmem>>, vector<1x1x1x16xf32>
    %39 = vector.shape_cast %38 : vector<1x1x1x16xf32> to vector<1x16xf32>
    %40 = vector.broadcast %39 : vector<1x16xf32> to vector<16x16xf32>
    %41 = arith.addf %37, %40 : vector<16x16xf32>
    %42 = vector.shape_cast %41 : vector<16x16xf32> to vector<2x8x16xf32>
    %c0_30 = arith.constant 0 : index
    %c0_31 = arith.constant 0 : index
    %c0_32 = arith.constant 0 : index
    %c0_33 = arith.constant 0 : index
    %43 = vector.load %arg7[%c0_30, %c0_31, %c0_32, %c0_33] : memref<2x2x32x16xf32, #tpu.memory_space<vmem>>, vector<1x1x32x16xf32>
    %44 = vector.shape_cast %43 : vector<1x1x32x16xf32> to vector<32x16xf32>
    %cst_34 = arith.constant dense<0.000000e+00> : vector<16x16xf32>
    %45 = tpu.matmul %25, %44, %cst_34 {dimension_numbers = #tpu.dot_dimension_numbers<[1], [0], [0], [1], [0, 0, 1, 1], [], []>} : vector<16x32xf32>, vector<32x16xf32>, vector<16x16xf32> -> vector<16x16xf32>
    %c0_35 = arith.constant 0 : index
    %c0_36 = arith.constant 0 : index
    %c2 = arith.constant 2 : index
    %c0_37 = arith.constant 0 : index
    %46 = vector.load %arg3[%c0_35, %c0_36, %c2, %c0_37] : memref<2x2x3x16xf32, #tpu.memory_space<vmem>>, vector<1x1x1x16xf32>
    %47 = vector.shape_cast %46 : vector<1x1x1x16xf32> to vector<1x16xf32>
    %48 = vector.broadcast %47 : vector<1x16xf32> to vector<16x16xf32>
    %49 = arith.addf %45, %48 : vector<16x16xf32>
    %50 = vector.shape_cast %49 : vector<16x16xf32> to vector<2x8x16xf32>
    "tpu.trace_start"() <{level = 10 : i32, message = "bqd,bkd->bqk"}> : () -> ()
    %cst_38 = arith.constant dense<0.000000e+00> : vector<2x8x8xf32>
    %51 = tpu.matmul %34, %42, %cst_38 {dimension_numbers = #tpu.dot_dimension_numbers<[2], [2], [1], [1], [0, 0, 0, 1, 1, 1], [0], [0]>} : vector<2x8x16xf32>, vector<2x8x16xf32>, vector<2x8x8xf32> -> vector<2x8x8xf32>
    "tpu.trace_stop"() : () -> ()
    %cst_39 = arith.constant 2.500000e-01 : f32
    %52 = vector.broadcast %cst_39 : f32 to vector<2x8x8xf32>
    %53 = arith.mulf %51, %52 : vector<2x8x8xf32>
    %54 = vector.broadcast %0 : vector<2x1x8xf32> to vector<2x8x8xf32>
    %55 = arith.addf %53, %54 : vector<2x8x8xf32>
    %cst_40 = arith.constant dense<0xFF800000> : vector<2x8xf32>
    %56 = vector.multi_reduction <maximumf>, %55, %cst_40 [2] : vector<2x8x8xf32> to vector<2x8xf32>
    %57 = vector.shape_cast %56 : vector<2x8xf32> to vector<2x8x1xf32>
    %58 = vector.broadcast %57 : vector<2x8x1xf32> to vector<2x8x8xf32>
    %59 = arith.subf %55, %58 : vector<2x8x8xf32>
    %60 = math.exp %59 : vector<2x8x8xf32>
    %cst_41 = arith.constant dense<0.000000e+00> : vector<2x8xf32>
    %61 = vector.multi_reduction <add>, %60, %cst_41 [2] : vector<2x8x8xf32> to vector<2x8xf32>
    %62 = vector.shape_cast %61 : vector<2x8xf32> to vector<2x8x1xf32>
    %63 = tpu.reciprocal %62 {approx = true} : vector<2x8x1xf32> -> vector<2x8x1xf32>
    %64 = vector.broadcast %63 : vector<2x8x1xf32> to vector<2x8x8xf32>
    %65 = arith.mulf %60, %64 : vector<2x8x8xf32>
    "tpu.trace_start"() <{level = 10 : i32, message = "bqk,bkd->bqd"}> : () -> ()
    %cst_42 = arith.constant dense<0.000000e+00> : vector<2x8x16xf32>
    %66 = tpu.matmul %65, %50, %cst_42 {dimension_numbers = #tpu.dot_dimension_numbers<[2], [1], [1], [2], [0, 0, 0, 1, 1, 2], [0], [0]>} : vector<2x8x8xf32>, vector<2x8x16xf32>, vector<2x8x16xf32> -> vector<2x8x16xf32>
    "tpu.trace_stop"() : () -> ()
    %67 = vector.shape_cast %66 : vector<2x8x16xf32> to vector<16x16xf32>
    %c0_43 = arith.constant 0 : index
    %c0_44 = arith.constant 0 : index
    %c0_45 = arith.constant 0 : index
    %c0_46 = arith.constant 0 : index
    %68 = vector.load %arg8[%c0_43, %c0_44, %c0_45, %c0_46] : memref<2x2x16x32xf32, #tpu.memory_space<vmem>>, vector<1x1x16x32xf32>
    %69 = vector.shape_cast %68 : vector<1x1x16x32xf32> to vector<16x32xf32>
    %cst_47 = arith.constant dense<0.000000e+00> : vector<16x32xf32>
    %70 = tpu.matmul %67, %69, %cst_47 {dimension_numbers = #tpu.dot_dimension_numbers<[1], [0], [0], [1], [0, 0, 1, 1], [], []>} : vector<16x16xf32>, vector<16x32xf32>, vector<16x32xf32> -> vector<16x32xf32>
    %71 = arith.addf %26, %70 : vector<16x32xf32>
    %c0_48 = arith.constant 0 : index
    %c1_49 = arith.constant 1 : index
    %c0_50 = arith.constant 0 : index
    %c0_51 = arith.constant 0 : index
    %72 = vector.load %arg5[%c0_48, %c1_49, %c0_50, %c0_51] : memref<2x2x32x16xf32, #tpu.memory_space<vmem>>, vector<1x1x32x16xf32>
    %73 = vector.shape_cast %72 : vector<1x1x32x16xf32> to vector<32x16xf32>
    %cst_52 = arith.constant dense<0.000000e+00> : vector<16x16xf32>
    %74 = tpu.matmul %25, %73, %cst_52 {dimension_numbers = #tpu.dot_dimension_numbers<[1], [0], [0], [1], [0, 0, 1, 1], [], []>} : vector<16x32xf32>, vector<32x16xf32>, vector<16x16xf32> -> vector<16x16xf32>
    %c0_53 = arith.constant 0 : index
    %c1_54 = arith.constant 1 : index
    %c0_55 = arith.constant 0 : index
    %c0_56 = arith.constant 0 : index
    %75 = vector.load %arg3[%c0_53, %c1_54, %c0_55, %c0_56] : memref<2x2x3x16xf32, #tpu.memory_space<vmem>>, vector<1x1x1x16xf32>
    %76 = vector.shape_cast %75 : vector<1x1x1x16xf32> to vector<1x16xf32>
    %77 = vector.broadcast %76 : vector<1x16xf32> to vector<16x16xf32>
    %78 = arith.addf %74, %77 : vector<16x16xf32>
    %79 = vector.shape_cast %78 : vector<16x16xf32> to vector<2x8x16xf32>
    %c0_57 = arith.constant 0 : index
    %c1_58 = arith.constant 1 : index
    %c0_59 = arith.constant 0 : index
    %c0_60 = arith.constant 0 : index
    %80 = vector.load %arg6[%c0_57, %c1_58, %c0_59, %c0_60] : memref<2x2x32x16xf32, #tpu.memory_space<vmem>>, vector<1x1x32x16xf32>
    %81 = vector.shape_cast %80 : vector<1x1x32x16xf32> to vector<32x16xf32>
    %cst_61 = arith.constant dense<0.000000e+00> : vector<16x16xf32>
    %82 = tpu.matmul %25, %81, %cst_61 {dimension_numbers = #tpu.dot_dimension_numbers<[1], [0], [0], [1], [0, 0, 1, 1], [], []>} : vector<16x32xf32>, vector<32x16xf32>, vector<16x16xf32> -> vector<16x16xf32>
    %c0_62 = arith.constant 0 : index
    %c1_63 = arith.constant 1 : index
    %c1_64 = arith.constant 1 : index
    %c0_65 = arith.constant 0 : index
    %83 = vector.load %arg3[%c0_62, %c1_63, %c1_64, %c0_65] : memref<2x2x3x16xf32, #tpu.memory_space<vmem>>, vector<1x1x1x16xf32>
    %84 = vector.shape_cast %83 : vector<1x1x1x16xf32> to vector<1x16xf32>
    %85 = vector.broadcast %84 : vector<1x16xf32> to vector<16x16xf32>
    %86 = arith.addf %82, %85 : vector<16x16xf32>
    %87 = vector.shape_cast %86 : vector<16x16xf32> to vector<2x8x16xf32>
    %c0_66 = arith.constant 0 : index
    %c1_67 = arith.constant 1 : index
    %c0_68 = arith.constant 0 : index
    %c0_69 = arith.constant 0 : index
    %88 = vector.load %arg7[%c0_66, %c1_67, %c0_68, %c0_69] : memref<2x2x32x16xf32, #tpu.memory_space<vmem>>, vector<1x1x32x16xf32>
    %89 = vector.shape_cast %88 : vector<1x1x32x16xf32> to vector<32x16xf32>
    %cst_70 = arith.constant dense<0.000000e+00> : vector<16x16xf32>
    %90 = tpu.matmul %25, %89, %cst_70 {dimension_numbers = #tpu.dot_dimension_numbers<[1], [0], [0], [1], [0, 0, 1, 1], [], []>} : vector<16x32xf32>, vector<32x16xf32>, vector<16x16xf32> -> vector<16x16xf32>
    %c0_71 = arith.constant 0 : index
    %c1_72 = arith.constant 1 : index
    %c2_73 = arith.constant 2 : index
    %c0_74 = arith.constant 0 : index
    %91 = vector.load %arg3[%c0_71, %c1_72, %c2_73, %c0_74] : memref<2x2x3x16xf32, #tpu.memory_space<vmem>>, vector<1x1x1x16xf32>
    %92 = vector.shape_cast %91 : vector<1x1x1x16xf32> to vector<1x16xf32>
    %93 = vector.broadcast %92 : vector<1x16xf32> to vector<16x16xf32>
    %94 = arith.addf %90, %93 : vector<16x16xf32>
    %95 = vector.shape_cast %94 : vector<16x16xf32> to vector<2x8x16xf32>
    "tpu.trace_start"() <{level = 10 : i32, message = "bqd,bkd->bqk"}> : () -> ()
    %cst_75 = arith.constant dense<0.000000e+00> : vector<2x8x8xf32>
    %96 = tpu.matmul %79, %87, %cst_75 {dimension_numbers = #tpu.dot_dimension_numbers<[2], [2], [1], [1], [0, 0, 0, 1, 1, 1], [0], [0]>} : vector<2x8x16xf32>, vector<2x8x16xf32>, vector<2x8x8xf32> -> vector<2x8x8xf32>
    "tpu.trace_stop"() : () -> ()
    %cst_76 = arith.constant 2.500000e-01 : f32
    %97 = vector.broadcast %cst_76 : f32 to vector<2x8x8xf32>
    %98 = arith.mulf %96, %97 : vector<2x8x8xf32>
    %99 = vector.broadcast %0 : vector<2x1x8xf32> to vector<2x8x8xf32>
    %100 = arith.addf %98, %99 : vector<2x8x8xf32>
    %cst_77 = arith.constant dense<0xFF800000> : vector<2x8xf32>
    %101 = vector.multi_reduction <maximumf>, %100, %cst_77 [2] : vector<2x8x8xf32> to vector<2x8xf32>
    %102 = vector.shape_cast %101 : vector<2x8xf32> to vector<2x8x1xf32>
    %103 = vector.broadcast %102 : vector<2x8x1xf32> to vector<2x8x8xf32>
    %104 = arith.subf %100, %103 : vector<2x8x8xf32>
    %105 = math.exp %104 : vector<2x8x8xf32>
    %cst_78 = arith.constant dense<0.000000e+00> : vector<2x8xf32>
    %106 = vector.multi_reduction <add>, %105, %cst_78 [2] : vector<2x8x8xf32> to vector<2x8xf32>
    %107 = vector.shape_cast %106 : vector<2x8xf32> to vector<2x8x1xf32>
    %108 = tpu.reciprocal %107 {approx = true} : vector<2x8x1xf32> -> vector<2x8x1xf32>
    %109 = vector.broadcast %108 : vector<2x8x1xf32> to vector<2x8x8xf32>
    %110 = arith.mulf %105, %109 : vector<2x8x8xf32>
    "tpu.trace_start"() <{level = 10 : i32, message = "bqk,bkd->bqd"}> : () -> ()
    %cst_79 = arith.constant dense<0.000000e+00> : vector<2x8x16xf32>
    %111 = tpu.matmul %110, %95, %cst_79 {dimension_numbers = #tpu.dot_dimension_numbers<[2], [1], [1], [2], [0, 0, 0, 1, 1, 2], [0], [0]>} : vector<2x8x8xf32>, vector<2x8x16xf32>, vector<2x8x16xf32> -> vector<2x8x16xf32>
    "tpu.trace_stop"() : () -> ()
    %112 = vector.shape_cast %111 : vector<2x8x16xf32> to vector<16x16xf32>
    %c0_80 = arith.constant 0 : index
    %c1_81 = arith.constant 1 : index
    %c0_82 = arith.constant 0 : index
    %c0_83 = arith.constant 0 : index
    %113 = vector.load %arg8[%c0_80, %c1_81, %c0_82, %c0_83] : memref<2x2x16x32xf32, #tpu.memory_space<vmem>>, vector<1x1x16x32xf32>
    %114 = vector.shape_cast %113 : vector<1x1x16x32xf32> to vector<16x32xf32>
    %cst_84 = arith.constant dense<0.000000e+00> : vector<16x32xf32>
    %115 = tpu.matmul %112, %114, %cst_84 {dimension_numbers = #tpu.dot_dimension_numbers<[1], [0], [0], [1], [0, 0, 1, 1], [], []>} : vector<16x16xf32>, vector<16x32xf32>, vector<16x32xf32> -> vector<16x32xf32>
    %116 = arith.addf %71, %115 : vector<16x32xf32>
    %c2_85 = arith.constant 2 : index
    %c0_86 = arith.constant 0 : index
    %117 = vector.load %arg2[%c2_85, %c0_86] : memref<14x32xf32, #tpu.memory_space<vmem>>, vector<1x32xf32>
    %118 = vector.broadcast %117 : vector<1x32xf32> to vector<16x32xf32>
    %119 = arith.addf %116, %118 : vector<16x32xf32>
    %120 = arith.addf %25, %119 : vector<16x32xf32>
    %c3 = arith.constant 3 : index
    %c0_87 = arith.constant 0 : index
    %121 = vector.load %arg2[%c3, %c0_87] : memref<14x32xf32, #tpu.memory_space<vmem>>, vector<1x32xf32>
    %c4 = arith.constant 4 : index
    %c0_88 = arith.constant 0 : index
    %122 = vector.load %arg2[%c4, %c0_88] : memref<14x32xf32, #tpu.memory_space<vmem>>, vector<1x32xf32>
    %cst_89 = arith.constant dense<0.000000e+00> : vector<16xf32>
    %123 = vector.multi_reduction <add>, %120, %cst_89 [1] : vector<16x32xf32> to vector<16xf32>
    %124 = vector.shape_cast %123 : vector<16xf32> to vector<16x1xf32>
    %cst_90 = arith.constant 3.200000e+01 : f32
    %125 = vector.broadcast %cst_90 : f32 to vector<16x1xf32>
    %126 = arith.divf %124, %125 : vector<16x1xf32>
    %127 = vector.broadcast %126 : vector<16x1xf32> to vector<16x32xf32>
    %128 = arith.subf %120, %127 : vector<16x32xf32>
    %129 = arith.mulf %128, %128 : vector<16x32xf32>
    %cst_91 = arith.constant dense<0.000000e+00> : vector<16xf32>
    %130 = vector.multi_reduction <add>, %129, %cst_91 [1] : vector<16x32xf32> to vector<16xf32>
    %131 = vector.shape_cast %130 : vector<16xf32> to vector<16x1xf32>
    %cst_92 = arith.constant 3.200000e+01 : f32
    %132 = vector.broadcast %cst_92 : f32 to vector<16x1xf32>
    %133 = arith.divf %131, %132 : vector<16x1xf32>
    %134 = vector.broadcast %126 : vector<16x1xf32> to vector<16x32xf32>
    %135 = arith.subf %120, %134 : vector<16x32xf32>
    %cst_93 = arith.constant 9.99999996E-13 : f32
    %136 = vector.broadcast %cst_93 : f32 to vector<16x1xf32>
    %137 = arith.addf %133, %136 : vector<16x1xf32>
    %138 = math.rsqrt %137 : vector<16x1xf32>
    %139 = vector.broadcast %138 : vector<16x1xf32> to vector<16x32xf32>
    %140 = arith.mulf %135, %139 : vector<16x32xf32>
    %141 = vector.broadcast %121 : vector<1x32xf32> to vector<16x32xf32>
    %142 = arith.mulf %140, %141 : vector<16x32xf32>
    %143 = vector.broadcast %122 : vector<1x32xf32> to vector<16x32xf32>
    %144 = arith.addf %142, %143 : vector<16x32xf32>
    %c0_94 = arith.constant 0 : index
    %c0_95 = arith.constant 0 : index
    %c0_96 = arith.constant 0 : index
    %145 = vector.load %arg9[%c0_94, %c0_95, %c0_96] : memref<2x32x64xf32, #tpu.memory_space<vmem>>, vector<1x32x64xf32>
    %146 = vector.shape_cast %145 : vector<1x32x64xf32> to vector<32x64xf32>
    %cst_97 = arith.constant dense<0.000000e+00> : vector<16x64xf32>
    %147 = tpu.matmul %144, %146, %cst_97 {dimension_numbers = #tpu.dot_dimension_numbers<[1], [0], [0], [1], [0, 0, 1, 1], [], []>} : vector<16x32xf32>, vector<32x64xf32>, vector<16x64xf32> -> vector<16x64xf32>
    %c0_98 = arith.constant 0 : index
    %c0_99 = arith.constant 0 : index
    %c0_100 = arith.constant 0 : index
    %148 = vector.load %arg4[%c0_98, %c0_99, %c0_100] : memref<2x1x64xf32, #tpu.memory_space<vmem>>, vector<1x1x64xf32>
    %149 = vector.shape_cast %148 : vector<1x1x64xf32> to vector<1x64xf32>
    %150 = vector.broadcast %149 : vector<1x64xf32> to vector<16x64xf32>
    %151 = arith.addf %147, %150 : vector<16x64xf32>
    %cst_101 = arith.constant 5.000000e-01 : f32
    %152 = vector.broadcast %cst_101 : f32 to vector<16x64xf32>
    %153 = arith.mulf %152, %151 : vector<16x64xf32>
    %cst_102 = arith.constant 4.471500e-02 : f32
    %154 = vector.broadcast %cst_102 : f32 to vector<16x64xf32>
    %155 = arith.mulf %154, %151 : vector<16x64xf32>
    %156 = arith.mulf %155, %151 : vector<16x64xf32>
    %157 = arith.mulf %156, %151 : vector<16x64xf32>
    %158 = arith.addf %151, %157 : vector<16x64xf32>
    %cst_103 = arith.constant 0.797884583 : f32
    %159 = vector.broadcast %cst_103 : f32 to vector<16x64xf32>
    %160 = arith.mulf %159, %158 : vector<16x64xf32>
    %161 = math.tanh %160 : vector<16x64xf32>
    %cst_104 = arith.constant 1.000000e+00 : f32
    %162 = vector.broadcast %cst_104 : f32 to vector<16x64xf32>
    %163 = arith.addf %162, %161 : vector<16x64xf32>
    %164 = arith.mulf %153, %163 : vector<16x64xf32>
    %c0_105 = arith.constant 0 : index
    %c0_106 = arith.constant 0 : index
    %c0_107 = arith.constant 0 : index
    %165 = vector.load %arg10[%c0_105, %c0_106, %c0_107] : memref<2x64x32xf32, #tpu.memory_space<vmem>>, vector<1x64x32xf32>
    %166 = vector.shape_cast %165 : vector<1x64x32xf32> to vector<64x32xf32>
    %cst_108 = arith.constant dense<0.000000e+00> : vector<16x32xf32>
    %167 = tpu.matmul %164, %166, %cst_108 {dimension_numbers = #tpu.dot_dimension_numbers<[1], [0], [0], [1], [0, 0, 1, 1], [], []>} : vector<16x64xf32>, vector<64x32xf32>, vector<16x32xf32> -> vector<16x32xf32>
    %c5 = arith.constant 5 : index
    %c0_109 = arith.constant 0 : index
    %168 = vector.load %arg2[%c5, %c0_109] : memref<14x32xf32, #tpu.memory_space<vmem>>, vector<1x32xf32>
    %169 = vector.broadcast %168 : vector<1x32xf32> to vector<16x32xf32>
    %170 = arith.addf %167, %169 : vector<16x32xf32>
    %171 = arith.addf %144, %170 : vector<16x32xf32>
    %c6 = arith.constant 6 : index
    %c0_110 = arith.constant 0 : index
    %172 = vector.load %arg2[%c6, %c0_110] : memref<14x32xf32, #tpu.memory_space<vmem>>, vector<1x32xf32>
    %c7 = arith.constant 7 : index
    %c0_111 = arith.constant 0 : index
    %173 = vector.load %arg2[%c7, %c0_111] : memref<14x32xf32, #tpu.memory_space<vmem>>, vector<1x32xf32>
    %cst_112 = arith.constant dense<0.000000e+00> : vector<16xf32>
    %174 = vector.multi_reduction <add>, %171, %cst_112 [1] : vector<16x32xf32> to vector<16xf32>
    %175 = vector.shape_cast %174 : vector<16xf32> to vector<16x1xf32>
    %cst_113 = arith.constant 3.200000e+01 : f32
    %176 = vector.broadcast %cst_113 : f32 to vector<16x1xf32>
    %177 = arith.divf %175, %176 : vector<16x1xf32>
    %178 = vector.broadcast %177 : vector<16x1xf32> to vector<16x32xf32>
    %179 = arith.subf %171, %178 : vector<16x32xf32>
    %180 = arith.mulf %179, %179 : vector<16x32xf32>
    %cst_114 = arith.constant dense<0.000000e+00> : vector<16xf32>
    %181 = vector.multi_reduction <add>, %180, %cst_114 [1] : vector<16x32xf32> to vector<16xf32>
    %182 = vector.shape_cast %181 : vector<16xf32> to vector<16x1xf32>
    %cst_115 = arith.constant 3.200000e+01 : f32
    %183 = vector.broadcast %cst_115 : f32 to vector<16x1xf32>
    %184 = arith.divf %182, %183 : vector<16x1xf32>
    %185 = vector.broadcast %177 : vector<16x1xf32> to vector<16x32xf32>
    %186 = arith.subf %171, %185 : vector<16x32xf32>
    %cst_116 = arith.constant 9.99999996E-13 : f32
    %187 = vector.broadcast %cst_116 : f32 to vector<16x1xf32>
    %188 = arith.addf %184, %187 : vector<16x1xf32>
    %189 = math.rsqrt %188 : vector<16x1xf32>
    %190 = vector.broadcast %189 : vector<16x1xf32> to vector<16x32xf32>
    %191 = arith.mulf %186, %190 : vector<16x32xf32>
    %192 = vector.broadcast %172 : vector<1x32xf32> to vector<16x32xf32>
    %193 = arith.mulf %191, %192 : vector<16x32xf32>
    %194 = vector.broadcast %173 : vector<1x32xf32> to vector<16x32xf32>
    %195 = arith.addf %193, %194 : vector<16x32xf32>
    %cst_117 = arith.constant 0.000000e+00 : f32
    %196 = vector.broadcast %cst_117 : f32 to vector<16x32xf32>
    %c1_118 = arith.constant 1 : index
    %c0_119 = arith.constant 0 : index
    %c0_120 = arith.constant 0 : index
    %c0_121 = arith.constant 0 : index
    %197 = vector.load %arg5[%c1_118, %c0_119, %c0_120, %c0_121] : memref<2x2x32x16xf32, #tpu.memory_space<vmem>>, vector<1x1x32x16xf32>
    %198 = vector.shape_cast %197 : vector<1x1x32x16xf32> to vector<32x16xf32>
    %cst_122 = arith.constant dense<0.000000e+00> : vector<16x16xf32>
    %199 = tpu.matmul %195, %198, %cst_122 {dimension_numbers = #tpu.dot_dimension_numbers<[1], [0], [0], [1], [0, 0, 1, 1], [], []>} : vector<16x32xf32>, vector<32x16xf32>, vector<16x16xf32> -> vector<16x16xf32>
    %c1_123 = arith.constant 1 : index
    %c0_124 = arith.constant 0 : index
    %c0_125 = arith.constant 0 : index
    %c0_126 = arith.constant 0 : index
    %200 = vector.load %arg3[%c1_123, %c0_124, %c0_125, %c0_126] : memref<2x2x3x16xf32, #tpu.memory_space<vmem>>, vector<1x1x1x16xf32>
    %201 = vector.shape_cast %200 : vector<1x1x1x16xf32> to vector<1x16xf32>
    %202 = vector.broadcast %201 : vector<1x16xf32> to vector<16x16xf32>
    %203 = arith.addf %199, %202 : vector<16x16xf32>
    %204 = vector.shape_cast %203 : vector<16x16xf32> to vector<2x8x16xf32>
    %c1_127 = arith.constant 1 : index
    %c0_128 = arith.constant 0 : index
    %c0_129 = arith.constant 0 : index
    %c0_130 = arith.constant 0 : index
    %205 = vector.load %arg6[%c1_127, %c0_128, %c0_129, %c0_130] : memref<2x2x32x16xf32, #tpu.memory_space<vmem>>, vector<1x1x32x16xf32>
    %206 = vector.shape_cast %205 : vector<1x1x32x16xf32> to vector<32x16xf32>
    %cst_131 = arith.constant dense<0.000000e+00> : vector<16x16xf32>
    %207 = tpu.matmul %195, %206, %cst_131 {dimension_numbers = #tpu.dot_dimension_numbers<[1], [0], [0], [1], [0, 0, 1, 1], [], []>} : vector<16x32xf32>, vector<32x16xf32>, vector<16x16xf32> -> vector<16x16xf32>
    %c1_132 = arith.constant 1 : index
    %c0_133 = arith.constant 0 : index
    %c1_134 = arith.constant 1 : index
    %c0_135 = arith.constant 0 : index
    %208 = vector.load %arg3[%c1_132, %c0_133, %c1_134, %c0_135] : memref<2x2x3x16xf32, #tpu.memory_space<vmem>>, vector<1x1x1x16xf32>
    %209 = vector.shape_cast %208 : vector<1x1x1x16xf32> to vector<1x16xf32>
    %210 = vector.broadcast %209 : vector<1x16xf32> to vector<16x16xf32>
    %211 = arith.addf %207, %210 : vector<16x16xf32>
    %212 = vector.shape_cast %211 : vector<16x16xf32> to vector<2x8x16xf32>
    %c1_136 = arith.constant 1 : index
    %c0_137 = arith.constant 0 : index
    %c0_138 = arith.constant 0 : index
    %c0_139 = arith.constant 0 : index
    %213 = vector.load %arg7[%c1_136, %c0_137, %c0_138, %c0_139] : memref<2x2x32x16xf32, #tpu.memory_space<vmem>>, vector<1x1x32x16xf32>
    %214 = vector.shape_cast %213 : vector<1x1x32x16xf32> to vector<32x16xf32>
    %cst_140 = arith.constant dense<0.000000e+00> : vector<16x16xf32>
    %215 = tpu.matmul %195, %214, %cst_140 {dimension_numbers = #tpu.dot_dimension_numbers<[1], [0], [0], [1], [0, 0, 1, 1], [], []>} : vector<16x32xf32>, vector<32x16xf32>, vector<16x16xf32> -> vector<16x16xf32>
    %c1_141 = arith.constant 1 : index
    %c0_142 = arith.constant 0 : index
    %c2_143 = arith.constant 2 : index
    %c0_144 = arith.constant 0 : index
    %216 = vector.load %arg3[%c1_141, %c0_142, %c2_143, %c0_144] : memref<2x2x3x16xf32, #tpu.memory_space<vmem>>, vector<1x1x1x16xf32>
    %217 = vector.shape_cast %216 : vector<1x1x1x16xf32> to vector<1x16xf32>
    %218 = vector.broadcast %217 : vector<1x16xf32> to vector<16x16xf32>
    %219 = arith.addf %215, %218 : vector<16x16xf32>
    %220 = vector.shape_cast %219 : vector<16x16xf32> to vector<2x8x16xf32>
    "tpu.trace_start"() <{level = 10 : i32, message = "bqd,bkd->bqk"}> : () -> ()
    %cst_145 = arith.constant dense<0.000000e+00> : vector<2x8x8xf32>
    %221 = tpu.matmul %204, %212, %cst_145 {dimension_numbers = #tpu.dot_dimension_numbers<[2], [2], [1], [1], [0, 0, 0, 1, 1, 1], [0], [0]>} : vector<2x8x16xf32>, vector<2x8x16xf32>, vector<2x8x8xf32> -> vector<2x8x8xf32>
    "tpu.trace_stop"() : () -> ()
    %cst_146 = arith.constant 2.500000e-01 : f32
    %222 = vector.broadcast %cst_146 : f32 to vector<2x8x8xf32>
    %223 = arith.mulf %221, %222 : vector<2x8x8xf32>
    %224 = vector.broadcast %0 : vector<2x1x8xf32> to vector<2x8x8xf32>
    %225 = arith.addf %223, %224 : vector<2x8x8xf32>
    %cst_147 = arith.constant dense<0xFF800000> : vector<2x8xf32>
    %226 = vector.multi_reduction <maximumf>, %225, %cst_147 [2] : vector<2x8x8xf32> to vector<2x8xf32>
    %227 = vector.shape_cast %226 : vector<2x8xf32> to vector<2x8x1xf32>
    %228 = vector.broadcast %227 : vector<2x8x1xf32> to vector<2x8x8xf32>
    %229 = arith.subf %225, %228 : vector<2x8x8xf32>
    %230 = math.exp %229 : vector<2x8x8xf32>
    %cst_148 = arith.constant dense<0.000000e+00> : vector<2x8xf32>
    %231 = vector.multi_reduction <add>, %230, %cst_148 [2] : vector<2x8x8xf32> to vector<2x8xf32>
    %232 = vector.shape_cast %231 : vector<2x8xf32> to vector<2x8x1xf32>
    %233 = tpu.reciprocal %232 {approx = true} : vector<2x8x1xf32> -> vector<2x8x1xf32>
    %234 = vector.broadcast %233 : vector<2x8x1xf32> to vector<2x8x8xf32>
    %235 = arith.mulf %230, %234 : vector<2x8x8xf32>
    "tpu.trace_start"() <{level = 10 : i32, message = "bqk,bkd->bqd"}> : () -> ()
    %cst_149 = arith.constant dense<0.000000e+00> : vector<2x8x16xf32>
    %236 = tpu.matmul %235, %220, %cst_149 {dimension_numbers = #tpu.dot_dimension_numbers<[2], [1], [1], [2], [0, 0, 0, 1, 1, 2], [0], [0]>} : vector<2x8x8xf32>, vector<2x8x16xf32>, vector<2x8x16xf32> -> vector<2x8x16xf32>
    "tpu.trace_stop"() : () -> ()
    %237 = vector.shape_cast %236 : vector<2x8x16xf32> to vector<16x16xf32>
    %c1_150 = arith.constant 1 : index
    %c0_151 = arith.constant 0 : index
    %c0_152 = arith.constant 0 : index
    %c0_153 = arith.constant 0 : index
    %238 = vector.load %arg8[%c1_150, %c0_151, %c0_152, %c0_153] : memref<2x2x16x32xf32, #tpu.memory_space<vmem>>, vector<1x1x16x32xf32>
    %239 = vector.shape_cast %238 : vector<1x1x16x32xf32> to vector<16x32xf32>
    %cst_154 = arith.constant dense<0.000000e+00> : vector<16x32xf32>
    %240 = tpu.matmul %237, %239, %cst_154 {dimension_numbers = #tpu.dot_dimension_numbers<[1], [0], [0], [1], [0, 0, 1, 1], [], []>} : vector<16x16xf32>, vector<16x32xf32>, vector<16x32xf32> -> vector<16x32xf32>
    %241 = arith.addf %196, %240 : vector<16x32xf32>
    %c1_155 = arith.constant 1 : index
    %c1_156 = arith.constant 1 : index
    %c0_157 = arith.constant 0 : index
    %c0_158 = arith.constant 0 : index
    %242 = vector.load %arg5[%c1_155, %c1_156, %c0_157, %c0_158] : memref<2x2x32x16xf32, #tpu.memory_space<vmem>>, vector<1x1x32x16xf32>
    %243 = vector.shape_cast %242 : vector<1x1x32x16xf32> to vector<32x16xf32>
    %cst_159 = arith.constant dense<0.000000e+00> : vector<16x16xf32>
    %244 = tpu.matmul %195, %243, %cst_159 {dimension_numbers = #tpu.dot_dimension_numbers<[1], [0], [0], [1], [0, 0, 1, 1], [], []>} : vector<16x32xf32>, vector<32x16xf32>, vector<16x16xf32> -> vector<16x16xf32>
    %c1_160 = arith.constant 1 : index
    %c1_161 = arith.constant 1 : index
    %c0_162 = arith.constant 0 : index
    %c0_163 = arith.constant 0 : index
    %245 = vector.load %arg3[%c1_160, %c1_161, %c0_162, %c0_163] : memref<2x2x3x16xf32, #tpu.memory_space<vmem>>, vector<1x1x1x16xf32>
    %246 = vector.shape_cast %245 : vector<1x1x1x16xf32> to vector<1x16xf32>
    %247 = vector.broadcast %246 : vector<1x16xf32> to vector<16x16xf32>
    %248 = arith.addf %244, %247 : vector<16x16xf32>
    %249 = vector.shape_cast %248 : vector<16x16xf32> to vector<2x8x16xf32>
    %c1_164 = arith.constant 1 : index
    %c1_165 = arith.constant 1 : index
    %c0_166 = arith.constant 0 : index
    %c0_167 = arith.constant 0 : index
    %250 = vector.load %arg6[%c1_164, %c1_165, %c0_166, %c0_167] : memref<2x2x32x16xf32, #tpu.memory_space<vmem>>, vector<1x1x32x16xf32>
    %251 = vector.shape_cast %250 : vector<1x1x32x16xf32> to vector<32x16xf32>
    %cst_168 = arith.constant dense<0.000000e+00> : vector<16x16xf32>
    %252 = tpu.matmul %195, %251, %cst_168 {dimension_numbers = #tpu.dot_dimension_numbers<[1], [0], [0], [1], [0, 0, 1, 1], [], []>} : vector<16x32xf32>, vector<32x16xf32>, vector<16x16xf32> -> vector<16x16xf32>
    %c1_169 = arith.constant 1 : index
    %c1_170 = arith.constant 1 : index
    %c1_171 = arith.constant 1 : index
    %c0_172 = arith.constant 0 : index
    %253 = vector.load %arg3[%c1_169, %c1_170, %c1_171, %c0_172] : memref<2x2x3x16xf32, #tpu.memory_space<vmem>>, vector<1x1x1x16xf32>
    %254 = vector.shape_cast %253 : vector<1x1x1x16xf32> to vector<1x16xf32>
    %255 = vector.broadcast %254 : vector<1x16xf32> to vector<16x16xf32>
    %256 = arith.addf %252, %255 : vector<16x16xf32>
    %257 = vector.shape_cast %256 : vector<16x16xf32> to vector<2x8x16xf32>
    %c1_173 = arith.constant 1 : index
    %c1_174 = arith.constant 1 : index
    %c0_175 = arith.constant 0 : index
    %c0_176 = arith.constant 0 : index
    %258 = vector.load %arg7[%c1_173, %c1_174, %c0_175, %c0_176] : memref<2x2x32x16xf32, #tpu.memory_space<vmem>>, vector<1x1x32x16xf32>
    %259 = vector.shape_cast %258 : vector<1x1x32x16xf32> to vector<32x16xf32>
    %cst_177 = arith.constant dense<0.000000e+00> : vector<16x16xf32>
    %260 = tpu.matmul %195, %259, %cst_177 {dimension_numbers = #tpu.dot_dimension_numbers<[1], [0], [0], [1], [0, 0, 1, 1], [], []>} : vector<16x32xf32>, vector<32x16xf32>, vector<16x16xf32> -> vector<16x16xf32>
    %c1_178 = arith.constant 1 : index
    %c1_179 = arith.constant 1 : index
    %c2_180 = arith.constant 2 : index
    %c0_181 = arith.constant 0 : index
    %261 = vector.load %arg3[%c1_178, %c1_179, %c2_180, %c0_181] : memref<2x2x3x16xf32, #tpu.memory_space<vmem>>, vector<1x1x1x16xf32>
    %262 = vector.shape_cast %261 : vector<1x1x1x16xf32> to vector<1x16xf32>
    %263 = vector.broadcast %262 : vector<1x16xf32> to vector<16x16xf32>
    %264 = arith.addf %260, %263 : vector<16x16xf32>
    %265 = vector.shape_cast %264 : vector<16x16xf32> to vector<2x8x16xf32>
    "tpu.trace_start"() <{level = 10 : i32, message = "bqd,bkd->bqk"}> : () -> ()
    %cst_182 = arith.constant dense<0.000000e+00> : vector<2x8x8xf32>
    %266 = tpu.matmul %249, %257, %cst_182 {dimension_numbers = #tpu.dot_dimension_numbers<[2], [2], [1], [1], [0, 0, 0, 1, 1, 1], [0], [0]>} : vector<2x8x16xf32>, vector<2x8x16xf32>, vector<2x8x8xf32> -> vector<2x8x8xf32>
    "tpu.trace_stop"() : () -> ()
    %cst_183 = arith.constant 2.500000e-01 : f32
    %267 = vector.broadcast %cst_183 : f32 to vector<2x8x8xf32>
    %268 = arith.mulf %266, %267 : vector<2x8x8xf32>
    %269 = vector.broadcast %0 : vector<2x1x8xf32> to vector<2x8x8xf32>
    %270 = arith.addf %268, %269 : vector<2x8x8xf32>
    %cst_184 = arith.constant dense<0xFF800000> : vector<2x8xf32>
    %271 = vector.multi_reduction <maximumf>, %270, %cst_184 [2] : vector<2x8x8xf32> to vector<2x8xf32>
    %272 = vector.shape_cast %271 : vector<2x8xf32> to vector<2x8x1xf32>
    %273 = vector.broadcast %272 : vector<2x8x1xf32> to vector<2x8x8xf32>
    %274 = arith.subf %270, %273 : vector<2x8x8xf32>
    %275 = math.exp %274 : vector<2x8x8xf32>
    %cst_185 = arith.constant dense<0.000000e+00> : vector<2x8xf32>
    %276 = vector.multi_reduction <add>, %275, %cst_185 [2] : vector<2x8x8xf32> to vector<2x8xf32>
    %277 = vector.shape_cast %276 : vector<2x8xf32> to vector<2x8x1xf32>
    %278 = tpu.reciprocal %277 {approx = true} : vector<2x8x1xf32> -> vector<2x8x1xf32>
    %279 = vector.broadcast %278 : vector<2x8x1xf32> to vector<2x8x8xf32>
    %280 = arith.mulf %275, %279 : vector<2x8x8xf32>
    "tpu.trace_start"() <{level = 10 : i32, message = "bqk,bkd->bqd"}> : () -> ()
    %cst_186 = arith.constant dense<0.000000e+00> : vector<2x8x16xf32>
    %281 = tpu.matmul %280, %265, %cst_186 {dimension_numbers = #tpu.dot_dimension_numbers<[2], [1], [1], [2], [0, 0, 0, 1, 1, 2], [0], [0]>} : vector<2x8x8xf32>, vector<2x8x16xf32>, vector<2x8x16xf32> -> vector<2x8x16xf32>
    "tpu.trace_stop"() : () -> ()
    %282 = vector.shape_cast %281 : vector<2x8x16xf32> to vector<16x16xf32>
    %c1_187 = arith.constant 1 : index
    %c1_188 = arith.constant 1 : index
    %c0_189 = arith.constant 0 : index
    %c0_190 = arith.constant 0 : index
    %283 = vector.load %arg8[%c1_187, %c1_188, %c0_189, %c0_190] : memref<2x2x16x32xf32, #tpu.memory_space<vmem>>, vector<1x1x16x32xf32>
    %284 = vector.shape_cast %283 : vector<1x1x16x32xf32> to vector<16x32xf32>
    %cst_191 = arith.constant dense<0.000000e+00> : vector<16x32xf32>
    %285 = tpu.matmul %282, %284, %cst_191 {dimension_numbers = #tpu.dot_dimension_numbers<[1], [0], [0], [1], [0, 0, 1, 1], [], []>} : vector<16x16xf32>, vector<16x32xf32>, vector<16x32xf32> -> vector<16x32xf32>
    %286 = arith.addf %241, %285 : vector<16x32xf32>
    %c8 = arith.constant 8 : index
    %c0_192 = arith.constant 0 : index
    %287 = vector.load %arg2[%c8, %c0_192] : memref<14x32xf32, #tpu.memory_space<vmem>>, vector<1x32xf32>
    %288 = vector.broadcast %287 : vector<1x32xf32> to vector<16x32xf32>
    %289 = arith.addf %286, %288 : vector<16x32xf32>
    %290 = arith.addf %195, %289 : vector<16x32xf32>
    %c9 = arith.constant 9 : index
    %c0_193 = arith.constant 0 : index
    %291 = vector.load %arg2[%c9, %c0_193] : memref<14x32xf32, #tpu.memory_space<vmem>>, vector<1x32xf32>
    %c10 = arith.constant 10 : index
    %c0_194 = arith.constant 0 : index
    %292 = vector.load %arg2[%c10, %c0_194] : memref<14x32xf32, #tpu.memory_space<vmem>>, vector<1x32xf32>
    %cst_195 = arith.constant dense<0.000000e+00> : vector<16xf32>
    %293 = vector.multi_reduction <add>, %290, %cst_195 [1] : vector<16x32xf32> to vector<16xf32>
    %294 = vector.shape_cast %293 : vector<16xf32> to vector<16x1xf32>
    %cst_196 = arith.constant 3.200000e+01 : f32
    %295 = vector.broadcast %cst_196 : f32 to vector<16x1xf32>
    %296 = arith.divf %294, %295 : vector<16x1xf32>
    %297 = vector.broadcast %296 : vector<16x1xf32> to vector<16x32xf32>
    %298 = arith.subf %290, %297 : vector<16x32xf32>
    %299 = arith.mulf %298, %298 : vector<16x32xf32>
    %cst_197 = arith.constant dense<0.000000e+00> : vector<16xf32>
    %300 = vector.multi_reduction <add>, %299, %cst_197 [1] : vector<16x32xf32> to vector<16xf32>
    %301 = vector.shape_cast %300 : vector<16xf32> to vector<16x1xf32>
    %cst_198 = arith.constant 3.200000e+01 : f32
    %302 = vector.broadcast %cst_198 : f32 to vector<16x1xf32>
    %303 = arith.divf %301, %302 : vector<16x1xf32>
    %304 = vector.broadcast %296 : vector<16x1xf32> to vector<16x32xf32>
    %305 = arith.subf %290, %304 : vector<16x32xf32>
    %cst_199 = arith.constant 9.99999996E-13 : f32
    %306 = vector.broadcast %cst_199 : f32 to vector<16x1xf32>
    %307 = arith.addf %303, %306 : vector<16x1xf32>
    %308 = math.rsqrt %307 : vector<16x1xf32>
    %309 = vector.broadcast %308 : vector<16x1xf32> to vector<16x32xf32>
    %310 = arith.mulf %305, %309 : vector<16x32xf32>
    %311 = vector.broadcast %291 : vector<1x32xf32> to vector<16x32xf32>
    %312 = arith.mulf %310, %311 : vector<16x32xf32>
    %313 = vector.broadcast %292 : vector<1x32xf32> to vector<16x32xf32>
    %314 = arith.addf %312, %313 : vector<16x32xf32>
    %c1_200 = arith.constant 1 : index
    %c0_201 = arith.constant 0 : index
    %c0_202 = arith.constant 0 : index
    %315 = vector.load %arg9[%c1_200, %c0_201, %c0_202] : memref<2x32x64xf32, #tpu.memory_space<vmem>>, vector<1x32x64xf32>
    %316 = vector.shape_cast %315 : vector<1x32x64xf32> to vector<32x64xf32>
    %cst_203 = arith.constant dense<0.000000e+00> : vector<16x64xf32>
    %317 = tpu.matmul %314, %316, %cst_203 {dimension_numbers = #tpu.dot_dimension_numbers<[1], [0], [0], [1], [0, 0, 1, 1], [], []>} : vector<16x32xf32>, vector<32x64xf32>, vector<16x64xf32> -> vector<16x64xf32>
    %c1_204 = arith.constant 1 : index
    %c0_205 = arith.constant 0 : index
    %c0_206 = arith.constant 0 : index
    %318 = vector.load %arg4[%c1_204, %c0_205, %c0_206] : memref<2x1x64xf32, #tpu.memory_space<vmem>>, vector<1x1x64xf32>
    %319 = vector.shape_cast %318 : vector<1x1x64xf32> to vector<1x64xf32>
    %320 = vector.broadcast %319 : vector<1x64xf32> to vector<16x64xf32>
    %321 = arith.addf %317, %320 : vector<16x64xf32>
    %cst_207 = arith.constant 5.000000e-01 : f32
    %322 = vector.broadcast %cst_207 : f32 to vector<16x64xf32>
    %323 = arith.mulf %322, %321 : vector<16x64xf32>
    %cst_208 = arith.constant 4.471500e-02 : f32
    %324 = vector.broadcast %cst_208 : f32 to vector<16x64xf32>
    %325 = arith.mulf %324, %321 : vector<16x64xf32>
    %326 = arith.mulf %325, %321 : vector<16x64xf32>
    %327 = arith.mulf %326, %321 : vector<16x64xf32>
    %328 = arith.addf %321, %327 : vector<16x64xf32>
    %cst_209 = arith.constant 0.797884583 : f32
    %329 = vector.broadcast %cst_209 : f32 to vector<16x64xf32>
    %330 = arith.mulf %329, %328 : vector<16x64xf32>
    %331 = math.tanh %330 : vector<16x64xf32>
    %cst_210 = arith.constant 1.000000e+00 : f32
    %332 = vector.broadcast %cst_210 : f32 to vector<16x64xf32>
    %333 = arith.addf %332, %331 : vector<16x64xf32>
    %334 = arith.mulf %323, %333 : vector<16x64xf32>
    %c1_211 = arith.constant 1 : index
    %c0_212 = arith.constant 0 : index
    %c0_213 = arith.constant 0 : index
    %335 = vector.load %arg10[%c1_211, %c0_212, %c0_213] : memref<2x64x32xf32, #tpu.memory_space<vmem>>, vector<1x64x32xf32>
    %336 = vector.shape_cast %335 : vector<1x64x32xf32> to vector<64x32xf32>
    %cst_214 = arith.constant dense<0.000000e+00> : vector<16x32xf32>
    %337 = tpu.matmul %334, %336, %cst_214 {dimension_numbers = #tpu.dot_dimension_numbers<[1], [0], [0], [1], [0, 0, 1, 1], [], []>} : vector<16x64xf32>, vector<64x32xf32>, vector<16x32xf32> -> vector<16x32xf32>
    %c11 = arith.constant 11 : index
    %c0_215 = arith.constant 0 : index
    %338 = vector.load %arg2[%c11, %c0_215] : memref<14x32xf32, #tpu.memory_space<vmem>>, vector<1x32xf32>
    %339 = vector.broadcast %338 : vector<1x32xf32> to vector<16x32xf32>
    %340 = arith.addf %337, %339 : vector<16x32xf32>
    %341 = arith.addf %314, %340 : vector<16x32xf32>
    %c12 = arith.constant 12 : index
    %c0_216 = arith.constant 0 : index
    %342 = vector.load %arg2[%c12, %c0_216] : memref<14x32xf32, #tpu.memory_space<vmem>>, vector<1x32xf32>
    %c13 = arith.constant 13 : index
    %c0_217 = arith.constant 0 : index
    %343 = vector.load %arg2[%c13, %c0_217] : memref<14x32xf32, #tpu.memory_space<vmem>>, vector<1x32xf32>
    %cst_218 = arith.constant dense<0.000000e+00> : vector<16xf32>
    %344 = vector.multi_reduction <add>, %341, %cst_218 [1] : vector<16x32xf32> to vector<16xf32>
    %345 = vector.shape_cast %344 : vector<16xf32> to vector<16x1xf32>
    %cst_219 = arith.constant 3.200000e+01 : f32
    %346 = vector.broadcast %cst_219 : f32 to vector<16x1xf32>
    %347 = arith.divf %345, %346 : vector<16x1xf32>
    %348 = vector.broadcast %347 : vector<16x1xf32> to vector<16x32xf32>
    %349 = arith.subf %341, %348 : vector<16x32xf32>
    %350 = arith.mulf %349, %349 : vector<16x32xf32>
    %cst_220 = arith.constant dense<0.000000e+00> : vector<16xf32>
    %351 = vector.multi_reduction <add>, %350, %cst_220 [1] : vector<16x32xf32> to vector<16xf32>
    %352 = vector.shape_cast %351 : vector<16xf32> to vector<16x1xf32>
    %cst_221 = arith.constant 3.200000e+01 : f32
    %353 = vector.broadcast %cst_221 : f32 to vector<16x1xf32>
    %354 = arith.divf %352, %353 : vector<16x1xf32>
    %355 = vector.broadcast %347 : vector<16x1xf32> to vector<16x32xf32>
    %356 = arith.subf %341, %355 : vector<16x32xf32>
    %cst_222 = arith.constant 9.99999996E-13 : f32
    %357 = vector.broadcast %cst_222 : f32 to vector<16x1xf32>
    %358 = arith.addf %354, %357 : vector<16x1xf32>
    %359 = math.rsqrt %358 : vector<16x1xf32>
    %360 = vector.broadcast %359 : vector<16x1xf32> to vector<16x32xf32>
    %361 = arith.mulf %356, %360 : vector<16x32xf32>
    %362 = vector.broadcast %342 : vector<1x32xf32> to vector<16x32xf32>
    %363 = arith.mulf %361, %362 : vector<16x32xf32>
    %364 = vector.broadcast %343 : vector<1x32xf32> to vector<16x32xf32>
    %365 = arith.addf %363, %364 : vector<16x32xf32>
    %c0_223 = arith.constant 0 : index
    %c0_224 = arith.constant 0 : index
    %366 = vector.load %arg11[%c0_223, %c0_224] : memref<16x32xf32, #tpu.memory_space<vmem>>, vector<16x32xf32>
    tpu.vector_store %arg11[%c0_223, %c0_224], %365 {strides = array<i32>} : memref<16x32xf32, #tpu.memory_space<vmem>>, vector<16x32xf32>,
    return
  }
}

</mosaic_0001>

<llo_original>
// kernel: stancex_textual_forward.1
$region0: #{stancex_textual_forward.1}
  #allocation0 [shape = 'u32[]', space=smem, size = 0x4, offset = 0x4, fixed_abs, tag = 'smem constant byte address 0x4 - core index']
  #allocation1 [shape = 'u32[144,128]{1,0:T(1,128)}', space=vmem, size = 0x12000, scoped, tag = 'internal scratch']
  %s0 = inlined_call_operand.vmem [shape: f32[16,32], index: 0, kind: input, shape index: {}]
  %s1 = inlined_call_operand.vmem [shape: f32[2,1,8], index: 1, kind: input, shape index: {}]
  %s2 = inlined_call_operand.vmem [shape: f32[14,32], index: 2, kind: input, shape index: {}]
  %s3 = inlined_call_operand.vmem [shape: f32[2,2,3,16], index: 3, kind: input, shape index: {}]
  %s4 = inlined_call_operand.vmem [shape: f32[2,1,64], index: 4, kind: input, shape index: {}]
  %s5 = inlined_call_operand.vmem [shape: f32[2,2,32,16], index: 5, kind: input, shape index: {}]
  %s6 = inlined_call_operand.vmem [shape: f32[2,2,32,16], index: 6, kind: input, shape index: {}]
  %s7 = inlined_call_operand.vmem [shape: f32[2,2,32,16], index: 7, kind: input, shape index: {}]
  %s8 = inlined_call_operand.vmem [shape: f32[2,2,16,32], index: 8, kind: input, shape index: {}]
  %s9 = inlined_call_operand.vmem [shape: f32[2,32,64], index: 9, kind: input, shape index: {}]
  %s10 = inlined_call_operand.vmem [shape: f32[2,64,32], index: 10, kind: input, shape index: {}]
  %s11 = inlined_call_operand.vmem [shape: f32[16,32], index: 11, kind: output, shape index: {}]
  %s12 = sld [smem:[#allocation0]]
  $region54: #{stancex_textual_forward.1} parent=0
    _
  %s14 = ssub.s32 1, %s12
  %s15 = scalar_select 0, %s14, %s12
  // Predicated region
  $region2: #{stancex_textual_forward.1} parent=0 // pred_check
    _
  $region3: #{stancex_textual_forward.1} parent=0 // pred_check_branch
    %17 = sbr.rel (0) target = $region5
  $region4: #{stancex_textual_forward.1} parent=0 // pred_region
    _
  $region5: #{stancex_textual_forward.1} parent=0 // pred_fallthru
    _
  // Predicated region
  $region6: #{stancex_textual_forward.1} parent=0 // pred_check
    _
  $region7: #{stancex_textual_forward.1} parent=0 // pred_check_branch
    %19 = sbr.rel (0) target = $region9
  $region8: #{stancex_textual_forward.1} parent=0 // pred_region
    _
  $region9: #{stancex_textual_forward.1} parent=0 // pred_fallthru
    _
  // Predicated region
  $region10: #{stancex_textual_forward.1} parent=0 // pred_check
    _
  $region11: #{stancex_textual_forward.1} parent=0 // pred_check_branch
    %21 = sbr.rel (0) target = $region13
  $region12: #{stancex_textual_forward.1} parent=0 // pred_region
    _
  $region13: #{stancex_textual_forward.1} parent=0 // pred_fallthru
    _
  // Predicated region
  $region14: #{stancex_textual_forward.1} parent=0 // pred_check
    _
  $region15: #{stancex_textual_forward.1} parent=0 // pred_check_branch
    %23 = sbr.rel (0) target = $region17
  $region16: #{stancex_textual_forward.1} parent=0 // pred_region
    _
  $region17: #{stancex_textual_forward.1} parent=0 // pred_fallthru
    _
  // Predicated region
  $region18: #{stancex_textual_forward.1} parent=0 // pred_check
    _
  $region19: #{stancex_textual_forward.1} parent=0 // pred_check_branch
    %25 = sbr.rel (0) target = $region21
  $region20: #{stancex_textual_forward.1} parent=0 // pred_region
    _
  $region21: #{stancex_textual_forward.1} parent=0 // pred_fallthru
    _
  // Predicated region
  $region22: #{stancex_textual_forward.1} parent=0 // pred_check
    _
  $region23: #{stancex_textual_forward.1} parent=0 // pred_check_branch
    %27 = sbr.rel (0) target = $region25
  $region24: #{stancex_textual_forward.1} parent=0 // pred_region
    _
  $region25: #{stancex_textual_forward.1} parent=0 // pred_fallthru
    _
  // Predicated region
  $region26: #{stancex_textual_forward.1} parent=0 // pred_check
    _
  $region27: #{stancex_textual_forward.1} parent=0 // pred_check_branch
    %29 = sbr.rel (0) target = $region29
  $region28: #{stancex_textual_forward.1} parent=0 // pred_region
    _
  $region29: #{stancex_textual_forward.1} parent=0 // pred_fallthru
    _
  // Predicated region
  $region30: #{stancex_textual_forward.1} parent=0 // pred_check
    _
  $region31: #{stancex_textual_forward.1} parent=0 // pred_check_branch
    %31 = sbr.rel (0) target = $region33
  $region32: #{stancex_textual_forward.1} parent=0 // pred_region
    _
  $region33: #{stancex_textual_forward.1} parent=0 // pred_fallthru
    _
  // Predicated region
  $region34: #{stancex_textual_forward.1} parent=0 // pred_check
    _
  $region35: #{stancex_textual_forward.1} parent=0 // pred_check_branch
    %33 = sbr.rel (0) target = $region37
  $region36: #{stancex_textual_forward.1} parent=0 // pred_region
    _
  $region37: #{stancex_textual_forward.1} parent=0 // pred_fallthru
    _
  // Predicated region
  $region38: #{stancex_textual_forward.1} parent=0 // pred_check
    _
  $region39: #{stancex_textual_forward.1} parent=0 // pred_check_branch
    %35 = sbr.rel (0) target = $region41
  $region40: #{stancex_textual_forward.1} parent=0 // pred_region
    _
  $region41: #{stancex_textual_forward.1} parent=0 // pred_fallthru
    _
  // Predicated region
  $region42: #{stancex_textual_forward.1} parent=0 // pred_check
    _
  $region43: #{stancex_textual_forward.1} parent=0 // pred_check_branch
    %37 = sbr.rel (0) target = $region45
  $region44: #{stancex_textual_forward.1} parent=0 // pred_region
    _
  $region45: #{stancex_textual_forward.1} parent=0 // pred_fallthru
    _
  %v38 = vld [vmem:[%s1] sm:$0x1]
  %v39 = vld [vmem:[%s1 + $0x1] sm:$0x1]
  %v40 = vld [vmem:[%s0] sm:$0xff]
  %v41 = vld [vmem:[%s0 + $0x8] sm:$0xff]
  %v42 = vld [vmem:[%s2] sm:$0x1]
  %v43 = vld [vmem:[%s2 + $0x1] sm:$0x1]
  %vm44 = vcmask 261120
  %v45 = vsel %vm44, %v40, 0.0
  %46 = vadd.xlane.f32.xlu0 %v45
  %v47 = vpop.xlane.xlu0 %46
  %v48 = vsel %vm44, %v41, 0.0
  %49 = vadd.xlane.f32.xlu0 %v48
  %v50 = vpop.xlane.xlu0 %49
  %v51 = vrcp.pop 32.0
  %v52 = vmul.f32 %v47, %v51
  %v53 = vmul.f32 %v50, %v51
  %v54 = vsub.f32 %v40, %v52
  %v55 = vsub.f32 %v41, %v53
  %v56 = vmul.f32 %v54, %v54
  %v57 = vmul.f32 %v55, %v55
  %v58 = vsel %vm44, %v56, 0.0
  %59 = vadd.xlane.f32.xlu0 %v58
  %v60 = vpop.xlane.xlu0 %59
  %v61 = vsel %vm44, %v57, 0.0
  %62 = vadd.xlane.f32.xlu0 %v61
  %v63 = vpop.xlane.xlu0 %62
  %v64 = vmul.f32 %v60, %v51
  %v65 = vmul.f32 %v63, %v51
  %v66 = vadd.f32 %v64, 1e-12
  %v67 = vadd.f32 %v65, 1e-12
  %v68 = vrsqrt.pop %v66
  %v69 = vrsqrt.pop %v67
  %v70 = vmul.f32 %v54, %v68
  %v71 = vmul.f32 %v55, %v69
  %v72 = vlaneseq
  %v73 = vshrl.u32 %v72, 7
  %v74 = vsub.s32 0, %v73
  %v75 = vrot.slane %v42, %v74
  %v76 = vmul.f32 %v70, %v75
  %v77 = vmul.f32 %v71, %v75
  %v78 = vlaneseq
  %v79 = vshrl.u32 %v78, 7
  %v80 = vsub.s32 0, %v79
  %v81 = vrot.slane %v43, %v80
  %v82 = vadd.f32 %v76, %v81
  %v83 = vadd.f32 %v77, %v81
  %v84 = vld [vmem:[%s5] sm:$0xff]
  %v85 = vld [vmem:[%s5 + $0x8] sm:$0xff]
  %v86 = vld [vmem:[%s5 + $0x10] sm:$0xff]
  %v87 = vld [vmem:[%s5 + $0x18] sm:$0xff]
  %v88 = vld [vmem:[%s3] sm:$0x1]
  %v89 = vlaneseq
  %v90 = vshrl.u32 %v89, 7
  %v91 = vsub.s32 0, %v90
  %v92 = vrot.slane %v88, %v91
  %v94 = vsel %vm44, %v82, 0
  %v97 = vsel %vm44, %v83, 0
  %99 = vmatprep.subr.mxu0 0.0
  %100 = vmatpush1.msra.mxu0 0.0
  %101 = vmatprep.subr.mxu0 0.0
  %102 = vmatpush1.msra.mxu0 0.0
  %103 = vmatprep.subr.mxu0 0.0
  %104 = vmatpush1.msra.mxu0 0.0
  %105 = vmatprep.subr.mxu0 0.0
  %106 = vmatpush1.msra.mxu0 0.0
  %107 = vmatprep.subr.mxu0 0.0
  %108 = vmatpush1.msra.mxu0 0.0
  %109 = vmatprep.subr.mxu0 0.0
  %110 = vmatpush1.msra.mxu0 0.0
  %111 = vmatprep.subr.mxu0 0.0
  %112 = vmatpush1.msra.mxu0 0.0
  %113 = vmatprep.subr.mxu0 0.0
  %114 = vmatpush1.msra.mxu0 0.0
  %115 = vmatprep.subr.mxu0 0.0
  %116 = vmatpush1.msra.mxu0 0.0
  %117 = vmatprep.subr.mxu0 0.0
  %118 = vmatpush1.msra.mxu0 0.0
  %119 = vmatprep.subr.mxu0 0.0
  %120 = vmatpush1.msra.mxu0 0.0
  %121 = vmatprep.subr.mxu0 0.0
  %122 = vmatpush1.msra.mxu0 0.0
  %123 = vmatprep.subr.mxu0 0.0
  %124 = vmatpush1.msra.mxu0 %v87
  %125 = vmatprep.subr.mxu0 0.0
  %126 = vmatpush1.msra.mxu0 %v86
  %127 = vmatprep.subr.mxu0 0.0
  %128 = vmatpush1.msra.mxu0 %v85
  %129 = vmatprep.subr.mxu0 0.0
  %130 = vmatpush1.msra.mxu0 %v84
  %131 = vmatprep.subr.mxu0 0.0
  %132 = vmatpush2.msra.mxu0 0.0
  %133 = vmatprep.subr.mxu0 0.0
  %134 = vmatpush2.msra.mxu0 0.0
  %135 = vmatprep.subr.mxu0 0.0
  %136 = vmatpush2.msra.mxu0 0.0
  %137 = vmatprep.subr.mxu0 0.0
  %138 = vmatpush2.msra.mxu0 0.0
  %139 = vmatprep.subr.mxu0 0.0
  %140 = vmatpush2.msra.mxu0 0.0
  %141 = vmatprep.subr.mxu0 0.0
  %142 = vmatpush2.msra.mxu0 0.0
  %143 = vmatprep.subr.mxu0 0.0
  %144 = vmatpush2.msra.mxu0 0.0
  %145 = vmatprep.subr.mxu0 0.0
  %146 = vmatpush2.msra.mxu0 0.0
  %147 = vmatprep.subr.mxu0 0.0
  %148 = vmatpush2.msra.mxu0 0.0
  %149 = vmatprep.subr.mxu0 0.0
  %150 = vmatpush2.msra.mxu0 0.0
  %151 = vmatprep.subr.mxu0 0.0
  %152 = vmatpush2.msra.mxu0 0.0
  %153 = vmatprep.subr.mxu0 0.0
  %154 = vmatpush2.msra.mxu0 0.0
  %155 = vmatprep.subr.mxu0 0.0
  %156 = vmatpush2.msra.mxu0 0.0
  %157 = vmatprep.subr.mxu0 0.0
  %158 = vmatpush2.msra.mxu0 0.0
  %159 = vmatprep.subr.mxu0 0.0
  %160 = vmatpush2.msra.mxu0 0.0
  %161 = vmatprep.subr.mxu0 0.0
  %162 = vmatpush2.msra.mxu0 0.0
  %163 = vmatprep.mubr.f32.mxu0 0.0
  %164 = vmatmul.mubr.f32.gmra.mxu0 %v94
  %v165 = vpop.f32.mrf.mxu0
  %v166 = vadd.f32 %v92, %v165
  %v167 = vpop.f32.mrf.mxu0
  %168 = vmatprep.mubr.f32.mxu0 0.0
  %169 = vmatmul.mubr.f32.gmra.mxu0 %v97
  %v170 = vpop.f32.mrf.mxu0
  %v171 = vadd.f32 %v92, %v170
  %v172 = vpop.f32.mrf.mxu0
  %173 = vdwg.mxu0
  %v174 = vld [vmem:[%s6] sm:$0xff]
  %v175 = vld [vmem:[%s6 + $0x8] sm:$0xff]
  %v176 = vld [vmem:[%s6 + $0x10] sm:$0xff]
  %v177 = vld [vmem:[%s6 + $0x18] sm:$0xff]
  %v178 = vld [vmem:[%s3 + $0x1] sm:$0x1]
  %v179 = vlaneseq
  %v180 = vshrl.u32 %v179, 7
  %v181 = vsub.s32 0, %v180
  %v182 = vrot.slane %v178, %v181
  %183 = vmatprep.subr.mxu0 0.0
  %184 = vmatpush1.msra.mxu0 0.0
  %185 = vmatprep.subr.mxu0 0.0
  %186 = vmatpush1.msra.mxu0 0.0
  %187 = vmatprep.subr.mxu0 0.0
  %188 = vmatpush1.msra.mxu0 0.0
  %189 = vmatprep.subr.mxu0 0.0
  %190 = vmatpush1.msra.mxu0 0.0
  %191 = vmatprep.subr.mxu0 0.0
  %192 = vmatpush1.msra.mxu0 0.0
  %193 = vmatprep.subr.mxu0 0.0
  %194 = vmatpush1.msra.mxu0 0.0
  %195 = vmatprep.subr.mxu0 0.0
  %196 = vmatpush1.msra.mxu0 0.0
  %197 = vmatprep.subr.mxu0 0.0
  %198 = vmatpush1.msra.mxu0 0.0
  %199 = vmatprep.subr.mxu0 0.0
  %200 = vmatpush1.msra.mxu0 0.0
  %201 = vmatprep.subr.mxu0 0.0
  %202 = vmatpush1.msra.mxu0 0.0
  %203 = vmatprep.subr.mxu0 0.0
  %204 = vmatpush1.msra.mxu0 0.0
  %205 = vmatprep.subr.mxu0 0.0
  %206 = vmatpush1.msra.mxu0 0.0
  %207 = vmatprep.subr.mxu0 0.0
  %208 = vmatpush1.msra.mxu0 %v177
  %209 = vmatprep.subr.mxu0 0.0
  %210 = vmatpush1.msra.mxu0 %v176
  %211 = vmatprep.subr.mxu0 0.0
  %212 = vmatpush1.msra.mxu0 %v175
  %213 = vmatprep.subr.mxu0 0.0
  %214 = vmatpush1.msra.mxu0 %v174
  %215 = vmatprep.subr.mxu0 0.0
  %216 = vmatpush2.msra.mxu0 0.0
  %217 = vmatprep.subr.mxu0 0.0
  %218 = vmatpush2.msra.mxu0 0.0
  %219 = vmatprep.subr.mxu0 0.0
  %220 = vmatpush2.msra.mxu0 0.0
  %221 = vmatprep.subr.mxu0 0.0
  %222 = vmatpush2.msra.mxu0 0.0
  %223 = vmatprep.subr.mxu0 0.0
  %224 = vmatpush2.msra.mxu0 0.0
  %225 = vmatprep.subr.mxu0 0.0
  %226 = vmatpush2.msra.mxu0 0.0
  %227 = vmatprep.subr.mxu0 0.0
  %228 = vmatpush2.msra.mxu0 0.0
  %229 = vmatprep.subr.mxu0 0.0
  %230 = vmatpush2.msra.mxu0 0.0
  %231 = vmatprep.subr.mxu0 0.0
  %232 = vmatpush2.msra.mxu0 0.0
  %233 = vmatprep.subr.mxu0 0.0
  %234 = vmatpush2.msra.mxu0 0.0
  %235 = vmatprep.subr.mxu0 0.0
  %236 = vmatpush2.msra.mxu0 0.0
  %237 = vmatprep.subr.mxu0 0.0
  %238 = vmatpush2.msra.mxu0 0.0
  %239 = vmatprep.subr.mxu0 0.0
  %240 = vmatpush2.msra.mxu0 0.0
  %241 = vmatprep.subr.mxu0 0.0
  %242 = vmatpush2.msra.mxu0 0.0
  %243 = vmatprep.subr.mxu0 0.0
  %244 = vmatpush2.msra.mxu0 0.0
  %245 = vmatprep.subr.mxu0 0.0
  %246 = vmatpush2.msra.mxu0 0.0
  %247 = vmatprep.mubr.f32.mxu0 0.0
  %248 = vmatmul.mubr.f32.gmra.mxu0 %v94
  %v249 = vpop.f32.mrf.mxu0
  %v250 = vadd.f32 %v182, %v249
  %v251 = vpop.f32.mrf.mxu0
  %252 = vmatprep.mubr.f32.mxu0 0.0
  %253 = vmatmul.mubr.f32.gmra.mxu0 %v97
  %v254 = vpop.f32.mrf.mxu0
  %v255 = vadd.f32 %v182, %v254
  %v256 = vpop.f32.mrf.mxu0
  %257 = vdwg.mxu0
  %v258 = vld [vmem:[%s7] sm:$0xff]
  %v259 = vld [vmem:[%s7 + $0x8] sm:$0xff]
  %v260 = vld [vmem:[%s7 + $0x10] sm:$0xff]
  %v261 = vld [vmem:[%s7 + $0x18] sm:$0xff]
  %v262 = vld [vmem:[%s3 + $0x2] sm:$0x1]
  %v263 = vlaneseq
  %v264 = vshrl.u32 %v263, 7
  %v265 = vsub.s32 0, %v264
  %v266 = vrot.slane %v262, %v265
  %267 = vmatprep.subr.mxu0 0.0
  %268 = vmatpush1.msra.mxu0 0.0
  %269 = vmatprep.subr.mxu0 0.0
  %270 = vmatpush1.msra.mxu0 0.0
  %271 = vmatprep.subr.mxu0 0.0
  %272 = vmatpush1.msra.mxu0 0.0
  %273 = vmatprep.subr.mxu0 0.0
  %274 = vmatpush1.msra.mxu0 0.0
  %275 = vmatprep.subr.mxu0 0.0
  %276 = vmatpush1.msra.mxu0 0.0
  %277 = vmatprep.subr.mxu0 0.0
  %278 = vmatpush1.msra.mxu0 0.0
  %279 = vmatprep.subr.mxu0 0.0
  %280 = vmatpush1.msra.mxu0 0.0
  %281 = vmatprep.subr.mxu0 0.0
  %282 = vmatpush1.msra.mxu0 0.0
  %283 = vmatprep.subr.mxu0 0.0
  %284 = vmatpush1.msra.mxu0 0.0
  %285 = vmatprep.subr.mxu0 0.0
  %286 = vmatpush1.msra.mxu0 0.0
  %287 = vmatprep.subr.mxu0 0.0
  %288 = vmatpush1.msra.mxu0 0.0
  %289 = vmatprep.subr.mxu0 0.0
  %290 = vmatpush1.msra.mxu0 0.0
  %291 = vmatprep.subr.mxu0 0.0
  %292 = vmatpush1.msra.mxu0 %v261
  %293 = vmatprep.subr.mxu0 0.0
  %294 = vmatpush1.msra.mxu0 %v260
  %295 = vmatprep.subr.mxu0 0.0
  %296 = vmatpush1.msra.mxu0 %v259
  %297 = vmatprep.subr.mxu0 0.0
  %298 = vmatpush1.msra.mxu0 %v258
  %299 = vmatprep.subr.mxu0 0.0
  %300 = vmatpush2.msra.mxu0 0.0
  %301 = vmatprep.subr.mxu0 0.0
  %302 = vmatpush2.msra.mxu0 0.0
  %303 = vmatprep.subr.mxu0 0.0
  %304 = vmatpush2.msra.mxu0 0.0
  %305 = vmatprep.subr.mxu0 0.0
  %306 = vmatpush2.msra.mxu0 0.0
  %307 = vmatprep.subr.mxu0 0.0
  %308 = vmatpush2.msra.mxu0 0.0
  %309 = vmatprep.subr.mxu0 0.0
  %310 = vmatpush2.msra.mxu0 0.0
  %311 = vmatprep.subr.mxu0 0.0
  %312 = vmatpush2.msra.mxu0 0.0
  %313 = vmatprep.subr.mxu0 0.0
  %314 = vmatpush2.msra.mxu0 0.0
  %315 = vmatprep.subr.mxu0 0.0
  %316 = vmatpush2.msra.mxu0 0.0
  %317 = vmatprep.subr.mxu0 0.0
  %318 = vmatpush2.msra.mxu0 0.0
  %319 = vmatprep.subr.mxu0 0.0
  %320 = vmatpush2.msra.mxu0 0.0
  %321 = vmatprep.subr.mxu0 0.0
  %322 = vmatpush2.msra.mxu0 0.0
  %323 = vmatprep.subr.mxu0 0.0
  %324 = vmatpush2.msra.mxu0 0.0
  %325 = vmatprep.subr.mxu0 0.0
  %326 = vmatpush2.msra.mxu0 0.0
  %327 = vmatprep.subr.mxu0 0.0
  %328 = vmatpush2.msra.mxu0 0.0
  %329 = vmatprep.subr.mxu0 0.0
  %330 = vmatpush2.msra.mxu0 0.0
  %331 = vmatprep.mubr.f32.mxu0 0.0
  %332 = vmatmul.mubr.f32.gmra.mxu0 %v94
  %v333 = vpop.f32.mrf.mxu0
  %v334 = vadd.f32 %v266, %v333
  %v335 = vpop.f32.mrf.mxu0
  %336 = vmatprep.mubr.f32.mxu0 0.0
  %337 = vmatmul.mubr.f32.gmra.mxu0 %v97
  %v338 = vpop.f32.mrf.mxu0
  %v339 = vadd.f32 %v266, %v338
  %v340 = vpop.f32.mrf.mxu0
  %341 = vdwg.mxu0
  %vm342 = vcmask 130048
  %v344 = vsel %vm342, %v166, 0
  %v347 = vsel %vm342, %v250, 0
  %349 = vmatprep.subr.mxu0 0.0
  %350 = vmatpush1.xpose.msra.mxu0 0.0
  %351 = vmatprep.subr.mxu0 0.0
  %352 = vmatpush1.xpose.msra.mxu0 0.0
  %353 = vmatprep.subr.mxu0 0.0
  %354 = vmatpush1.xpose.msra.mxu0 0.0
  %355 = vmatprep.subr.mxu0 0.0
  %356 = vmatpush1.xpose.msra.mxu0 0.0
  %357 = vmatprep.subr.mxu0 0.0
  %358 = vmatpush1.xpose.msra.mxu0 0.0
  %359 = vmatprep.subr.mxu0 0.0
  %360 = vmatpush1.xpose.msra.mxu0 0.0
  %361 = vmatprep.subr.mxu0 0.0
  %362 = vmatpush1.xpose.msra.mxu0 0.0
  %363 = vmatprep.subr.mxu0 0.0
  %364 = vmatpush1.xpose.msra.mxu0 0.0
  %365 = vmatprep.subr.mxu0 0.0
  %366 = vmatpush1.xpose.msra.mxu0 0.0
  %367 = vmatprep.subr.mxu0 0.0
  %368 = vmatpush1.xpose.msra.mxu0 0.0
  %369 = vmatprep.subr.mxu0 0.0
  %370 = vmatpush1.xpose.msra.mxu0 0.0
  %371 = vmatprep.subr.mxu0 0.0
  %372 = vmatpush1.xpose.msra.mxu0 0.0
  %373 = vmatprep.subr.mxu0 0.0
  %374 = vmatpush1.xpose.msra.mxu0 0.0
  %375 = vmatprep.subr.mxu0 0.0
  %376 = vmatpush1.xpose.msra.mxu0 0.0
  %377 = vmatprep.subr.mxu0 0.0
  %378 = vmatpush1.xpose.msra.mxu0 0.0
  %379 = vmatprep.subr.mxu0 0.0
  %380 = vmatpush1.xpose.msra.mxu0 %v347
  %381 = vmatprep.subr.mxu0 0.0
  %382 = vmatpush2.xpose.msra.mxu0 0.0
  %383 = vmatprep.subr.mxu0 0.0
  %384 = vmatpush2.xpose.msra.mxu0 0.0
  %385 = vmatprep.subr.mxu0 0.0
  %386 = vmatpush2.xpose.msra.mxu0 0.0
  %387 = vmatprep.subr.mxu0 0.0
  %388 = vmatpush2.xpose.msra.mxu0 0.0
  %389 = vmatprep.subr.mxu0 0.0
  %390 = vmatpush2.xpose.msra.mxu0 0.0
  %391 = vmatprep.subr.mxu0 0.0
  %392 = vmatpush2.xpose.msra.mxu0 0.0
  %393 = vmatprep.subr.mxu0 0.0
  %394 = vmatpush2.xpose.msra.mxu0 0.0
  %395 = vmatprep.subr.mxu0 0.0
  %396 = vmatpush2.xpose.msra.mxu0 0.0
  %397 = vmatprep.subr.mxu0 0.0
  %398 = vmatpush2.xpose.msra.mxu0 0.0
  %399 = vmatprep.subr.mxu0 0.0
  %400 = vmatpush2.xpose.msra.mxu0 0.0
  %401 = vmatprep.subr.mxu0 0.0
  %402 = vmatpush2.xpose.msra.mxu0 0.0
  %403 = vmatprep.subr.mxu0 0.0
  %404 = vmatpush2.xpose.msra.mxu0 0.0
  %405 = vmatprep.subr.mxu0 0.0
  %406 = vmatpush2.xpose.msra.mxu0 0.0
  %407 = vmatprep.subr.mxu0 0.0
  %408 = vmatpush2.xpose.msra.mxu0 0.0
  %409 = vmatprep.subr.mxu0 0.0
  %410 = vmatpush2.xpose.msra.mxu0 0.0
  %411 = vmatprep.subr.mxu0 0.0
  %412 = vmatpush2.xpose.msra.mxu0 0.0
  %413 = vmatprep.mubr.f32.mxu0 0.0
  %414 = vmatmul.mubr.f32.gmra.mxu0 %v344
  %v415 = vpop.f32.mrf.mxu0
  %v416 = vadd.f32 0.0, %v415
  %v417 = vpop.f32.mrf.mxu0
  %418 = vdwg.mxu0
  %v420 = vsel %vm342, %v171, 0
  %v423 = vsel %vm342, %v255, 0
  %425 = vmatprep.subr.mxu0 0.0
  %426 = vmatpush1.xpose.msra.mxu0 0.0
  %427 = vmatprep.subr.mxu0 0.0
  %428 = vmatpush1.xpose.msra.mxu0 0.0
  %429 = vmatprep.subr.mxu0 0.0
  %430 = vmatpush1.xpose.msra.mxu0 0.0
  %431 = vmatprep.subr.mxu0 0.0
  %432 = vmatpush1.xpose.msra.mxu0 0.0
  %433 = vmatprep.subr.mxu0 0.0
  %434 = vmatpush1.xpose.msra.mxu0 0.0
  %435 = vmatprep.subr.mxu0 0.0
  %436 = vmatpush1.xpose.msra.mxu0 0.0
  %437 = vmatprep.subr.mxu0 0.0
  %438 = vmatpush1.xpose.msra.mxu0 0.0
  %439 = vmatprep.subr.mxu0 0.0
  %440 = vmatpush1.xpose.msra.mxu0 0.0
  %441 = vmatprep.subr.mxu0 0.0
  %442 = vmatpush1.xpose.msra.mxu0 0.0
  %443 = vmatprep.subr.mxu0 0.0
  %444 = vmatpush1.xpose.msra.mxu0 0.0
  %445 = vmatprep.subr.mxu0 0.0
  %446 = vmatpush1.xpose.msra.mxu0 0.0
  %447 = vmatprep.subr.mxu0 0.0
  %448 = vmatpush1.xpose.msra.mxu0 0.0
  %449 = vmatprep.subr.mxu0 0.0
  %450 = vmatpush1.xpose.msra.mxu0 0.0
  %451 = vmatprep.subr.mxu0 0.0
  %452 = vmatpush1.xpose.msra.mxu0 0.0
  %453 = vmatprep.subr.mxu0 0.0
  %454 = vmatpush1.xpose.msra.mxu0 0.0
  %455 = vmatprep.subr.mxu0 0.0
  %456 = vmatpush1.xpose.msra.mxu0 %v423
  %457 = vmatprep.subr.mxu0 0.0
  %458 = vmatpush2.xpose.msra.mxu0 0.0
  %459 = vmatprep.subr.mxu0 0.0
  %460 = vmatpush2.xpose.msra.mxu0 0.0
  %461 = vmatprep.subr.mxu0 0.0
  %462 = vmatpush2.xpose.msra.mxu0 0.0
  %463 = vmatprep.subr.mxu0 0.0
  %464 = vmatpush2.xpose.msra.mxu0 0.0
  %465 = vmatprep.subr.mxu0 0.0
  %466 = vmatpush2.xpose.msra.mxu0 0.0
  %467 = vmatprep.subr.mxu0 0.0
  %468 = vmatpush2.xpose.msra.mxu0 0.0
  %469 = vmatprep.subr.mxu0 0.0
  %470 = vmatpush2.xpose.msra.mxu0 0.0
  %471 = vmatprep.subr.mxu0 0.0
  %472 = vmatpush2.xpose.msra.mxu0 0.0
  %473 = vmatprep.subr.mxu0 0.0
  %474 = vmatpush2.xpose.msra.mxu0 0.0
  %475 = vmatprep.subr.mxu0 0.0
  %476 = vmatpush2.xpose.msra.mxu0 0.0
  %477 = vmatprep.subr.mxu0 0.0
  %478 = vmatpush2.xpose.msra.mxu0 0.0
  %479 = vmatprep.subr.mxu0 0.0
  %480 = vmatpush2.xpose.msra.mxu0 0.0
  %481 = vmatprep.subr.mxu0 0.0
  %482 = vmatpush2.xpose.msra.mxu0 0.0
  %483 = vmatprep.subr.mxu0 0.0
  %484 = vmatpush2.xpose.msra.mxu0 0.0
  %485 = vmatprep.subr.mxu0 0.0
  %486 = vmatpush2.xpose.msra.mxu0 0.0
  %487 = vmatprep.subr.mxu0 0.0
  %488 = vmatpush2.xpose.msra.mxu0 0.0
  %489 = vmatprep.mubr.f32.mxu0 0.0
  %490 = vmatmul.mubr.f32.gmra.mxu0 %v420
  %v491 = vpop.f32.mrf.mxu0
  %v492 = vadd.f32 0.0, %v491
  %v493 = vpop.f32.mrf.mxu0
  %494 = vdwg.mxu0
  %v495 = vmul.f32 %v416, 0.25
  %v496 = vmul.f32 %v492, 0.25
  %v499 = vlaneseq
  %v500 = vshrl.u32 %v499, 7
  %v501 = vsub.s32 0, %v500
  %v502 = vrot.slane %v38, %v501
  %v503 = vlaneseq
  %v504 = vshrl.u32 %v503, 7
  %v505 = vsub.s32 0, %v504
  %v506 = vrot.slane %v39, %v505
  %v509 = vadd.f32 %v495, %v502
  %v510 = vadd.f32 %v496, %v506
  %vm511 = vcmask 64512
  %v512 = vsel %vm511, %v509, -inf
  %513 = vmax.xlane.f32.xlu0 %v512
  %v514 = vpop.xlane.xlu0 %513
  %v515 = vsel %vm511, %v510, -inf
  %516 = vmax.xlane.f32.xlu0 %v515
  %v517 = vpop.xlane.xlu0 %516
  %v518 = vsub.f32 %v509, %v514
  %v519 = vsub.f32 %v510, %v517
  %v520 = vmul.f32 %v518, 1.442695
  %v521 = vpow.pop %v520
  %v522 = vmul.f32 %v519, 1.442695
  %v523 = vpow.pop %v522
  %v524 = vsel %vm511, %v521, 0.0
  %525 = vadd.xlane.f32.xlu0 %v524
  %v526 = vpop.xlane.xlu0 %525
  %v527 = vsel %vm511, %v523, 0.0
  %528 = vadd.xlane.f32.xlu0 %v527
  %v529 = vpop.xlane.xlu0 %528
  %v530 = vrcp.pop %v526
  %v531 = vrcp.pop %v529
  %v532 = vmul.f32 %v521, %v530
  %v533 = vmul.f32 %v523, %v531
  %v535 = vsel %vm511, %v532, 0
  %537 = vmatprep.subr.mxu0 0.0
  %538 = vmatpush1.msra.mxu0 0.0
  %539 = vmatprep.subr.mxu0 0.0
  %540 = vmatpush1.msra.mxu0 0.0
  %541 = vmatprep.subr.mxu0 0.0
  %542 = vmatpush1.msra.mxu0 0.0
  %543 = vmatprep.subr.mxu0 0.0
  %544 = vmatpush1.msra.mxu0 0.0
  %545 = vmatprep.subr.mxu0 0.0
  %546 = vmatpush1.msra.mxu0 0.0
  %547 = vmatprep.subr.mxu0 0.0
  %548 = vmatpush1.msra.mxu0 0.0
  %549 = vmatprep.subr.mxu0 0.0
  %550 = vmatpush1.msra.mxu0 0.0
  %551 = vmatprep.subr.mxu0 0.0
  %552 = vmatpush1.msra.mxu0 0.0
  %553 = vmatprep.subr.mxu0 0.0
  %554 = vmatpush1.msra.mxu0 0.0
  %555 = vmatprep.subr.mxu0 0.0
  %556 = vmatpush1.msra.mxu0 0.0
  %557 = vmatprep.subr.mxu0 0.0
  %558 = vmatpush1.msra.mxu0 0.0
  %559 = vmatprep.subr.mxu0 0.0
  %560 = vmatpush1.msra.mxu0 0.0
  %561 = vmatprep.subr.mxu0 0.0
  %562 = vmatpush1.msra.mxu0 0.0
  %563 = vmatprep.subr.mxu0 0.0
  %564 = vmatpush1.msra.mxu0 0.0
  %565 = vmatprep.subr.mxu0 0.0
  %566 = vmatpush1.msra.mxu0 0.0
  %567 = vmatprep.subr.mxu0 0.0
  %568 = vmatpush1.msra.mxu0 %v334
  %569 = vmatprep.subr.mxu0 0.0
  %570 = vmatpush2.msra.mxu0 0.0
  %571 = vmatprep.subr.mxu0 0.0
  %572 = vmatpush2.msra.mxu0 0.0
  %573 = vmatprep.subr.mxu0 0.0
  %574 = vmatpush2.msra.mxu0 0.0
  %575 = vmatprep.subr.mxu0 0.0
  %576 = vmatpush2.msra.mxu0 0.0
  %577 = vmatprep.subr.mxu0 0.0
  %578 = vmatpush2.msra.mxu0 0.0
  %579 = vmatprep.subr.mxu0 0.0
  %580 = vmatpush2.msra.mxu0 0.0
  %581 = vmatprep.subr.mxu0 0.0
  %582 = vmatpush2.msra.mxu0 0.0
  %583 = vmatprep.subr.mxu0 0.0
  %584 = vmatpush2.msra.mxu0 0.0
  %585 = vmatprep.subr.mxu0 0.0
  %586 = vmatpush2.msra.mxu0 0.0
  %587 = vmatprep.subr.mxu0 0.0
  %588 = vmatpush2.msra.mxu0 0.0
  %589 = vmatprep.subr.mxu0 0.0
  %590 = vmatpush2.msra.mxu0 0.0
  %591 = vmatprep.subr.mxu0 0.0
  %592 = vmatpush2.msra.mxu0 0.0
  %593 = vmatprep.subr.mxu0 0.0
  %594 = vmatpush2.msra.mxu0 0.0
  %595 = vmatprep.subr.mxu0 0.0
  %596 = vmatpush2.msra.mxu0 0.0
  %597 = vmatprep.subr.mxu0 0.0
  %598 = vmatpush2.msra.mxu0 0.0
  %599 = vmatprep.subr.mxu0 0.0
  %600 = vmatpush2.msra.mxu0 0.0
  %601 = vmatprep.mubr.f32.mxu0 0.0
  %602 = vmatmul.mubr.f32.gmra.mxu0 %v535
  %v603 = vpop.f32.mrf.mxu0
  %v604 = vadd.f32 0.0, %v603
  %v605 = vpop.f32.mrf.mxu0
  %606 = vdwg.mxu0
  %v608 = vsel %vm511, %v533, 0
  %610 = vmatprep.subr.mxu0 0.0
  %611 = vmatpush1.msra.mxu0 0.0
  %612 = vmatprep.subr.mxu0 0.0
  %613 = vmatpush1.msra.mxu0 0.0
  %614 = vmatprep.subr.mxu0 0.0
  %615 = vmatpush1.msra.mxu0 0.0
  %616 = vmatprep.subr.mxu0 0.0
  %617 = vmatpush1.msra.mxu0 0.0
  %618 = vmatprep.subr.mxu0 0.0
  %619 = vmatpush1.msra.mxu0 0.0
  %620 = vmatprep.subr.mxu0 0.0
  %621 = vmatpush1.msra.mxu0 0.0
  %622 = vmatprep.subr.mxu0 0.0
  %623 = vmatpush1.msra.mxu0 0.0
  %624 = vmatprep.subr.mxu0 0.0
  %625 = vmatpush1.msra.mxu0 0.0
  %626 = vmatprep.subr.mxu0 0.0
  %627 = vmatpush1.msra.mxu0 0.0
  %628 = vmatprep.subr.mxu0 0.0
  %629 = vmatpush1.msra.mxu0 0.0
  %630 = vmatprep.subr.mxu0 0.0
  %631 = vmatpush1.msra.mxu0 0.0
  %632 = vmatprep.subr.mxu0 0.0
  %633 = vmatpush1.msra.mxu0 0.0
  %634 = vmatprep.subr.mxu0 0.0
  %635 = vmatpush1.msra.mxu0 0.0
  %636 = vmatprep.subr.mxu0 0.0
  %637 = vmatpush1.msra.mxu0 0.0
  %638 = vmatprep.subr.mxu0 0.0
  %639 = vmatpush1.msra.mxu0 0.0
  %640 = vmatprep.subr.mxu0 0.0
  %641 = vmatpush1.msra.mxu0 %v339
  %642 = vmatprep.subr.mxu0 0.0
  %643 = vmatpush2.msra.mxu0 0.0
  %644 = vmatprep.subr.mxu0 0.0
  %645 = vmatpush2.msra.mxu0 0.0
  %646 = vmatprep.subr.mxu0 0.0
  %647 = vmatpush2.msra.mxu0 0.0
  %648 = vmatprep.subr.mxu0 0.0
  %649 = vmatpush2.msra.mxu0 0.0
  %650 = vmatprep.subr.mxu0 0.0
  %651 = vmatpush2.msra.mxu0 0.0
  %652 = vmatprep.subr.mxu0 0.0
  %653 = vmatpush2.msra.mxu0 0.0
  %654 = vmatprep.subr.mxu0 0.0
  %655 = vmatpush2.msra.mxu0 0.0
  %656 = vmatprep.subr.mxu0 0.0
  %657 = vmatpush2.msra.mxu0 0.0
  %658 = vmatprep.subr.mxu0 0.0
  %659 = vmatpush2.msra.mxu0 0.0
  %660 = vmatprep.subr.mxu0 0.0
  %661 = vmatpush2.msra.mxu0 0.0
  %662 = vmatprep.subr.mxu0 0.0
  %663 = vmatpush2.msra.mxu0 0.0
  %664 = vmatprep.subr.mxu0 0.0
  %665 = vmatpush2.msra.mxu0 0.0
  %666 = vmatprep.subr.mxu0 0.0
  %667 = vmatpush2.msra.mxu0 0.0
  %668 = vmatprep.subr.mxu0 0.0
  %669 = vmatpush2.msra.mxu0 0.0
  %670 = vmatprep.subr.mxu0 0.0
  %671 = vmatpush2.msra.mxu0 0.0
  %672 = vmatprep.subr.mxu0 0.0
  %673 = vmatpush2.msra.mxu0 0.0
  %674 = vmatprep.mubr.f32.mxu0 0.0
  %675 = vmatmul.mubr.f32.gmra.mxu0 %v608
  %v676 = vpop.f32.mrf.mxu0
  %v677 = vadd.f32 0.0, %v676
  %v678 = vpop.f32.mrf.mxu0
  %679 = vdwg.mxu0
  %v680 = vld [vmem:[%s8] sm:$0xff]
  %v681 = vld [vmem:[%s8 + $0x8] sm:$0xff]
  %s682 = scalar_lea.vmem %s5, 32
  %v683 = vld [vmem:[%s682] sm:$0xff]
  %v684 = vld [vmem:[%s682 + $0x8] sm:$0xff]
  %v685 = vld [vmem:[%s682 + $0x10] sm:$0xff]
  %v686 = vld [vmem:[%s682 + $0x18] sm:$0xff]
  %s687 = scalar_lea.vmem %s3, 4
  %v688 = vld [vmem:[%s687] sm:$0x1]
  %v689 = vlaneseq
  %v690 = vshrl.u32 %v689, 7
  %v691 = vsub.s32 0, %v690
  %v692 = vrot.slane %v688, %v691
  %693 = vmatprep.subr.mxu0 0.0
  %694 = vmatpush1.msra.mxu0 0.0
  %695 = vmatprep.subr.mxu0 0.0
  %696 = vmatpush1.msra.mxu0 0.0
  %697 = vmatprep.subr.mxu0 0.0
  %698 = vmatpush1.msra.mxu0 0.0
  %699 = vmatprep.subr.mxu0 0.0
  %700 = vmatpush1.msra.mxu0 0.0
  %701 = vmatprep.subr.mxu0 0.0
  %702 = vmatpush1.msra.mxu0 0.0
  %703 = vmatprep.subr.mxu0 0.0
  %704 = vmatpush1.msra.mxu0 0.0
  %705 = vmatprep.subr.mxu0 0.0
  %706 = vmatpush1.msra.mxu0 0.0
  %707 = vmatprep.subr.mxu0 0.0
  %708 = vmatpush1.msra.mxu0 0.0
  %709 = vmatprep.subr.mxu0 0.0
  %710 = vmatpush1.msra.mxu0 0.0
  %711 = vmatprep.subr.mxu0 0.0
  %712 = vmatpush1.msra.mxu0 0.0
  %713 = vmatprep.subr.mxu0 0.0
  %714 = vmatpush1.msra.mxu0 0.0
  %715 = vmatprep.subr.mxu0 0.0
  %716 = vmatpush1.msra.mxu0 0.0
  %717 = vmatprep.subr.mxu0 0.0
  %718 = vmatpush1.msra.mxu0 %v686
  %719 = vmatprep.subr.mxu0 0.0
  %720 = vmatpush1.msra.mxu0 %v685
  %721 = vmatprep.subr.mxu0 0.0
  %722 = vmatpush1.msra.mxu0 %v684
  %723 = vmatprep.subr.mxu0 0.0
  %724 = vmatpush1.msra.mxu0 %v683
  %725 = vmatprep.subr.mxu0 0.0
  %726 = vmatpush2.msra.mxu0 0.0
  %727 = vmatprep.subr.mxu0 0.0
  %728 = vmatpush2.msra.mxu0 0.0
  %729 = vmatprep.subr.mxu0 0.0
  %730 = vmatpush2.msra.mxu0 0.0
  %731 = vmatprep.subr.mxu0 0.0
  %732 = vmatpush2.msra.mxu0 0.0
  %733 = vmatprep.subr.mxu0 0.0
  %734 = vmatpush2.msra.mxu0 0.0
  %735 = vmatprep.subr.mxu0 0.0
  %736 = vmatpush2.msra.mxu0 0.0
  %737 = vmatprep.subr.mxu0 0.0
  %738 = vmatpush2.msra.mxu0 0.0
  %739 = vmatprep.subr.mxu0 0.0
  %740 = vmatpush2.msra.mxu0 0.0
  %741 = vmatprep.subr.mxu0 0.0
  %742 = vmatpush2.msra.mxu0 0.0
  %743 = vmatprep.subr.mxu0 0.0
  %744 = vmatpush2.msra.mxu0 0.0
  %745 = vmatprep.subr.mxu0 0.0
  %746 = vmatpush2.msra.mxu0 0.0
  %747 = vmatprep.subr.mxu0 0.0
  %748 = vmatpush2.msra.mxu0 0.0
  %749 = vmatprep.subr.mxu0 0.0
  %750 = vmatpush2.msra.mxu0 0.0
  %751 = vmatprep.subr.mxu0 0.0
  %752 = vmatpush2.msra.mxu0 0.0
  %753 = vmatprep.subr.mxu0 0.0
  %754 = vmatpush2.msra.mxu0 0.0
  %755 = vmatprep.subr.mxu0 0.0
  %756 = vmatpush2.msra.mxu0 0.0
  %757 = vmatprep.mubr.f32.mxu0 0.0
  %758 = vmatmul.mubr.f32.gmra.mxu0 %v94
  %v759 = vpop.f32.mrf.mxu0
  %v760 = vadd.f32 %v692, %v759
  %v761 = vpop.f32.mrf.mxu0
  %762 = vmatprep.mubr.f32.mxu0 0.0
  %763 = vmatmul.mubr.f32.gmra.mxu0 %v97
  %v764 = vpop.f32.mrf.mxu0
  %v765 = vadd.f32 %v692, %v764
  %v766 = vpop.f32.mrf.mxu0
  %767 = vdwg.mxu0
  %s768 = scalar_lea.vmem %s6, 32
  %v769 = vld [vmem:[%s768] sm:$0xff]
  %v770 = vld [vmem:[%s768 + $0x8] sm:$0xff]
  %v771 = vld [vmem:[%s768 + $0x10] sm:$0xff]
  %v772 = vld [vmem:[%s768 + $0x18] sm:$0xff]
  %v773 = vld [vmem:[%s687 + $0x1] sm:$0x1]
  %v774 = vlaneseq
  %v775 = vshrl.u32 %v774, 7
  %v776 = vsub.s32 0, %v775
  %v777 = vrot.slane %v773, %v776
  %778 = vmatprep.subr.mxu0 0.0
  %779 = vmatpush1.msra.mxu0 0.0
  %780 = vmatprep.subr.mxu0 0.0
  %781 = vmatpush1.msra.mxu0 0.0
  %782 = vmatprep.subr.mxu0 0.0
  %783 = vmatpush1.msra.mxu0 0.0
  %784 = vmatprep.subr.mxu0 0.0
  %785 = vmatpush1.msra.mxu0 0.0
  %786 = vmatprep.subr.mxu0 0.0
  %787 = vmatpush1.msra.mxu0 0.0
  %788 = vmatprep.subr.mxu0 0.0
  %789 = vmatpush1.msra.mxu0 0.0
  %790 = vmatprep.subr.mxu0 0.0
  %791 = vmatpush1.msra.mxu0 0.0
  %792 = vmatprep.subr.mxu0 0.0
  %793 = vmatpush1.msra.mxu0 0.0
  %794 = vmatprep.subr.mxu0 0.0
  %795 = vmatpush1.msra.mxu0 0.0
  %796 = vmatprep.subr.mxu0 0.0
  %797 = vmatpush1.msra.mxu0 0.0
  %798 = vmatprep.subr.mxu0 0.0
  %799 = vmatpush1.msra.mxu0 0.0
  %800 = vmatprep.subr.mxu0 0.0
  %801 = vmatpush1.msra.mxu0 0.0
  %802 = vmatprep.subr.mxu0 0.0
  %803 = vmatpush1.msra.mxu0 %v772
  %804 = vmatprep.subr.mxu0 0.0
  %805 = vmatpush1.msra.mxu0 %v771
  %806 = vmatprep.subr.mxu0 0.0
  %807 = vmatpush1.msra.mxu0 %v770
  %808 = vmatprep.subr.mxu0 0.0
  %809 = vmatpush1.msra.mxu0 %v769
  %810 = vmatprep.subr.mxu0 0.0
  %811 = vmatpush2.msra.mxu0 0.0
  %812 = vmatprep.subr.mxu0 0.0
  %813 = vmatpush2.msra.mxu0 0.0
  %814 = vmatprep.subr.mxu0 0.0
  %815 = vmatpush2.msra.mxu0 0.0
  %816 = vmatprep.subr.mxu0 0.0
  %817 = vmatpush2.msra.mxu0 0.0
  %818 = vmatprep.subr.mxu0 0.0
  %819 = vmatpush2.msra.mxu0 0.0
  %820 = vmatprep.subr.mxu0 0.0
  %821 = vmatpush2.msra.mxu0 0.0
  %822 = vmatprep.subr.mxu0 0.0
  %823 = vmatpush2.msra.mxu0 0.0
  %824 = vmatprep.subr.mxu0 0.0
  %825 = vmatpush2.msra.mxu0 0.0
  %826 = vmatprep.subr.mxu0 0.0
  %827 = vmatpush2.msra.mxu0 0.0
  %828 = vmatprep.subr.mxu0 0.0
  %829 = vmatpush2.msra.mxu0 0.0
  %830 = vmatprep.subr.mxu0 0.0
  %831 = vmatpush2.msra.mxu0 0.0
  %832 = vmatprep.subr.mxu0 0.0
  %833 = vmatpush2.msra.mxu0 0.0
  %834 = vmatprep.subr.mxu0 0.0
  %835 = vmatpush2.msra.mxu0 0.0
  %836 = vmatprep.subr.mxu0 0.0
  %837 = vmatpush2.msra.mxu0 0.0
  %838 = vmatprep.subr.mxu0 0.0
  %839 = vmatpush2.msra.mxu0 0.0
  %840 = vmatprep.subr.mxu0 0.0
  %841 = vmatpush2.msra.mxu0 0.0
  %842 = vmatprep.mubr.f32.mxu0 0.0
  %843 = vmatmul.mubr.f32.gmra.mxu0 %v94
  %v844 = vpop.f32.mrf.mxu0
  %v845 = vadd.f32 %v777, %v844
  %v846 = vpop.f32.mrf.mxu0
  %847 = vmatprep.mubr.f32.mxu0 0.0
  %848 = vmatmul.mubr.f32.gmra.mxu0 %v97
  %v849 = vpop.f32.mrf.mxu0
  %v850 = vadd.f32 %v777, %v849
  %v851 = vpop.f32.mrf.mxu0
  %852 = vdwg.mxu0
  %s853 = scalar_lea.vmem %s7, 32
  %v854 = vld [vmem:[%s853] sm:$0xff]
  %v855 = vld [vmem:[%s853 + $0x8] sm:$0xff]
  %v856 = vld [vmem:[%s853 + $0x10] sm:$0xff]
  %v857 = vld [vmem:[%s853 + $0x18] sm:$0xff]
  %v858 = vld [vmem:[%s687 + $0x2] sm:$0x1]
  %v859 = vlaneseq
  %v860 = vshrl.u32 %v859, 7
  %v861 = vsub.s32 0, %v860
  %v862 = vrot.slane %v858, %v861
  %863 = vmatprep.subr.mxu0 0.0
  %864 = vmatpush1.msra.mxu0 0.0
  %865 = vmatprep.subr.mxu0 0.0
  %866 = vmatpush1.msra.mxu0 0.0
  %867 = vmatprep.subr.mxu0 0.0
  %868 = vmatpush1.msra.mxu0 0.0
  %869 = vmatprep.subr.mxu0 0.0
  %870 = vmatpush1.msra.mxu0 0.0
  %871 = vmatprep.subr.mxu0 0.0
  %872 = vmatpush1.msra.mxu0 0.0
  %873 = vmatprep.subr.mxu0 0.0
  %874 = vmatpush1.msra.mxu0 0.0
  %875 = vmatprep.subr.mxu0 0.0
  %876 = vmatpush1.msra.mxu0 0.0
  %877 = vmatprep.subr.mxu0 0.0
  %878 = vmatpush1.msra.mxu0 0.0
  %879 = vmatprep.subr.mxu0 0.0
  %880 = vmatpush1.msra.mxu0 0.0
  %881 = vmatprep.subr.mxu0 0.0
  %882 = vmatpush1.msra.mxu0 0.0
  %883 = vmatprep.subr.mxu0 0.0
  %884 = vmatpush1.msra.mxu0 0.0
  %885 = vmatprep.subr.mxu0 0.0
  %886 = vmatpush1.msra.mxu0 0.0
  %887 = vmatprep.subr.mxu0 0.0
  %888 = vmatpush1.msra.mxu0 %v857
  %889 = vmatprep.subr.mxu0 0.0
  %890 = vmatpush1.msra.mxu0 %v856
  %891 = vmatprep.subr.mxu0 0.0
  %892 = vmatpush1.msra.mxu0 %v855
  %893 = vmatprep.subr.mxu0 0.0
  %894 = vmatpush1.msra.mxu0 %v854
  %895 = vmatprep.subr.mxu0 0.0
  %896 = vmatpush2.msra.mxu0 0.0
  %897 = vmatprep.subr.mxu0 0.0
  %898 = vmatpush2.msra.mxu0 0.0
  %899 = vmatprep.subr.mxu0 0.0
  %900 = vmatpush2.msra.mxu0 0.0
  %901 = vmatprep.subr.mxu0 0.0
  %902 = vmatpush2.msra.mxu0 0.0
  %903 = vmatprep.subr.mxu0 0.0
  %904 = vmatpush2.msra.mxu0 0.0
  %905 = vmatprep.subr.mxu0 0.0
  %906 = vmatpush2.msra.mxu0 0.0
  %907 = vmatprep.subr.mxu0 0.0
  %908 = vmatpush2.msra.mxu0 0.0
  %909 = vmatprep.subr.mxu0 0.0
  %910 = vmatpush2.msra.mxu0 0.0
  %911 = vmatprep.subr.mxu0 0.0
  %912 = vmatpush2.msra.mxu0 0.0
  %913 = vmatprep.subr.mxu0 0.0
  %914 = vmatpush2.msra.mxu0 0.0
  %915 = vmatprep.subr.mxu0 0.0
  %916 = vmatpush2.msra.mxu0 0.0
  %917 = vmatprep.subr.mxu0 0.0
  %918 = vmatpush2.msra.mxu0 0.0
  %919 = vmatprep.subr.mxu0 0.0
  %920 = vmatpush2.msra.mxu0 0.0
  %921 = vmatprep.subr.mxu0 0.0
  %922 = vmatpush2.msra.mxu0 0.0
  %923 = vmatprep.subr.mxu0 0.0
  %924 = vmatpush2.msra.mxu0 0.0
  %925 = vmatprep.subr.mxu0 0.0
  %926 = vmatpush2.msra.mxu0 0.0
  %927 = vmatprep.mubr.f32.mxu0 0.0
  %928 = vmatmul.mubr.f32.gmra.mxu0 %v94
  %v929 = vpop.f32.mrf.mxu0
  %v930 = vadd.f32 %v862, %v929
  %v931 = vpop.f32.mrf.mxu0
  %932 = vmatprep.mubr.f32.mxu0 0.0
  %933 = vmatmul.mubr.f32.gmra.mxu0 %v97
  %v934 = vpop.f32.mrf.mxu0
  %v935 = vadd.f32 %v862, %v934
  %v936 = vpop.f32.mrf.mxu0
  %937 = vdwg.mxu0
  %v939 = vsel %vm342, %v760, 0
  %v942 = vsel %vm342, %v845, 0
  %944 = vmatprep.subr.mxu0 0.0
  %945 = vmatpush1.xpose.msra.mxu0 0.0
  %946 = vmatprep.subr.mxu0 0.0
  %947 = vmatpush1.xpose.msra.mxu0 0.0
  %948 = vmatprep.subr.mxu0 0.0
  %949 = vmatpush1.xpose.msra.mxu0 0.0
  %950 = vmatprep.subr.mxu0 0.0
  %951 = vmatpush1.xpose.msra.mxu0 0.0
  %952 = vmatprep.subr.mxu0 0.0
  %953 = vmatpush1.xpose.msra.mxu0 0.0
  %954 = vmatprep.subr.mxu0 0.0
  %955 = vmatpush1.xpose.msra.mxu0 0.0
  %956 = vmatprep.subr.mxu0 0.0
  %957 = vmatpush1.xpose.msra.mxu0 0.0
  %958 = vmatprep.subr.mxu0 0.0
  %959 = vmatpush1.xpose.msra.mxu0 0.0
  %960 = vmatprep.subr.mxu0 0.0
  %961 = vmatpush1.xpose.msra.mxu0 0.0
  %962 = vmatprep.subr.mxu0 0.0
  %963 = vmatpush1.xpose.msra.mxu0 0.0
  %964 = vmatprep.subr.mxu0 0.0
  %965 = vmatpush1.xpose.msra.mxu0 0.0
  %966 = vmatprep.subr.mxu0 0.0
  %967 = vmatpush1.xpose.msra.mxu0 0.0
  %968 = vmatprep.subr.mxu0 0.0
  %969 = vmatpush1.xpose.msra.mxu0 0.0
  %970 = vmatprep.subr.mxu0 0.0
  %971 = vmatpush1.xpose.msra.mxu0 0.0
  %972 = vmatprep.subr.mxu0 0.0
  %973 = vmatpush1.xpose.msra.mxu0 0.0
  %974 = vmatprep.subr.mxu0 0.0
  %975 = vmatpush1.xpose.msra.mxu0 %v942
  %976 = vmatprep.subr.mxu0 0.0
  %977 = vmatpush2.xpose.msra.mxu0 0.0
  %978 = vmatprep.subr.mxu0 0.0
  %979 = vmatpush2.xpose.msra.mxu0 0.0
  %980 = vmatprep.subr.mxu0 0.0
  %981 = vmatpush2.xpose.msra.mxu0 0.0
  %982 = vmatprep.subr.mxu0 0.0
  %983 = vmatpush2.xpose.msra.mxu0 0.0
  %984 = vmatprep.subr.mxu0 0.0
  %985 = vmatpush2.xpose.msra.mxu0 0.0
  %986 = vmatprep.subr.mxu0 0.0
  %987 = vmatpush2.xpose.msra.mxu0 0.0
  %988 = vmatprep.subr.mxu0 0.0
  %989 = vmatpush2.xpose.msra.mxu0 0.0
  %990 = vmatprep.subr.mxu0 0.0
  %991 = vmatpush2.xpose.msra.mxu0 0.0
  %992 = vmatprep.subr.mxu0 0.0
  %993 = vmatpush2.xpose.msra.mxu0 0.0
  %994 = vmatprep.subr.mxu0 0.0
  %995 = vmatpush2.xpose.msra.mxu0 0.0
  %996 = vmatprep.subr.mxu0 0.0
  %997 = vmatpush2.xpose.msra.mxu0 0.0
  %998 = vmatprep.subr.mxu0 0.0
  %999 = vmatpush2.xpose.msra.mxu0 0.0
  %1000 = vmatprep.subr.mxu0 0.0
  %1001 = vmatpush2.xpose.msra.mxu0 0.0
  %1002 = vmatprep.subr.mxu0 0.0
  %1003 = vmatpush2.xpose.msra.mxu0 0.0
  %1004 = vmatprep.subr.mxu0 0.0
  %1005 = vmatpush2.xpose.msra.mxu0 0.0
  %1006 = vmatprep.subr.mxu0 0.0
  %1007 = vmatpush2.xpose.msra.mxu0 0.0
  %1008 = vmatprep.mubr.f32.mxu0 0.0
  %1009 = vmatmul.mubr.f32.gmra.mxu0 %v939
  %v1010 = vpop.f32.mrf.mxu0
  %v1011 = vadd.f32 0.0, %v1010
  %v1012 = vpop.f32.mrf.mxu0
  %1013 = vdwg.mxu0
  %v1015 = vsel %vm342, %v765, 0
  %v1018 = vsel %vm342, %v850, 0
  %1020 = vmatprep.subr.mxu0 0.0
  %1021 = vmatpush1.xpose.msra.mxu0 0.0
  %1022 = vmatprep.subr.mxu0 0.0
  %1023 = vmatpush1.xpose.msra.mxu0 0.0
  %1024 = vmatprep.subr.mxu0 0.0
  %1025 = vmatpush1.xpose.msra.mxu0 0.0
  %1026 = vmatprep.subr.mxu0 0.0
  %1027 = vmatpush1.xpose.msra.mxu0 0.0
  %1028 = vmatprep.subr.mxu0 0.0
  %1029 = vmatpush1.xpose.msra.mxu0 0.0
  %1030 = vmatprep.subr.mxu0 0.0
  %1031 = vmatpush1.xpose.msra.mxu0 0.0
  %1032 = vmatprep.subr.mxu0 0.0
  %1033 = vmatpush1.xpose.msra.mxu0 0.0
  %1034 = vmatprep.subr.mxu0 0.0
  %1035 = vmatpush1.xpose.msra.mxu0 0.0
  %1036 = vmatprep.subr.mxu0 0.0
  %1037 = vmatpush1.xpose.msra.mxu0 0.0
  %1038 = vmatprep.subr.mxu0 0.0
  %1039 = vmatpush1.xpose.msra.mxu0 0.0
  %1040 = vmatprep.subr.mxu0 0.0
  %1041 = vmatpush1.xpose.msra.mxu0 0.0
  %1042 = vmatprep.subr.mxu0 0.0
  %1043 = vmatpush1.xpose.msra.mxu0 0.0
  %1044 = vmatprep.subr.mxu0 0.0
  %1045 = vmatpush1.xpose.msra.mxu0 0.0
  %1046 = vmatprep.subr.mxu0 0.0
  %1047 = vmatpush1.xpose.msra.mxu0 0.0
  %1048 = vmatprep.subr.mxu0 0.0
  %1049 = vmatpush1.xpose.msra.mxu0 0.0
  %1050 = vmatprep.subr.mxu0 0.0
  %1051 = vmatpush1.xpose.msra.mxu0 %v1018
  %1052 = vmatprep.subr.mxu0 0.0
  %1053 = vmatpush2.xpose.msra.mxu0 0.0
  %1054 = vmatprep.subr.mxu0 0.0
  %1055 = vmatpush2.xpose.msra.mxu0 0.0
  %1056 = vmatprep.subr.mxu0 0.0
  %1057 = vmatpush2.xpose.msra.mxu0 0.0
  %1058 = vmatprep.subr.mxu0 0.0
  %1059 = vmatpush2.xpose.msra.mxu0 0.0
  %1060 = vmatprep.subr.mxu0 0.0
  %1061 = vmatpush2.xpose.msra.mxu0 0.0
  %1062 = vmatprep.subr.mxu0 0.0
  %1063 = vmatpush2.xpose.msra.mxu0 0.0
  %1064 = vmatprep.subr.mxu0 0.0
  %1065 = vmatpush2.xpose.msra.mxu0 0.0
  %1066 = vmatprep.subr.mxu0 0.0
  %1067 = vmatpush2.xpose.msra.mxu0 0.0
  %1068 = vmatprep.subr.mxu0 0.0
  %1069 = vmatpush2.xpose.msra.mxu0 0.0
  %1070 = vmatprep.subr.mxu0 0.0
  %1071 = vmatpush2.xpose.msra.mxu0 0.0
  %1072 = vmatprep.subr.mxu0 0.0
  %1073 = vmatpush2.xpose.msra.mxu0 0.0
  %1074 = vmatprep.subr.mxu0 0.0
  %1075 = vmatpush2.xpose.msra.mxu0 0.0
  %1076 = vmatprep.subr.mxu0 0.0
  %1077 = vmatpush2.xpose.msra.mxu0 0.0
  %1078 = vmatprep.subr.mxu0 0.0
  %1079 = vmatpush2.xpose.msra.mxu0 0.0
  %1080 = vmatprep.subr.mxu0 0.0
  %1081 = vmatpush2.xpose.msra.mxu0 0.0
  %1082 = vmatprep.subr.mxu0 0.0
  %1083 = vmatpush2.xpose.msra.mxu0 0.0
  %1084 = vmatprep.mubr.f32.mxu0 0.0
  %1085 = vmatmul.mubr.f32.gmra.mxu0 %v1015
  %v1086 = vpop.f32.mrf.mxu0
  %v1087 = vadd.f32 0.0, %v1086
  %v1088 = vpop.f32.mrf.mxu0
  %1089 = vdwg.mxu0
  %v1090 = vmul.f32 %v1011, 0.25
  %v1091 = vmul.f32 %v1087, 0.25
  %v1092 = vadd.f32 %v1090, %v502
  %v1093 = vadd.f32 %v1091, %v506
  %v1094 = vsel %vm511, %v1092, -inf
  %1095 = vmax.xlane.f32.xlu0 %v1094
  %v1096 = vpop.xlane.xlu0 %1095
  %v1097 = vsel %vm511, %v1093, -inf
  %1098 = vmax.xlane.f32.xlu0 %v1097
  %v1099 = vpop.xlane.xlu0 %1098
  %v1100 = vsub.f32 %v1092, %v1096
  %v1101 = vsub.f32 %v1093, %v1099
  %v1102 = vmul.f32 %v1100, 1.442695
  %v1103 = vpow.pop %v1102
  %v1104 = vmul.f32 %v1101, 1.442695
  %v1105 = vpow.pop %v1104
  %v1106 = vsel %vm511, %v1103, 0.0
  %1107 = vadd.xlane.f32.xlu0 %v1106
  %v1108 = vpop.xlane.xlu0 %1107
  %v1109 = vsel %vm511, %v1105, 0.0
  %1110 = vadd.xlane.f32.xlu0 %v1109
  %v1111 = vpop.xlane.xlu0 %1110
  %v1112 = vrcp.pop %v1108
  %v1113 = vrcp.pop %v1111
  %v1114 = vmul.f32 %v1103, %v1112
  %v1115 = vmul.f32 %v1105, %v1113
  %v1117 = vsel %vm511, %v1114, 0
  %1119 = vmatprep.subr.mxu0 0.0
  %1120 = vmatpush1.msra.mxu0 0.0
  %1121 = vmatprep.subr.mxu0 0.0
  %1122 = vmatpush1.msra.mxu0 0.0
  %1123 = vmatprep.subr.mxu0 0.0
  %1124 = vmatpush1.msra.mxu0 0.0
  %1125 = vmatprep.subr.mxu0 0.0
  %1126 = vmatpush1.msra.mxu0 0.0
  %1127 = vmatprep.subr.mxu0 0.0
  %1128 = vmatpush1.msra.mxu0 0.0
  %1129 = vmatprep.subr.mxu0 0.0
  %1130 = vmatpush1.msra.mxu0 0.0
  %1131 = vmatprep.subr.mxu0 0.0
  %1132 = vmatpush1.msra.mxu0 0.0
  %1133 = vmatprep.subr.mxu0 0.0
  %1134 = vmatpush1.msra.mxu0 0.0
  %1135 = vmatprep.subr.mxu0 0.0
  %1136 = vmatpush1.msra.mxu0 0.0
  %1137 = vmatprep.subr.mxu0 0.0
  %1138 = vmatpush1.msra.mxu0 0.0
  %1139 = vmatprep.subr.mxu0 0.0
  %1140 = vmatpush1.msra.mxu0 0.0
  %1141 = vmatprep.subr.mxu0 0.0
  %1142 = vmatpush1.msra.mxu0 0.0
  %1143 = vmatprep.subr.mxu0 0.0
  %1144 = vmatpush1.msra.mxu0 0.0
  %1145 = vmatprep.subr.mxu0 0.0
  %1146 = vmatpush1.msra.mxu0 0.0
  %1147 = vmatprep.subr.mxu0 0.0
  %1148 = vmatpush1.msra.mxu0 0.0
  %1149 = vmatprep.subr.mxu0 0.0
  %1150 = vmatpush1.msra.mxu0 %v930
  %1151 = vmatprep.subr.mxu0 0.0
  %1152 = vmatpush2.msra.mxu0 0.0
  %1153 = vmatprep.subr.mxu0 0.0
  %1154 = vmatpush2.msra.mxu0 0.0
  %1155 = vmatprep.subr.mxu0 0.0
  %1156 = vmatpush2.msra.mxu0 0.0
  %1157 = vmatprep.subr.mxu0 0.0
  %1158 = vmatpush2.msra.mxu0 0.0
  %1159 = vmatprep.subr.mxu0 0.0
  %1160 = vmatpush2.msra.mxu0 0.0
  %1161 = vmatprep.subr.mxu0 0.0
  %1162 = vmatpush2.msra.mxu0 0.0
  %1163 = vmatprep.subr.mxu0 0.0
  %1164 = vmatpush2.msra.mxu0 0.0
  %1165 = vmatprep.subr.mxu0 0.0
  %1166 = vmatpush2.msra.mxu0 0.0
  %1167 = vmatprep.subr.mxu0 0.0
  %1168 = vmatpush2.msra.mxu0 0.0
  %1169 = vmatprep.subr.mxu0 0.0
  %1170 = vmatpush2.msra.mxu0 0.0
  %1171 = vmatprep.subr.mxu0 0.0
  %1172 = vmatpush2.msra.mxu0 0.0
  %1173 = vmatprep.subr.mxu0 0.0
  %1174 = vmatpush2.msra.mxu0 0.0
  %1175 = vmatprep.subr.mxu0 0.0
  %1176 = vmatpush2.msra.mxu0 0.0
  %1177 = vmatprep.subr.mxu0 0.0
  %1178 = vmatpush2.msra.mxu0 0.0
  %1179 = vmatprep.subr.mxu0 0.0
  %1180 = vmatpush2.msra.mxu0 0.0
  %1181 = vmatprep.subr.mxu0 0.0
  %1182 = vmatpush2.msra.mxu0 0.0
  %1183 = vmatprep.mubr.f32.mxu0 0.0
  %1184 = vmatmul.mubr.f32.gmra.mxu0 %v1117
  %v1185 = vpop.f32.mrf.mxu0
  %v1186 = vadd.f32 0.0, %v1185
  %v1187 = vpop.f32.mrf.mxu0
  %1188 = vdwg.mxu0
  %v1190 = vsel %vm511, %v1115, 0
  %1192 = vmatprep.subr.mxu0 0.0
  %1193 = vmatpush1.msra.mxu0 0.0
  %1194 = vmatprep.subr.mxu0 0.0
  %1195 = vmatpush1.msra.mxu0 0.0
  %1196 = vmatprep.subr.mxu0 0.0
  %1197 = vmatpush1.msra.mxu0 0.0
  %1198 = vmatprep.subr.mxu0 0.0
  %1199 = vmatpush1.msra.mxu0 0.0
  %1200 = vmatprep.subr.mxu0 0.0
  %1201 = vmatpush1.msra.mxu0 0.0
  %1202 = vmatprep.subr.mxu0 0.0
  %1203 = vmatpush1.msra.mxu0 0.0
  %1204 = vmatprep.subr.mxu0 0.0
  %1205 = vmatpush1.msra.mxu0 0.0
  %1206 = vmatprep.subr.mxu0 0.0
  %1207 = vmatpush1.msra.mxu0 0.0
  %1208 = vmatprep.subr.mxu0 0.0
  %1209 = vmatpush1.msra.mxu0 0.0
  %1210 = vmatprep.subr.mxu0 0.0
  %1211 = vmatpush1.msra.mxu0 0.0
  %1212 = vmatprep.subr.mxu0 0.0
  %1213 = vmatpush1.msra.mxu0 0.0
  %1214 = vmatprep.subr.mxu0 0.0
  %1215 = vmatpush1.msra.mxu0 0.0
  %1216 = vmatprep.subr.mxu0 0.0
  %1217 = vmatpush1.msra.mxu0 0.0
  %1218 = vmatprep.subr.mxu0 0.0
  %1219 = vmatpush1.msra.mxu0 0.0
  %1220 = vmatprep.subr.mxu0 0.0
  %1221 = vmatpush1.msra.mxu0 0.0
  %1222 = vmatprep.subr.mxu0 0.0
  %1223 = vmatpush1.msra.mxu0 %v935
  %1224 = vmatprep.subr.mxu0 0.0
  %1225 = vmatpush2.msra.mxu0 0.0
  %1226 = vmatprep.subr.mxu0 0.0
  %1227 = vmatpush2.msra.mxu0 0.0
  %1228 = vmatprep.subr.mxu0 0.0
  %1229 = vmatpush2.msra.mxu0 0.0
  %1230 = vmatprep.subr.mxu0 0.0
  %1231 = vmatpush2.msra.mxu0 0.0
  %1232 = vmatprep.subr.mxu0 0.0
  %1233 = vmatpush2.msra.mxu0 0.0
  %1234 = vmatprep.subr.mxu0 0.0
  %1235 = vmatpush2.msra.mxu0 0.0
  %1236 = vmatprep.subr.mxu0 0.0
  %1237 = vmatpush2.msra.mxu0 0.0
  %1238 = vmatprep.subr.mxu0 0.0
  %1239 = vmatpush2.msra.mxu0 0.0
  %1240 = vmatprep.subr.mxu0 0.0
  %1241 = vmatpush2.msra.mxu0 0.0
  %1242 = vmatprep.subr.mxu0 0.0
  %1243 = vmatpush2.msra.mxu0 0.0
  %1244 = vmatprep.subr.mxu0 0.0
  %1245 = vmatpush2.msra.mxu0 0.0
  %1246 = vmatprep.subr.mxu0 0.0
  %1247 = vmatpush2.msra.mxu0 0.0
  %1248 = vmatprep.subr.mxu0 0.0
  %1249 = vmatpush2.msra.mxu0 0.0
  %1250 = vmatprep.subr.mxu0 0.0
  %1251 = vmatpush2.msra.mxu0 0.0
  %1252 = vmatprep.subr.mxu0 0.0
  %1253 = vmatpush2.msra.mxu0 0.0
  %1254 = vmatprep.subr.mxu0 0.0
  %1255 = vmatpush2.msra.mxu0 0.0
  %1256 = vmatprep.mubr.f32.mxu0 0.0
  %1257 = vmatmul.mubr.f32.gmra.mxu0 %v1190
  %v1258 = vpop.f32.mrf.mxu0
  %v1259 = vadd.f32 0.0, %v1258
  %v1260 = vpop.f32.mrf.mxu0
  %1261 = vdwg.mxu0
  %s1262 = scalar_lea.vmem %s8, 16
  %v1263 = vld [vmem:[%s1262] sm:$0xff]
  %v1264 = vld [vmem:[%s1262 + $0x8] sm:$0xff]
  %v1266 = vsel %vm342, %v1186, 0
  %v1269 = vsel %vm342, %v1259, 0
  %1271 = vmatprep.subr.mxu0 0.0
  %1272 = vmatpush1.msra.mxu0 0.0
  %1273 = vmatprep.subr.mxu0 0.0
  %1274 = vmatpush1.msra.mxu0 0.0
  %1275 = vmatprep.subr.mxu0 0.0
  %1276 = vmatpush1.msra.mxu0 0.0
  %1277 = vmatprep.subr.mxu0 0.0
  %1278 = vmatpush1.msra.mxu0 0.0
  %1279 = vmatprep.subr.mxu0 0.0
  %1280 = vmatpush1.msra.mxu0 0.0
  %1281 = vmatprep.subr.mxu0 0.0
  %1282 = vmatpush1.msra.mxu0 0.0
  %1283 = vmatprep.subr.mxu0 0.0
  %1284 = vmatpush1.msra.mxu0 0.0
  %1285 = vmatprep.subr.mxu0 0.0
  %1286 = vmatpush1.msra.mxu0 0.0
  %1287 = vmatprep.subr.mxu0 0.0
  %1288 = vmatpush1.msra.mxu0 0.0
  %1289 = vmatprep.subr.mxu0 0.0
  %1290 = vmatpush1.msra.mxu0 0.0
  %1291 = vmatprep.subr.mxu0 0.0
  %1292 = vmatpush1.msra.mxu0 0.0
  %1293 = vmatprep.subr.mxu0 0.0
  %1294 = vmatpush1.msra.mxu0 0.0
  %1295 = vmatprep.subr.mxu0 0.0
  %1296 = vmatpush1.msra.mxu0 0.0
  %1297 = vmatprep.subr.mxu0 0.0
  %1298 = vmatpush1.msra.mxu0 0.0
  %1299 = vmatprep.subr.mxu0 0.0
  %1300 = vmatpush1.msra.mxu0 %v1264
  %1301 = vmatprep.subr.mxu0 0.0
  %1302 = vmatpush1.msra.mxu0 %v1263
  %1303 = vmatprep.subr.mxu0 0.0
  %1304 = vmatpush2.msra.mxu0 0.0
  %1305 = vmatprep.subr.mxu0 0.0
  %1306 = vmatpush2.msra.mxu0 0.0
  %1307 = vmatprep.subr.mxu0 0.0
  %1308 = vmatpush2.msra.mxu0 0.0
  %1309 = vmatprep.subr.mxu0 0.0
  %1310 = vmatpush2.msra.mxu0 0.0
  %1311 = vmatprep.subr.mxu0 0.0
  %1312 = vmatpush2.msra.mxu0 0.0
  %1313 = vmatprep.subr.mxu0 0.0
  %1314 = vmatpush2.msra.mxu0 0.0
  %1315 = vmatprep.subr.mxu0 0.0
  %1316 = vmatpush2.msra.mxu0 0.0
  %1317 = vmatprep.subr.mxu0 0.0
  %1318 = vmatpush2.msra.mxu0 0.0
  %1319 = vmatprep.subr.mxu0 0.0
  %1320 = vmatpush2.msra.mxu0 0.0
  %1321 = vmatprep.subr.mxu0 0.0
  %1322 = vmatpush2.msra.mxu0 0.0
  %1323 = vmatprep.subr.mxu0 0.0
  %1324 = vmatpush2.msra.mxu0 0.0
  %1325 = vmatprep.subr.mxu0 0.0
  %1326 = vmatpush2.msra.mxu0 0.0
  %1327 = vmatprep.subr.mxu0 0.0
  %1328 = vmatpush2.msra.mxu0 0.0
  %1329 = vmatprep.subr.mxu0 0.0
  %1330 = vmatpush2.msra.mxu0 0.0
  %1331 = vmatprep.subr.mxu0 0.0
  %1332 = vmatpush2.msra.mxu0 0.0
  %1333 = vmatprep.subr.mxu0 0.0
  %1334 = vmatpush2.msra.mxu0 0.0
  %1335 = vmatprep.mubr.f32.mxu0 0.0
  %1336 = vmatmul.mubr.f32.gmra.mxu0 %v1266
  %v1337 = vpop.f32.mrf.mxu0
  %v1338 = vadd.f32 0.0, %v1337
  %v1339 = vpop.f32.mrf.mxu0
  %1340 = vmatprep.mubr.f32.mxu0 0.0
  %1341 = vmatmul.mubr.f32.gmra.mxu0 %v1269
  %v1342 = vpop.f32.mrf.mxu0
  %v1343 = vadd.f32 0.0, %v1342
  %v1344 = vpop.f32.mrf.mxu0
  %1345 = vdwg.mxu0
  %v1347 = vsel %vm342, %v604, 0
  %v1350 = vsel %vm342, %v677, 0
  %1352 = vmatprep.subr.mxu0 0.0
  %1353 = vmatpush1.msra.mxu0 0.0
  %1354 = vmatprep.subr.mxu0 0.0
  %1355 = vmatpush1.msra.mxu0 0.0
  %1356 = vmatprep.subr.mxu0 0.0
  %1357 = vmatpush1.msra.mxu0 0.0
  %1358 = vmatprep.subr.mxu0 0.0
  %1359 = vmatpush1.msra.mxu0 0.0
  %1360 = vmatprep.subr.mxu0 0.0
  %1361 = vmatpush1.msra.mxu0 0.0
  %1362 = vmatprep.subr.mxu0 0.0
  %1363 = vmatpush1.msra.mxu0 0.0
  %1364 = vmatprep.subr.mxu0 0.0
  %1365 = vmatpush1.msra.mxu0 0.0
  %1366 = vmatprep.subr.mxu0 0.0
  %1367 = vmatpush1.msra.mxu0 0.0
  %1368 = vmatprep.subr.mxu0 0.0
  %1369 = vmatpush1.msra.mxu0 0.0
  %1370 = vmatprep.subr.mxu0 0.0
  %1371 = vmatpush1.msra.mxu0 0.0
  %1372 = vmatprep.subr.mxu0 0.0
  %1373 = vmatpush1.msra.mxu0 0.0
  %1374 = vmatprep.subr.mxu0 0.0
  %1375 = vmatpush1.msra.mxu0 0.0
  %1376 = vmatprep.subr.mxu0 0.0
  %1377 = vmatpush1.msra.mxu0 0.0
  %1378 = vmatprep.subr.mxu0 0.0
  %1379 = vmatpush1.msra.mxu0 0.0
  %1380 = vmatprep.subr.mxu0 0.0
  %1381 = vmatpush1.msra.mxu0 %v681
  %1382 = vmatprep.subr.mxu0 0.0
  %1383 = vmatpush1.msra.mxu0 %v680
  %1384 = vmatprep.subr.mxu0 0.0
  %1385 = vmatpush2.msra.mxu0 0.0
  %1386 = vmatprep.subr.mxu0 0.0
  %1387 = vmatpush2.msra.mxu0 0.0
  %1388 = vmatprep.subr.mxu0 0.0
  %1389 = vmatpush2.msra.mxu0 0.0
  %1390 = vmatprep.subr.mxu0 0.0
  %1391 = vmatpush2.msra.mxu0 0.0
  %1392 = vmatprep.subr.mxu0 0.0
  %1393 = vmatpush2.msra.mxu0 0.0
  %1394 = vmatprep.subr.mxu0 0.0
  %1395 = vmatpush2.msra.mxu0 0.0
  %1396 = vmatprep.subr.mxu0 0.0
  %1397 = vmatpush2.msra.mxu0 0.0
  %1398 = vmatprep.subr.mxu0 0.0
  %1399 = vmatpush2.msra.mxu0 0.0
  %1400 = vmatprep.subr.mxu0 0.0
  %1401 = vmatpush2.msra.mxu0 0.0
  %1402 = vmatprep.subr.mxu0 0.0
  %1403 = vmatpush2.msra.mxu0 0.0
  %1404 = vmatprep.subr.mxu0 0.0
  %1405 = vmatpush2.msra.mxu0 0.0
  %1406 = vmatprep.subr.mxu0 0.0
  %1407 = vmatpush2.msra.mxu0 0.0
  %1408 = vmatprep.subr.mxu0 0.0
  %1409 = vmatpush2.msra.mxu0 0.0
  %1410 = vmatprep.subr.mxu0 0.0
  %1411 = vmatpush2.msra.mxu0 0.0
  %1412 = vmatprep.subr.mxu0 0.0
  %1413 = vmatpush2.msra.mxu0 0.0
  %1414 = vmatprep.subr.mxu0 0.0
  %1415 = vmatpush2.msra.mxu0 0.0
  %1416 = vmatprep.mubr.f32.mxu0 0.0
  %1417 = vmatmul.mubr.f32.gmra.mxu0 %v1347
  %v1418 = vpop.f32.mrf.mxu0
  %v1419 = vadd.f32 %v1338, %v1418
  %v1420 = vpop.f32.mrf.mxu0
  %1421 = vmatprep.mubr.f32.mxu0 0.0
  %1422 = vmatmul.mubr.f32.gmra.mxu0 %v1350
  %v1423 = vpop.f32.mrf.mxu0
  %v1424 = vadd.f32 %v1343, %v1423
  %v1425 = vpop.f32.mrf.mxu0
  %1426 = vdwg.mxu0
  %v1427 = vld [vmem:[%s2 + $0x2] sm:$0x1]
  %v1428 = vlaneseq
  %v1429 = vshrl.u32 %v1428, 7
  %v1430 = vsub.s32 0, %v1429
  %v1431 = vrot.slane %v1427, %v1430
  %v1432 = vadd.f32 %v1419, %v1431
  %v1433 = vadd.f32 %v1424, %v1431
  %v1434 = vadd.f32 %v82, %v1432
  %v1435 = vadd.f32 %v83, %v1433
  %v1436 = vld [vmem:[%s2 + $0x3] sm:$0x1]
  %v1437 = vld [vmem:[%s2 + $0x4] sm:$0x1]
  %v1438 = vsel %vm44, %v1434, 0.0
  %1439 = vadd.xlane.f32.xlu0 %v1438
  %v1440 = vpop.xlane.xlu0 %1439
  %v1441 = vsel %vm44, %v1435, 0.0
  %1442 = vadd.xlane.f32.xlu0 %v1441
  %v1443 = vpop.xlane.xlu0 %1442
  %v1444 = vmul.f32 %v1440, %v51
  %v1445 = vmul.f32 %v1443, %v51
  %v1446 = vsub.f32 %v1434, %v1444
  %v1447 = vsub.f32 %v1435, %v1445
  %v1448 = vmul.f32 %v1446, %v1446
  %v1449 = vmul.f32 %v1447, %v1447
  %v1450 = vsel %vm44, %v1448, 0.0
  %1451 = vadd.xlane.f32.xlu0 %v1450
  %v1452 = vpop.xlane.xlu0 %1451
  %v1453 = vsel %vm44, %v1449, 0.0
  %1454 = vadd.xlane.f32.xlu0 %v1453
  %v1455 = vpop.xlane.xlu0 %1454
  %v1456 = vmul.f32 %v1452, %v51
  %v1457 = vmul.f32 %v1455, %v51
  %v1458 = vadd.f32 %v1456, 1e-12
  %v1459 = vadd.f32 %v1457, 1e-12
  %v1460 = vrsqrt.pop %v1458
  %v1461 = vrsqrt.pop %v1459
  %v1462 = vmul.f32 %v1446, %v1460
  %v1463 = vmul.f32 %v1447, %v1461
  %v1464 = vlaneseq
  %v1465 = vshrl.u32 %v1464, 7
  %v1466 = vsub.s32 0, %v1465
  %v1467 = vrot.slane %v1436, %v1466
  %v1468 = vmul.f32 %v1462, %v1467
  %v1469 = vmul.f32 %v1463, %v1467
  %v1470 = vlaneseq
  %v1471 = vshrl.u32 %v1470, 7
  %v1472 = vsub.s32 0, %v1471
  %v1473 = vrot.slane %v1437, %v1472
  %v1474 = vadd.f32 %v1468, %v1473
  %v1475 = vadd.f32 %v1469, %v1473
  %v1476 = vld [vmem:[%s9] sm:$0xff]
  %v1477 = vld [vmem:[%s9 + $0x8] sm:$0xff]
  %v1478 = vld [vmem:[%s9 + $0x10] sm:$0xff]
  %v1479 = vld [vmem:[%s9 + $0x18] sm:$0xff]
  %v1480 = vld [vmem:[%s4] sm:$0x1]
  %v1482 = vlaneseq
  %v1483 = vshrl.u32 %v1482, 7
  %v1484 = vsub.s32 0, %v1483
  %v1485 = vrot.slane %v1480, %v1484
  %v1488 = vsel %vm44, %v1474, 0
  %v1491 = vsel %vm44, %v1475, 0
  %1493 = vmatprep.subr.mxu0 0.0
  %1494 = vmatpush1.msra.mxu0 0.0
  %1495 = vmatprep.subr.mxu0 0.0
  %1496 = vmatpush1.msra.mxu0 0.0
  %1497 = vmatprep.subr.mxu0 0.0
  %1498 = vmatpush1.msra.mxu0 0.0
  %1499 = vmatprep.subr.mxu0 0.0
  %1500 = vmatpush1.msra.mxu0 0.0
  %1501 = vmatprep.subr.mxu0 0.0
  %1502 = vmatpush1.msra.mxu0 0.0
  %1503 = vmatprep.subr.mxu0 0.0
  %1504 = vmatpush1.msra.mxu0 0.0
  %1505 = vmatprep.subr.mxu0 0.0
  %1506 = vmatpush1.msra.mxu0 0.0
  %1507 = vmatprep.subr.mxu0 0.0
  %1508 = vmatpush1.msra.mxu0 0.0
  %1509 = vmatprep.subr.mxu0 0.0
  %1510 = vmatpush1.msra.mxu0 0.0
  %1511 = vmatprep.subr.mxu0 0.0
  %1512 = vmatpush1.msra.mxu0 0.0
  %1513 = vmatprep.subr.mxu0 0.0
  %1514 = vmatpush1.msra.mxu0 0.0
  %1515 = vmatprep.subr.mxu0 0.0
  %1516 = vmatpush1.msra.mxu0 0.0
  %1517 = vmatprep.subr.mxu0 0.0
  %1518 = vmatpush1.msra.mxu0 %v1479
  %1519 = vmatprep.subr.mxu0 0.0
  %1520 = vmatpush1.msra.mxu0 %v1478
  %1521 = vmatprep.subr.mxu0 0.0
  %1522 = vmatpush1.msra.mxu0 %v1477
  %1523 = vmatprep.subr.mxu0 0.0
  %1524 = vmatpush1.msra.mxu0 %v1476
  %1525 = vmatprep.subr.mxu0 0.0
  %1526 = vmatpush2.msra.mxu0 0.0
  %1527 = vmatprep.subr.mxu0 0.0
  %1528 = vmatpush2.msra.mxu0 0.0
  %1529 = vmatprep.subr.mxu0 0.0
  %1530 = vmatpush2.msra.mxu0 0.0
  %1531 = vmatprep.subr.mxu0 0.0
  %1532 = vmatpush2.msra.mxu0 0.0
  %1533 = vmatprep.subr.mxu0 0.0
  %1534 = vmatpush2.msra.mxu0 0.0
  %1535 = vmatprep.subr.mxu0 0.0
  %1536 = vmatpush2.msra.mxu0 0.0
  %1537 = vmatprep.subr.mxu0 0.0
  %1538 = vmatpush2.msra.mxu0 0.0
  %1539 = vmatprep.subr.mxu0 0.0
  %1540 = vmatpush2.msra.mxu0 0.0
  %1541 = vmatprep.subr.mxu0 0.0
  %1542 = vmatpush2.msra.mxu0 0.0
  %1543 = vmatprep.subr.mxu0 0.0
  %1544 = vmatpush2.msra.mxu0 0.0
  %1545 = vmatprep.subr.mxu0 0.0
  %1546 = vmatpush2.msra.mxu0 0.0
  %1547 = vmatprep.subr.mxu0 0.0
  %1548 = vmatpush2.msra.mxu0 0.0
  %1549 = vmatprep.subr.mxu0 0.0
  %1550 = vmatpush2.msra.mxu0 0.0
  %1551 = vmatprep.subr.mxu0 0.0
  %1552 = vmatpush2.msra.mxu0 0.0
  %1553 = vmatprep.subr.mxu0 0.0
  %1554 = vmatpush2.msra.mxu0 0.0
  %1555 = vmatprep.subr.mxu0 0.0
  %1556 = vmatpush2.msra.mxu0 0.0
  %1557 = vmatprep.mubr.f32.mxu0 0.0
  %1558 = vmatmul.mubr.f32.gmra.mxu0 %v1488
  %v1559 = vpop.f32.mrf.mxu0
  %v1560 = vadd.f32 %v1485, %v1559
  %v1561 = vpop.f32.mrf.mxu0
  %1562 = vmatprep.mubr.f32.mxu0 0.0
  %1563 = vmatmul.mubr.f32.gmra.mxu0 %v1491
  %v1564 = vpop.f32.mrf.mxu0
  %v1565 = vadd.f32 %v1485, %v1564
  %v1566 = vpop.f32.mrf.mxu0
  %1567 = vdwg.mxu0
  %v1568 = vmul.f32 %v1560, 0.5
  %v1569 = vmul.f32 %v1565, 0.5
  %v1570 = vmul.f32 %v1560, 0.044715
  %v1571 = vmul.f32 %v1565, 0.044715
  %v1572 = vmul.f32 %v1570, %v1560
  %v1573 = vmul.f32 %v1571, %v1565
  %v1574 = vmul.f32 %v1572, %v1560
  %v1575 = vmul.f32 %v1573, %v1565
  %v1576 = vadd.f32 %v1560, %v1574
  %v1577 = vadd.f32 %v1565, %v1575
  %v1578 = vmul.f32 %v1576, 0.7978846
  %v1579 = vmul.f32 %v1577, 0.7978846
  %v1580 = vtanh.pop %v1578
  %v1581 = vtanh.pop %v1579
  %v1582 = vadd.f32 %v1580, 1.0
  %v1583 = vadd.f32 %v1581, 1.0
  %v1584 = vmul.f32 %v1568, %v1582
  %v1585 = vmul.f32 %v1569, %v1583
  %v1586 = vld [vmem:[%s10] sm:$0xff]
  %v1587 = vld [vmem:[%s10 + $0x8] sm:$0xff]
  %v1588 = vld [vmem:[%s10 + $0x10] sm:$0xff]
  %v1589 = vld [vmem:[%s10 + $0x18] sm:$0xff]
  %v1590 = vld [vmem:[%s10 + $0x20] sm:$0xff]
  %v1591 = vld [vmem:[%s10 + $0x28] sm:$0xff]
  %v1592 = vld [vmem:[%s10 + $0x30] sm:$0xff]
  %v1593 = vld [vmem:[%s10 + $0x38] sm:$0xff]
  %v1594 = vld [vmem:[%s2 + $0x5] sm:$0x1]
  %v1595 = vlaneseq
  %v1596 = vshrl.u32 %v1595, 7
  %v1597 = vsub.s32 0, %v1596
  %v1598 = vrot.slane %v1594, %v1597
  %vm1599 = vcmask 523264
  %v1601 = vsel %vm1599, %v1584, 0
  %v1604 = vsel %vm1599, %v1585, 0
  %1606 = vmatprep.subr.mxu0 0.0
  %1607 = vmatpush1.msra.mxu0 0.0
  %1608 = vmatprep.subr.mxu0 0.0
  %1609 = vmatpush1.msra.mxu0 0.0
  %1610 = vmatprep.subr.mxu0 0.0
  %1611 = vmatpush1.msra.mxu0 0.0
  %1612 = vmatprep.subr.mxu0 0.0
  %1613 = vmatpush1.msra.mxu0 0.0
  %1614 = vmatprep.subr.mxu0 0.0
  %1615 = vmatpush1.msra.mxu0 0.0
  %1616 = vmatprep.subr.mxu0 0.0
  %1617 = vmatpush1.msra.mxu0 0.0
  %1618 = vmatprep.subr.mxu0 0.0
  %1619 = vmatpush1.msra.mxu0 0.0
  %1620 = vmatprep.subr.mxu0 0.0
  %1621 = vmatpush1.msra.mxu0 0.0
  %1622 = vmatprep.subr.mxu0 0.0
  %1623 = vmatpush1.msra.mxu0 %v1593
  %1624 = vmatprep.subr.mxu0 0.0
  %1625 = vmatpush1.msra.mxu0 %v1592
  %1626 = vmatprep.subr.mxu0 0.0
  %1627 = vmatpush1.msra.mxu0 %v1591
  %1628 = vmatprep.subr.mxu0 0.0
  %1629 = vmatpush1.msra.mxu0 %v1590
  %1630 = vmatprep.subr.mxu0 0.0
  %1631 = vmatpush1.msra.mxu0 %v1589
  %1632 = vmatprep.subr.mxu0 0.0
  %1633 = vmatpush1.msra.mxu0 %v1588
  %1634 = vmatprep.subr.mxu0 0.0
  %1635 = vmatpush1.msra.mxu0 %v1587
  %1636 = vmatprep.subr.mxu0 0.0
  %1637 = vmatpush1.msra.mxu0 %v1586
  %1638 = vmatprep.subr.mxu0 0.0
  %1639 = vmatpush2.msra.mxu0 0.0
  %1640 = vmatprep.subr.mxu0 0.0
  %1641 = vmatpush2.msra.mxu0 0.0
  %1642 = vmatprep.subr.mxu0 0.0
  %1643 = vmatpush2.msra.mxu0 0.0
  %1644 = vmatprep.subr.mxu0 0.0
  %1645 = vmatpush2.msra.mxu0 0.0
  %1646 = vmatprep.subr.mxu0 0.0
  %1647 = vmatpush2.msra.mxu0 0.0
  %1648 = vmatprep.subr.mxu0 0.0
  %1649 = vmatpush2.msra.mxu0 0.0
  %1650 = vmatprep.subr.mxu0 0.0
  %1651 = vmatpush2.msra.mxu0 0.0
  %1652 = vmatprep.subr.mxu0 0.0
  %1653 = vmatpush2.msra.mxu0 0.0
  %1654 = vmatprep.subr.mxu0 0.0
  %1655 = vmatpush2.msra.mxu0 0.0
  %1656 = vmatprep.subr.mxu0 0.0
  %1657 = vmatpush2.msra.mxu0 0.0
  %1658 = vmatprep.subr.mxu0 0.0
  %1659 = vmatpush2.msra.mxu0 0.0
  %1660 = vmatprep.subr.mxu0 0.0
  %1661 = vmatpush2.msra.mxu0 0.0
  %1662 = vmatprep.subr.mxu0 0.0
  %1663 = vmatpush2.msra.mxu0 0.0
  %1664 = vmatprep.subr.mxu0 0.0
  %1665 = vmatpush2.msra.mxu0 0.0
  %1666 = vmatprep.subr.mxu0 0.0
  %1667 = vmatpush2.msra.mxu0 0.0
  %1668 = vmatprep.subr.mxu0 0.0
  %1669 = vmatpush2.msra.mxu0 0.0
  %1670 = vmatprep.mubr.f32.mxu0 0.0
  %1671 = vmatmul.mubr.f32.gmra.mxu0 %v1601
  %v1672 = vpop.f32.mrf.mxu0
  %v1673 = vadd.f32 %v1598, %v1672
  %v1674 = vpop.f32.mrf.mxu0
  %1675 = vmatprep.mubr.f32.mxu0 0.0
  %1676 = vmatmul.mubr.f32.gmra.mxu0 %v1604
  %v1677 = vpop.f32.mrf.mxu0
  %v1678 = vadd.f32 %v1598, %v1677
  %v1679 = vpop.f32.mrf.mxu0
  %1680 = vdwg.mxu0
  %v1681 = vadd.f32 %v1474, %v1673
  %v1682 = vadd.f32 %v1475, %v1678
  %v1683 = vld [vmem:[%s2 + $0x6] sm:$0x1]
  %v1684 = vld [vmem:[%s2 + $0x7] sm:$0x1]
  %v1685 = vsel %vm44, %v1681, 0.0
  %1686 = vadd.xlane.f32.xlu0 %v1685
  %v1687 = vpop.xlane.xlu0 %1686
  %v1688 = vsel %vm44, %v1682, 0.0
  %1689 = vadd.xlane.f32.xlu0 %v1688
  %v1690 = vpop.xlane.xlu0 %1689
  %v1691 = vmul.f32 %v1687, %v51
  %v1692 = vmul.f32 %v1690, %v51
  %v1693 = vsub.f32 %v1681, %v1691
  %v1694 = vsub.f32 %v1682, %v1692
  %v1695 = vmul.f32 %v1693, %v1693
  %v1696 = vmul.f32 %v1694, %v1694
  %v1697 = vsel %vm44, %v1695, 0.0
  %1698 = vadd.xlane.f32.xlu0 %v1697
  %v1699 = vpop.xlane.xlu0 %1698
  %v1700 = vsel %vm44, %v1696, 0.0
  %1701 = vadd.xlane.f32.xlu0 %v1700
  %v1702 = vpop.xlane.xlu0 %1701
  %v1703 = vmul.f32 %v1699, %v51
  %v1704 = vmul.f32 %v1702, %v51
  %v1705 = vadd.f32 %v1703, 1e-12
  %v1706 = vadd.f32 %v1704, 1e-12
  %v1707 = vrsqrt.pop %v1705
  %v1708 = vrsqrt.pop %v1706
  %v1709 = vmul.f32 %v1693, %v1707
  %v1710 = vmul.f32 %v1694, %v1708
  %v1711 = vlaneseq
  %v1712 = vshrl.u32 %v1711, 7
  %v1713 = vsub.s32 0, %v1712
  %v1714 = vrot.slane %v1683, %v1713
  %v1715 = vmul.f32 %v1709, %v1714
  %v1716 = vmul.f32 %v1710, %v1714
  %v1717 = vlaneseq
  %v1718 = vshrl.u32 %v1717, 7
  %v1719 = vsub.s32 0, %v1718
  %v1720 = vrot.slane %v1684, %v1719
  %v1721 = vadd.f32 %v1715, %v1720
  %v1722 = vadd.f32 %v1716, %v1720
  %s1723 = scalar_lea.vmem %s5, 64
  %v1724 = vld [vmem:[%s1723] sm:$0xff]
  %v1725 = vld [vmem:[%s1723 + $0x8] sm:$0xff]
  %v1726 = vld [vmem:[%s1723 + $0x10] sm:$0xff]
  %v1727 = vld [vmem:[%s1723 + $0x18] sm:$0xff]
  %s1728 = scalar_lea.vmem %s3, 8
  %v1729 = vld [vmem:[%s1728] sm:$0x1]
  %v1730 = vlaneseq
  %v1731 = vshrl.u32 %v1730, 7
  %v1732 = vsub.s32 0, %v1731
  %v1733 = vrot.slane %v1729, %v1732
  %v1735 = vsel %vm44, %v1721, 0
  %v1738 = vsel %vm44, %v1722, 0
  %1740 = vmatprep.subr.mxu0 0.0
  %1741 = vmatpush1.msra.mxu0 0.0
  %1742 = vmatprep.subr.mxu0 0.0
  %1743 = vmatpush1.msra.mxu0 0.0
  %1744 = vmatprep.subr.mxu0 0.0
  %1745 = vmatpush1.msra.mxu0 0.0
  %1746 = vmatprep.subr.mxu0 0.0
  %1747 = vmatpush1.msra.mxu0 0.0
  %1748 = vmatprep.subr.mxu0 0.0
  %1749 = vmatpush1.msra.mxu0 0.0
  %1750 = vmatprep.subr.mxu0 0.0
  %1751 = vmatpush1.msra.mxu0 0.0
  %1752 = vmatprep.subr.mxu0 0.0
  %1753 = vmatpush1.msra.mxu0 0.0
  %1754 = vmatprep.subr.mxu0 0.0
  %1755 = vmatpush1.msra.mxu0 0.0
  %1756 = vmatprep.subr.mxu0 0.0
  %1757 = vmatpush1.msra.mxu0 0.0
  %1758 = vmatprep.subr.mxu0 0.0
  %1759 = vmatpush1.msra.mxu0 0.0
  %1760 = vmatprep.subr.mxu0 0.0
  %1761 = vmatpush1.msra.mxu0 0.0
  %1762 = vmatprep.subr.mxu0 0.0
  %1763 = vmatpush1.msra.mxu0 0.0
  %1764 = vmatprep.subr.mxu0 0.0
  %1765 = vmatpush1.msra.mxu0 %v1727
  %1766 = vmatprep.subr.mxu0 0.0
  %1767 = vmatpush1.msra.mxu0 %v1726
  %1768 = vmatprep.subr.mxu0 0.0
  %1769 = vmatpush1.msra.mxu0 %v1725
  %1770 = vmatprep.subr.mxu0 0.0
  %1771 = vmatpush1.msra.mxu0 %v1724
  %1772 = vmatprep.subr.mxu0 0.0
  %1773 = vmatpush2.msra.mxu0 0.0
  %1774 = vmatprep.subr.mxu0 0.0
  %1775 = vmatpush2.msra.mxu0 0.0
  %1776 = vmatprep.subr.mxu0 0.0
  %1777 = vmatpush2.msra.mxu0 0.0
  %1778 = vmatprep.subr.mxu0 0.0
  %1779 = vmatpush2.msra.mxu0 0.0
  %1780 = vmatprep.subr.mxu0 0.0
  %1781 = vmatpush2.msra.mxu0 0.0
  %1782 = vmatprep.subr.mxu0 0.0
  %1783 = vmatpush2.msra.mxu0 0.0
  %1784 = vmatprep.subr.mxu0 0.0
  %1785 = vmatpush2.msra.mxu0 0.0
  %1786 = vmatprep.subr.mxu0 0.0
  %1787 = vmatpush2.msra.mxu0 0.0
  %1788 = vmatprep.subr.mxu0 0.0
  %1789 = vmatpush2.msra.mxu0 0.0
  %1790 = vmatprep.subr.mxu0 0.0
  %1791 = vmatpush2.msra.mxu0 0.0
  %1792 = vmatprep.subr.mxu0 0.0
  %1793 = vmatpush2.msra.mxu0 0.0
  %1794 = vmatprep.subr.mxu0 0.0
  %1795 = vmatpush2.msra.mxu0 0.0
  %1796 = vmatprep.subr.mxu0 0.0
  %1797 = vmatpush2.msra.mxu0 0.0
  %1798 = vmatprep.subr.mxu0 0.0
  %1799 = vmatpush2.msra.mxu0 0.0
  %1800 = vmatprep.subr.mxu0 0.0
  %1801 = vmatpush2.msra.mxu0 0.0
  %1802 = vmatprep.subr.mxu0 0.0
  %1803 = vmatpush2.msra.mxu0 0.0
  %1804 = vmatprep.mubr.f32.mxu0 0.0
  %1805 = vmatmul.mubr.f32.gmra.mxu0 %v1735
  %v1806 = vpop.f32.mrf.mxu0
  %v1807 = vadd.f32 %v1733, %v1806
  %v1808 = vpop.f32.mrf.mxu0
  %1809 = vmatprep.mubr.f32.mxu0 0.0
  %1810 = vmatmul.mubr.f32.gmra.mxu0 %v1738
  %v1811 = vpop.f32.mrf.mxu0
  %v1812 = vadd.f32 %v1733, %v1811
  %v1813 = vpop.f32.mrf.mxu0
  %1814 = vdwg.mxu0
  %s1815 = scalar_lea.vmem %s6, 64
  %v1816 = vld [vmem:[%s1815] sm:$0xff]
  %v1817 = vld [vmem:[%s1815 + $0x8] sm:$0xff]
  %v1818 = vld [vmem:[%s1815 + $0x10] sm:$0xff]
  %v1819 = vld [vmem:[%s1815 + $0x18] sm:$0xff]
  %v1820 = vld [vmem:[%s1728 + $0x1] sm:$0x1]
  %v1821 = vlaneseq
  %v1822 = vshrl.u32 %v1821, 7
  %v1823 = vsub.s32 0, %v1822
  %v1824 = vrot.slane %v1820, %v1823
  %1825 = vmatprep.subr.mxu0 0.0
  %1826 = vmatpush1.msra.mxu0 0.0
  %1827 = vmatprep.subr.mxu0 0.0
  %1828 = vmatpush1.msra.mxu0 0.0
  %1829 = vmatprep.subr.mxu0 0.0
  %1830 = vmatpush1.msra.mxu0 0.0
  %1831 = vmatprep.subr.mxu0 0.0
  %1832 = vmatpush1.msra.mxu0 0.0
  %1833 = vmatprep.subr.mxu0 0.0
  %1834 = vmatpush1.msra.mxu0 0.0
  %1835 = vmatprep.subr.mxu0 0.0
  %1836 = vmatpush1.msra.mxu0 0.0
  %1837 = vmatprep.subr.mxu0 0.0
  %1838 = vmatpush1.msra.mxu0 0.0
  %1839 = vmatprep.subr.mxu0 0.0
  %1840 = vmatpush1.msra.mxu0 0.0
  %1841 = vmatprep.subr.mxu0 0.0
  %1842 = vmatpush1.msra.mxu0 0.0
  %1843 = vmatprep.subr.mxu0 0.0
  %1844 = vmatpush1.msra.mxu0 0.0
  %1845 = vmatprep.subr.mxu0 0.0
  %1846 = vmatpush1.msra.mxu0 0.0
  %1847 = vmatprep.subr.mxu0 0.0
  %1848 = vmatpush1.msra.mxu0 0.0
  %1849 = vmatprep.subr.mxu0 0.0
  %1850 = vmatpush1.msra.mxu0 %v1819
  %1851 = vmatprep.subr.mxu0 0.0
  %1852 = vmatpush1.msra.mxu0 %v1818
  %1853 = vmatprep.subr.mxu0 0.0
  %1854 = vmatpush1.msra.mxu0 %v1817
  %1855 = vmatprep.subr.mxu0 0.0
  %1856 = vmatpush1.msra.mxu0 %v1816
  %1857 = vmatprep.subr.mxu0 0.0
  %1858 = vmatpush2.msra.mxu0 0.0
  %1859 = vmatprep.subr.mxu0 0.0
  %1860 = vmatpush2.msra.mxu0 0.0
  %1861 = vmatprep.subr.mxu0 0.0
  %1862 = vmatpush2.msra.mxu0 0.0
  %1863 = vmatprep.subr.mxu0 0.0
  %1864 = vmatpush2.msra.mxu0 0.0
  %1865 = vmatprep.subr.mxu0 0.0
  %1866 = vmatpush2.msra.mxu0 0.0
  %1867 = vmatprep.subr.mxu0 0.0
  %1868 = vmatpush2.msra.mxu0 0.0
  %1869 = vmatprep.subr.mxu0 0.0
  %1870 = vmatpush2.msra.mxu0 0.0
  %1871 = vmatprep.subr.mxu0 0.0
  %1872 = vmatpush2.msra.mxu0 0.0
  %1873 = vmatprep.subr.mxu0 0.0
  %1874 = vmatpush2.msra.mxu0 0.0
  %1875 = vmatprep.subr.mxu0 0.0
  %1876 = vmatpush2.msra.mxu0 0.0
  %1877 = vmatprep.subr.mxu0 0.0
  %1878 = vmatpush2.msra.mxu0 0.0
  %1879 = vmatprep.subr.mxu0 0.0
  %1880 = vmatpush2.msra.mxu0 0.0
  %1881 = vmatprep.subr.mxu0 0.0
  %1882 = vmatpush2.msra.mxu0 0.0
  %1883 = vmatprep.subr.mxu0 0.0
  %1884 = vmatpush2.msra.mxu0 0.0
  %1885 = vmatprep.subr.mxu0 0.0
  %1886 = vmatpush2.msra.mxu0 0.0
  %1887 = vmatprep.subr.mxu0 0.0
  %1888 = vmatpush2.msra.mxu0 0.0
  %1889 = vmatprep.mubr.f32.mxu0 0.0
  %1890 = vmatmul.mubr.f32.gmra.mxu0 %v1735
  %v1891 = vpop.f32.mrf.mxu0
  %v1892 = vadd.f32 %v1824, %v1891
  %v1893 = vpop.f32.mrf.mxu0
  %1894 = vmatprep.mubr.f32.mxu0 0.0
  %1895 = vmatmul.mubr.f32.gmra.mxu0 %v1738
  %v1896 = vpop.f32.mrf.mxu0
  %v1897 = vadd.f32 %v1824, %v1896
  %v1898 = vpop.f32.mrf.mxu0
  %1899 = vdwg.mxu0
  %s1900 = scalar_lea.vmem %s7, 64
  %v1901 = vld [vmem:[%s1900] sm:$0xff]
  %v1902 = vld [vmem:[%s1900 + $0x8] sm:$0xff]
  %v1903 = vld [vmem:[%s1900 + $0x10] sm:$0xff]
  %v1904 = vld [vmem:[%s1900 + $0x18] sm:$0xff]
  %v1905 = vld [vmem:[%s1728 + $0x2] sm:$0x1]
  %v1906 = vlaneseq
  %v1907 = vshrl.u32 %v1906, 7
  %v1908 = vsub.s32 0, %v1907
  %v1909 = vrot.slane %v1905, %v1908
  %1910 = vmatprep.subr.mxu0 0.0
  %1911 = vmatpush1.msra.mxu0 0.0
  %1912 = vmatprep.subr.mxu0 0.0
  %1913 = vmatpush1.msra.mxu0 0.0
  %1914 = vmatprep.subr.mxu0 0.0
  %1915 = vmatpush1.msra.mxu0 0.0
  %1916 = vmatprep.subr.mxu0 0.0
  %1917 = vmatpush1.msra.mxu0 0.0
  %1918 = vmatprep.subr.mxu0 0.0
  %1919 = vmatpush1.msra.mxu0 0.0
  %1920 = vmatprep.subr.mxu0 0.0
  %1921 = vmatpush1.msra.mxu0 0.0
  %1922 = vmatprep.subr.mxu0 0.0
  %1923 = vmatpush1.msra.mxu0 0.0
  %1924 = vmatprep.subr.mxu0 0.0
  %1925 = vmatpush1.msra.mxu0 0.0
  %1926 = vmatprep.subr.mxu0 0.0
  %1927 = vmatpush1.msra.mxu0 0.0
  %1928 = vmatprep.subr.mxu0 0.0
  %1929 = vmatpush1.msra.mxu0 0.0
  %1930 = vmatprep.subr.mxu0 0.0
  %1931 = vmatpush1.msra.mxu0 0.0
  %1932 = vmatprep.subr.mxu0 0.0
  %1933 = vmatpush1.msra.mxu0 0.0
  %1934 = vmatprep.subr.mxu0 0.0
  %1935 = vmatpush1.msra.mxu0 %v1904
  %1936 = vmatprep.subr.mxu0 0.0
  %1937 = vmatpush1.msra.mxu0 %v1903
  %1938 = vmatprep.subr.mxu0 0.0
  %1939 = vmatpush1.msra.mxu0 %v1902
  %1940 = vmatprep.subr.mxu0 0.0
  %1941 = vmatpush1.msra.mxu0 %v1901
  %1942 = vmatprep.subr.mxu0 0.0
  %1943 = vmatpush2.msra.mxu0 0.0
  %1944 = vmatprep.subr.mxu0 0.0
  %1945 = vmatpush2.msra.mxu0 0.0
  %1946 = vmatprep.subr.mxu0 0.0
  %1947 = vmatpush2.msra.mxu0 0.0
  %1948 = vmatprep.subr.mxu0 0.0
  %1949 = vmatpush2.msra.mxu0 0.0
  %1950 = vmatprep.subr.mxu0 0.0
  %1951 = vmatpush2.msra.mxu0 0.0
  %1952 = vmatprep.subr.mxu0 0.0
  %1953 = vmatpush2.msra.mxu0 0.0
  %1954 = vmatprep.subr.mxu0 0.0
  %1955 = vmatpush2.msra.mxu0 0.0
  %1956 = vmatprep.subr.mxu0 0.0
  %1957 = vmatpush2.msra.mxu0 0.0
  %1958 = vmatprep.subr.mxu0 0.0
  %1959 = vmatpush2.msra.mxu0 0.0
  %1960 = vmatprep.subr.mxu0 0.0
  %1961 = vmatpush2.msra.mxu0 0.0
  %1962 = vmatprep.subr.mxu0 0.0
  %1963 = vmatpush2.msra.mxu0 0.0
  %1964 = vmatprep.subr.mxu0 0.0
  %1965 = vmatpush2.msra.mxu0 0.0
  %1966 = vmatprep.subr.mxu0 0.0
  %1967 = vmatpush2.msra.mxu0 0.0
  %1968 = vmatprep.subr.mxu0 0.0
  %1969 = vmatpush2.msra.mxu0 0.0
  %1970 = vmatprep.subr.mxu0 0.0
  %1971 = vmatpush2.msra.mxu0 0.0
  %1972 = vmatprep.subr.mxu0 0.0
  %1973 = vmatpush2.msra.mxu0 0.0
  %1974 = vmatprep.mubr.f32.mxu0 0.0
  %1975 = vmatmul.mubr.f32.gmra.mxu0 %v1735
  %v1976 = vpop.f32.mrf.mxu0
  %v1977 = vadd.f32 %v1909, %v1976
  %v1978 = vpop.f32.mrf.mxu0
  %1979 = vmatprep.mubr.f32.mxu0 0.0
  %1980 = vmatmul.mubr.f32.gmra.mxu0 %v1738
  %v1981 = vpop.f32.mrf.mxu0
  %v1982 = vadd.f32 %v1909, %v1981
  %v1983 = vpop.f32.mrf.mxu0
  %1984 = vdwg.mxu0
  %v1986 = vsel %vm342, %v1807, 0
  %v1989 = vsel %vm342, %v1892, 0
  %1991 = vmatprep.subr.mxu0 0.0
  %1992 = vmatpush1.xpose.msra.mxu0 0.0
  %1993 = vmatprep.subr.mxu0 0.0
  %1994 = vmatpush1.xpose.msra.mxu0 0.0
  %1995 = vmatprep.subr.mxu0 0.0
  %1996 = vmatpush1.xpose.msra.mxu0 0.0
  %1997 = vmatprep.subr.mxu0 0.0
  %1998 = vmatpush1.xpose.msra.mxu0 0.0
  %1999 = vmatprep.subr.mxu0 0.0
  %2000 = vmatpush1.xpose.msra.mxu0 0.0
  %2001 = vmatprep.subr.mxu0 0.0
  %2002 = vmatpush1.xpose.msra.mxu0 0.0
  %2003 = vmatprep.subr.mxu0 0.0
  %2004 = vmatpush1.xpose.msra.mxu0 0.0
  %2005 = vmatprep.subr.mxu0 0.0
  %2006 = vmatpush1.xpose.msra.mxu0 0.0
  %2007 = vmatprep.subr.mxu0 0.0
  %2008 = vmatpush1.xpose.msra.mxu0 0.0
  %2009 = vmatprep.subr.mxu0 0.0
  %2010 = vmatpush1.xpose.msra.mxu0 0.0
  %2011 = vmatprep.subr.mxu0 0.0
  %2012 = vmatpush1.xpose.msra.mxu0 0.0
  %2013 = vmatprep.subr.mxu0 0.0
  %2014 = vmatpush1.xpose.msra.mxu0 0.0
  %2015 = vmatprep.subr.mxu0 0.0
  %2016 = vmatpush1.xpose.msra.mxu0 0.0
  %2017 = vmatprep.subr.mxu0 0.0
  %2018 = vmatpush1.xpose.msra.mxu0 0.0
  %2019 = vmatprep.subr.mxu0 0.0
  %2020 = vmatpush1.xpose.msra.mxu0 0.0
  %2021 = vmatprep.subr.mxu0 0.0
  %2022 = vmatpush1.xpose.msra.mxu0 %v1989
  %2023 = vmatprep.subr.mxu0 0.0
  %2024 = vmatpush2.xpose.msra.mxu0 0.0
  %2025 = vmatprep.subr.mxu0 0.0
  %2026 = vmatpush2.xpose.msra.mxu0 0.0
  %2027 = vmatprep.subr.mxu0 0.0
  %2028 = vmatpush2.xpose.msra.mxu0 0.0
  %2029 = vmatprep.subr.mxu0 0.0
  %2030 = vmatpush2.xpose.msra.mxu0 0.0
  %2031 = vmatprep.subr.mxu0 0.0
  %2032 = vmatpush2.xpose.msra.mxu0 0.0
  %2033 = vmatprep.subr.mxu0 0.0
  %2034 = vmatpush2.xpose.msra.mxu0 0.0
  %2035 = vmatprep.subr.mxu0 0.0
  %2036 = vmatpush2.xpose.msra.mxu0 0.0
  %2037 = vmatprep.subr.mxu0 0.0
  %2038 = vmatpush2.xpose.msra.mxu0 0.0
  %2039 = vmatprep.subr.mxu0 0.0
  %2040 = vmatpush2.xpose.msra.mxu0 0.0
  %2041 = vmatprep.subr.mxu0 0.0
  %2042 = vmatpush2.xpose.msra.mxu0 0.0
  %2043 = vmatprep.subr.mxu0 0.0
  %2044 = vmatpush2.xpose.msra.mxu0 0.0
  %2045 = vmatprep.subr.mxu0 0.0
  %2046 = vmatpush2.xpose.msra.mxu0 0.0
  %2047 = vmatprep.subr.mxu0 0.0
  %2048 = vmatpush2.xpose.msra.mxu0 0.0
  %2049 = vmatprep.subr.mxu0 0.0
  %2050 = vmatpush2.xpose.msra.mxu0 0.0
  %2051 = vmatprep.subr.mxu0 0.0
  %2052 = vmatpush2.xpose.msra.mxu0 0.0
  %2053 = vmatprep.subr.mxu0 0.0
  %2054 = vmatpush2.xpose.msra.mxu0 0.0
  %2055 = vmatprep.mubr.f32.mxu0 0.0
  %2056 = vmatmul.mubr.f32.gmra.mxu0 %v1986
  %v2057 = vpop.f32.mrf.mxu0
  %v2058 = vadd.f32 0.0, %v2057
  %v2059 = vpop.f32.mrf.mxu0
  %2060 = vdwg.mxu0
  %v2062 = vsel %vm342, %v1812, 0
  %v2065 = vsel %vm342, %v1897, 0
  %2067 = vmatprep.subr.mxu0 0.0
  %2068 = vmatpush1.xpose.msra.mxu0 0.0
  %2069 = vmatprep.subr.mxu0 0.0
  %2070 = vmatpush1.xpose.msra.mxu0 0.0
  %2071 = vmatprep.subr.mxu0 0.0
  %2072 = vmatpush1.xpose.msra.mxu0 0.0
  %2073 = vmatprep.subr.mxu0 0.0
  %2074 = vmatpush1.xpose.msra.mxu0 0.0
  %2075 = vmatprep.subr.mxu0 0.0
  %2076 = vmatpush1.xpose.msra.mxu0 0.0
  %2077 = vmatprep.subr.mxu0 0.0
  %2078 = vmatpush1.xpose.msra.mxu0 0.0
  %2079 = vmatprep.subr.mxu0 0.0
  %2080 = vmatpush1.xpose.msra.mxu0 0.0
  %2081 = vmatprep.subr.mxu0 0.0
  %2082 = vmatpush1.xpose.msra.mxu0 0.0
  %2083 = vmatprep.subr.mxu0 0.0
  %2084 = vmatpush1.xpose.msra.mxu0 0.0
  %2085 = vmatprep.subr.mxu0 0.0
  %2086 = vmatpush1.xpose.msra.mxu0 0.0
  %2087 = vmatprep.subr.mxu0 0.0
  %2088 = vmatpush1.xpose.msra.mxu0 0.0
  %2089 = vmatprep.subr.mxu0 0.0
  %2090 = vmatpush1.xpose.msra.mxu0 0.0
  %2091 = vmatprep.subr.mxu0 0.0
  %2092 = vmatpush1.xpose.msra.mxu0 0.0
  %2093 = vmatprep.subr.mxu0 0.0
  %2094 = vmatpush1.xpose.msra.mxu0 0.0
  %2095 = vmatprep.subr.mxu0 0.0
  %2096 = vmatpush1.xpose.msra.mxu0 0.0
  %2097 = vmatprep.subr.mxu0 0.0
  %2098 = vmatpush1.xpose.msra.mxu0 %v2065
  %2099 = vmatprep.subr.mxu0 0.0
  %2100 = vmatpush2.xpose.msra.mxu0 0.0
  %2101 = vmatprep.subr.mxu0 0.0
  %2102 = vmatpush2.xpose.msra.mxu0 0.0
  %2103 = vmatprep.subr.mxu0 0.0
  %2104 = vmatpush2.xpose.msra.mxu0 0.0
  %2105 = vmatprep.subr.mxu0 0.0
  %2106 = vmatpush2.xpose.msra.mxu0 0.0
  %2107 = vmatprep.subr.mxu0 0.0
  %2108 = vmatpush2.xpose.msra.mxu0 0.0
  %2109 = vmatprep.subr.mxu0 0.0
  %2110 = vmatpush2.xpose.msra.mxu0 0.0
  %2111 = vmatprep.subr.mxu0 0.0
  %2112 = vmatpush2.xpose.msra.mxu0 0.0
  %2113 = vmatprep.subr.mxu0 0.0
  %2114 = vmatpush2.xpose.msra.mxu0 0.0
  %2115 = vmatprep.subr.mxu0 0.0
  %2116 = vmatpush2.xpose.msra.mxu0 0.0
  %2117 = vmatprep.subr.mxu0 0.0
  %2118 = vmatpush2.xpose.msra.mxu0 0.0
  %2119 = vmatprep.subr.mxu0 0.0
  %2120 = vmatpush2.xpose.msra.mxu0 0.0
  %2121 = vmatprep.subr.mxu0 0.0
  %2122 = vmatpush2.xpose.msra.mxu0 0.0
  %2123 = vmatprep.subr.mxu0 0.0
  %2124 = vmatpush2.xpose.msra.mxu0 0.0
  %2125 = vmatprep.subr.mxu0 0.0
  %2126 = vmatpush2.xpose.msra.mxu0 0.0
  %2127 = vmatprep.subr.mxu0 0.0
  %2128 = vmatpush2.xpose.msra.mxu0 0.0
  %2129 = vmatprep.subr.mxu0 0.0
  %2130 = vmatpush2.xpose.msra.mxu0 0.0
  %2131 = vmatprep.mubr.f32.mxu0 0.0
  %2132 = vmatmul.mubr.f32.gmra.mxu0 %v2062
  %v2133 = vpop.f32.mrf.mxu0
  %v2134 = vadd.f32 0.0, %v2133
  %v2135 = vpop.f32.mrf.mxu0
  %2136 = vdwg.mxu0
  %v2137 = vmul.f32 %v2058, 0.25
  %v2138 = vmul.f32 %v2134, 0.25
  %v2139 = vadd.f32 %v2137, %v502
  %v2140 = vadd.f32 %v2138, %v506
  %v2141 = vsel %vm511, %v2139, -inf
  %2142 = vmax.xlane.f32.xlu0 %v2141
  %v2143 = vpop.xlane.xlu0 %2142
  %v2144 = vsel %vm511, %v2140, -inf
  %2145 = vmax.xlane.f32.xlu0 %v2144
  %v2146 = vpop.xlane.xlu0 %2145
  %v2147 = vsub.f32 %v2139, %v2143
  %v2148 = vsub.f32 %v2140, %v2146
  %v2149 = vmul.f32 %v2147, 1.442695
  %v2150 = vpow.pop %v2149
  %v2151 = vmul.f32 %v2148, 1.442695
  %v2152 = vpow.pop %v2151
  %v2153 = vsel %vm511, %v2150, 0.0
  %2154 = vadd.xlane.f32.xlu0 %v2153
  %v2155 = vpop.xlane.xlu0 %2154
  %v2156 = vsel %vm511, %v2152, 0.0
  %2157 = vadd.xlane.f32.xlu0 %v2156
  %v2158 = vpop.xlane.xlu0 %2157
  %v2159 = vrcp.pop %v2155
  %v2160 = vrcp.pop %v2158
  %v2161 = vmul.f32 %v2150, %v2159
  %v2162 = vmul.f32 %v2152, %v2160
  %v2164 = vsel %vm511, %v2161, 0
  %2166 = vmatprep.subr.mxu0 0.0
  %2167 = vmatpush1.msra.mxu0 0.0
  %2168 = vmatprep.subr.mxu0 0.0
  %2169 = vmatpush1.msra.mxu0 0.0
  %2170 = vmatprep.subr.mxu0 0.0
  %2171 = vmatpush1.msra.mxu0 0.0
  %2172 = vmatprep.subr.mxu0 0.0
  %2173 = vmatpush1.msra.mxu0 0.0
  %2174 = vmatprep.subr.mxu0 0.0
  %2175 = vmatpush1.msra.mxu0 0.0
  %2176 = vmatprep.subr.mxu0 0.0
  %2177 = vmatpush1.msra.mxu0 0.0
  %2178 = vmatprep.subr.mxu0 0.0
  %2179 = vmatpush1.msra.mxu0 0.0
  %2180 = vmatprep.subr.mxu0 0.0
  %2181 = vmatpush1.msra.mxu0 0.0
  %2182 = vmatprep.subr.mxu0 0.0
  %2183 = vmatpush1.msra.mxu0 0.0
  %2184 = vmatprep.subr.mxu0 0.0
  %2185 = vmatpush1.msra.mxu0 0.0
  %2186 = vmatprep.subr.mxu0 0.0
  %2187 = vmatpush1.msra.mxu0 0.0
  %2188 = vmatprep.subr.mxu0 0.0
  %2189 = vmatpush1.msra.mxu0 0.0
  %2190 = vmatprep.subr.mxu0 0.0
  %2191 = vmatpush1.msra.mxu0 0.0
  %2192 = vmatprep.subr.mxu0 0.0
  %2193 = vmatpush1.msra.mxu0 0.0
  %2194 = vmatprep.subr.mxu0 0.0
  %2195 = vmatpush1.msra.mxu0 0.0
  %2196 = vmatprep.subr.mxu0 0.0
  %2197 = vmatpush1.msra.mxu0 %v1977
  %2198 = vmatprep.subr.mxu0 0.0
  %2199 = vmatpush2.msra.mxu0 0.0
  %2200 = vmatprep.subr.mxu0 0.0
  %2201 = vmatpush2.msra.mxu0 0.0
  %2202 = vmatprep.subr.mxu0 0.0
  %2203 = vmatpush2.msra.mxu0 0.0
  %2204 = vmatprep.subr.mxu0 0.0
  %2205 = vmatpush2.msra.mxu0 0.0
  %2206 = vmatprep.subr.mxu0 0.0
  %2207 = vmatpush2.msra.mxu0 0.0
  %2208 = vmatprep.subr.mxu0 0.0
  %2209 = vmatpush2.msra.mxu0 0.0
  %2210 = vmatprep.subr.mxu0 0.0
  %2211 = vmatpush2.msra.mxu0 0.0
  %2212 = vmatprep.subr.mxu0 0.0
  %2213 = vmatpush2.msra.mxu0 0.0
  %2214 = vmatprep.subr.mxu0 0.0
  %2215 = vmatpush2.msra.mxu0 0.0
  %2216 = vmatprep.subr.mxu0 0.0
  %2217 = vmatpush2.msra.mxu0 0.0
  %2218 = vmatprep.subr.mxu0 0.0
  %2219 = vmatpush2.msra.mxu0 0.0
  %2220 = vmatprep.subr.mxu0 0.0
  %2221 = vmatpush2.msra.mxu0 0.0
  %2222 = vmatprep.subr.mxu0 0.0
  %2223 = vmatpush2.msra.mxu0 0.0
  %2224 = vmatprep.subr.mxu0 0.0
  %2225 = vmatpush2.msra.mxu0 0.0
  %2226 = vmatprep.subr.mxu0 0.0
  %2227 = vmatpush2.msra.mxu0 0.0
  %2228 = vmatprep.subr.mxu0 0.0
  %2229 = vmatpush2.msra.mxu0 0.0
  %2230 = vmatprep.mubr.f32.mxu0 0.0
  %2231 = vmatmul.mubr.f32.gmra.mxu0 %v2164
  %v2232 = vpop.f32.mrf.mxu0
  %v2233 = vadd.f32 0.0, %v2232
  %v2234 = vpop.f32.mrf.mxu0
  %2235 = vdwg.mxu0
  %v2237 = vsel %vm511, %v2162, 0
  %2239 = vmatprep.subr.mxu0 0.0
  %2240 = vmatpush1.msra.mxu0 0.0
  %2241 = vmatprep.subr.mxu0 0.0
  %2242 = vmatpush1.msra.mxu0 0.0
  %2243 = vmatprep.subr.mxu0 0.0
  %2244 = vmatpush1.msra.mxu0 0.0
  %2245 = vmatprep.subr.mxu0 0.0
  %2246 = vmatpush1.msra.mxu0 0.0
  %2247 = vmatprep.subr.mxu0 0.0
  %2248 = vmatpush1.msra.mxu0 0.0
  %2249 = vmatprep.subr.mxu0 0.0
  %2250 = vmatpush1.msra.mxu0 0.0
  %2251 = vmatprep.subr.mxu0 0.0
  %2252 = vmatpush1.msra.mxu0 0.0
  %2253 = vmatprep.subr.mxu0 0.0
  %2254 = vmatpush1.msra.mxu0 0.0
  %2255 = vmatprep.subr.mxu0 0.0
  %2256 = vmatpush1.msra.mxu0 0.0
  %2257 = vmatprep.subr.mxu0 0.0
  %2258 = vmatpush1.msra.mxu0 0.0
  %2259 = vmatprep.subr.mxu0 0.0
  %2260 = vmatpush1.msra.mxu0 0.0
  %2261 = vmatprep.subr.mxu0 0.0
  %2262 = vmatpush1.msra.mxu0 0.0
  %2263 = vmatprep.subr.mxu0 0.0
  %2264 = vmatpush1.msra.mxu0 0.0
  %2265 = vmatprep.subr.mxu0 0.0
  %2266 = vmatpush1.msra.mxu0 0.0
  %2267 = vmatprep.subr.mxu0 0.0
  %2268 = vmatpush1.msra.mxu0 0.0
  %2269 = vmatprep.subr.mxu0 0.0
  %2270 = vmatpush1.msra.mxu0 %v1982
  %2271 = vmatprep.subr.mxu0 0.0
  %2272 = vmatpush2.msra.mxu0 0.0
  %2273 = vmatprep.subr.mxu0 0.0
  %2274 = vmatpush2.msra.mxu0 0.0
  %2275 = vmatprep.subr.mxu0 0.0
  %2276 = vmatpush2.msra.mxu0 0.0
  %2277 = vmatprep.subr.mxu0 0.0
  %2278 = vmatpush2.msra.mxu0 0.0
  %2279 = vmatprep.subr.mxu0 0.0
  %2280 = vmatpush2.msra.mxu0 0.0
  %2281 = vmatprep.subr.mxu0 0.0
  %2282 = vmatpush2.msra.mxu0 0.0
  %2283 = vmatprep.subr.mxu0 0.0
  %2284 = vmatpush2.msra.mxu0 0.0
  %2285 = vmatprep.subr.mxu0 0.0
  %2286 = vmatpush2.msra.mxu0 0.0
  %2287 = vmatprep.subr.mxu0 0.0
  %2288 = vmatpush2.msra.mxu0 0.0
  %2289 = vmatprep.subr.mxu0 0.0
  %2290 = vmatpush2.msra.mxu0 0.0
  %2291 = vmatprep.subr.mxu0 0.0
  %2292 = vmatpush2.msra.mxu0 0.0
  %2293 = vmatprep.subr.mxu0 0.0
  %2294 = vmatpush2.msra.mxu0 0.0
  %2295 = vmatprep.subr.mxu0 0.0
  %2296 = vmatpush2.msra.mxu0 0.0
  %2297 = vmatprep.subr.mxu0 0.0
  %2298 = vmatpush2.msra.mxu0 0.0
  %2299 = vmatprep.subr.mxu0 0.0
  %2300 = vmatpush2.msra.mxu0 0.0
  %2301 = vmatprep.subr.mxu0 0.0
  %2302 = vmatpush2.msra.mxu0 0.0
  %2303 = vmatprep.mubr.f32.mxu0 0.0
  %2304 = vmatmul.mubr.f32.gmra.mxu0 %v2237
  %v2305 = vpop.f32.mrf.mxu0
  %v2306 = vadd.f32 0.0, %v2305
  %v2307 = vpop.f32.mrf.mxu0
  %2308 = vdwg.mxu0
  %s2309 = scalar_lea.vmem %s8, 32
  %v2310 = vld [vmem:[%s2309] sm:$0xff]
  %v2311 = vld [vmem:[%s2309 + $0x8] sm:$0xff]
  %s2312 = scalar_lea.vmem %s5, 96
  %v2313 = vld [vmem:[%s2312] sm:$0xff]
  %v2314 = vld [vmem:[%s2312 + $0x8] sm:$0xff]
  %v2315 = vld [vmem:[%s2312 + $0x10] sm:$0xff]
  %v2316 = vld [vmem:[%s2312 + $0x18] sm:$0xff]
  %s2317 = scalar_lea.vmem %s3, 12
  %v2318 = vld [vmem:[%s2317] sm:$0x1]
  %v2319 = vlaneseq
  %v2320 = vshrl.u32 %v2319, 7
  %v2321 = vsub.s32 0, %v2320
  %v2322 = vrot.slane %v2318, %v2321
  %2323 = vmatprep.subr.mxu0 0.0
  %2324 = vmatpush1.msra.mxu0 0.0
  %2325 = vmatprep.subr.mxu0 0.0
  %2326 = vmatpush1.msra.mxu0 0.0
  %2327 = vmatprep.subr.mxu0 0.0
  %2328 = vmatpush1.msra.mxu0 0.0
  %2329 = vmatprep.subr.mxu0 0.0
  %2330 = vmatpush1.msra.mxu0 0.0
  %2331 = vmatprep.subr.mxu0 0.0
  %2332 = vmatpush1.msra.mxu0 0.0
  %2333 = vmatprep.subr.mxu0 0.0
  %2334 = vmatpush1.msra.mxu0 0.0
  %2335 = vmatprep.subr.mxu0 0.0
  %2336 = vmatpush1.msra.mxu0 0.0
  %2337 = vmatprep.subr.mxu0 0.0
  %2338 = vmatpush1.msra.mxu0 0.0
  %2339 = vmatprep.subr.mxu0 0.0
  %2340 = vmatpush1.msra.mxu0 0.0
  %2341 = vmatprep.subr.mxu0 0.0
  %2342 = vmatpush1.msra.mxu0 0.0
  %2343 = vmatprep.subr.mxu0 0.0
  %2344 = vmatpush1.msra.mxu0 0.0
  %2345 = vmatprep.subr.mxu0 0.0
  %2346 = vmatpush1.msra.mxu0 0.0
  %2347 = vmatprep.subr.mxu0 0.0
  %2348 = vmatpush1.msra.mxu0 %v2316
  %2349 = vmatprep.subr.mxu0 0.0
  %2350 = vmatpush1.msra.mxu0 %v2315
  %2351 = vmatprep.subr.mxu0 0.0
  %2352 = vmatpush1.msra.mxu0 %v2314
  %2353 = vmatprep.subr.mxu0 0.0
  %2354 = vmatpush1.msra.mxu0 %v2313
  %2355 = vmatprep.subr.mxu0 0.0
  %2356 = vmatpush2.msra.mxu0 0.0
  %2357 = vmatprep.subr.mxu0 0.0
  %2358 = vmatpush2.msra.mxu0 0.0
  %2359 = vmatprep.subr.mxu0 0.0
  %2360 = vmatpush2.msra.mxu0 0.0
  %2361 = vmatprep.subr.mxu0 0.0
  %2362 = vmatpush2.msra.mxu0 0.0
  %2363 = vmatprep.subr.mxu0 0.0
  %2364 = vmatpush2.msra.mxu0 0.0
  %2365 = vmatprep.subr.mxu0 0.0
  %2366 = vmatpush2.msra.mxu0 0.0
  %2367 = vmatprep.subr.mxu0 0.0
  %2368 = vmatpush2.msra.mxu0 0.0
  %2369 = vmatprep.subr.mxu0 0.0
  %2370 = vmatpush2.msra.mxu0 0.0
  %2371 = vmatprep.subr.mxu0 0.0
  %2372 = vmatpush2.msra.mxu0 0.0
  %2373 = vmatprep.subr.mxu0 0.0
  %2374 = vmatpush2.msra.mxu0 0.0
  %2375 = vmatprep.subr.mxu0 0.0
  %2376 = vmatpush2.msra.mxu0 0.0
  %2377 = vmatprep.subr.mxu0 0.0
  %2378 = vmatpush2.msra.mxu0 0.0
  %2379 = vmatprep.subr.mxu0 0.0
  %2380 = vmatpush2.msra.mxu0 0.0
  %2381 = vmatprep.subr.mxu0 0.0
  %2382 = vmatpush2.msra.mxu0 0.0
  %2383 = vmatprep.subr.mxu0 0.0
  %2384 = vmatpush2.msra.mxu0 0.0
  %2385 = vmatprep.subr.mxu0 0.0
  %2386 = vmatpush2.msra.mxu0 0.0
  %2387 = vmatprep.mubr.f32.mxu0 0.0
  %2388 = vmatmul.mubr.f32.gmra.mxu0 %v1735
  %v2389 = vpop.f32.mrf.mxu0
  %v2390 = vadd.f32 %v2322, %v2389
  %v2391 = vpop.f32.mrf.mxu0
  %2392 = vmatprep.mubr.f32.mxu0 0.0
  %2393 = vmatmul.mubr.f32.gmra.mxu0 %v1738
  %v2394 = vpop.f32.mrf.mxu0
  %v2395 = vadd.f32 %v2322, %v2394
  %v2396 = vpop.f32.mrf.mxu0
  %2397 = vdwg.mxu0
  %s2398 = scalar_lea.vmem %s6, 96
  %v2399 = vld [vmem:[%s2398] sm:$0xff]
  %v2400 = vld [vmem:[%s2398 + $0x8] sm:$0xff]
  %v2401 = vld [vmem:[%s2398 + $0x10] sm:$0xff]
  %v2402 = vld [vmem:[%s2398 + $0x18] sm:$0xff]
  %v2403 = vld [vmem:[%s2317 + $0x1] sm:$0x1]
  %v2404 = vlaneseq
  %v2405 = vshrl.u32 %v2404, 7
  %v2406 = vsub.s32 0, %v2405
  %v2407 = vrot.slane %v2403, %v2406
  %2408 = vmatprep.subr.mxu0 0.0
  %2409 = vmatpush1.msra.mxu0 0.0
  %2410 = vmatprep.subr.mxu0 0.0
  %2411 = vmatpush1.msra.mxu0 0.0
  %2412 = vmatprep.subr.mxu0 0.0
  %2413 = vmatpush1.msra.mxu0 0.0
  %2414 = vmatprep.subr.mxu0 0.0
  %2415 = vmatpush1.msra.mxu0 0.0
  %2416 = vmatprep.subr.mxu0 0.0
  %2417 = vmatpush1.msra.mxu0 0.0
  %2418 = vmatprep.subr.mxu0 0.0
  %2419 = vmatpush1.msra.mxu0 0.0
  %2420 = vmatprep.subr.mxu0 0.0
  %2421 = vmatpush1.msra.mxu0 0.0
  %2422 = vmatprep.subr.mxu0 0.0
  %2423 = vmatpush1.msra.mxu0 0.0
  %2424 = vmatprep.subr.mxu0 0.0
  %2425 = vmatpush1.msra.mxu0 0.0
  %2426 = vmatprep.subr.mxu0 0.0
  %2427 = vmatpush1.msra.mxu0 0.0
  %2428 = vmatprep.subr.mxu0 0.0
  %2429 = vmatpush1.msra.mxu0 0.0
  %2430 = vmatprep.subr.mxu0 0.0
  %2431 = vmatpush1.msra.mxu0 0.0
  %2432 = vmatprep.subr.mxu0 0.0
  %2433 = vmatpush1.msra.mxu0 %v2402
  %2434 = vmatprep.subr.mxu0 0.0
  %2435 = vmatpush1.msra.mxu0 %v2401
  %2436 = vmatprep.subr.mxu0 0.0
  %2437 = vmatpush1.msra.mxu0 %v2400
  %2438 = vmatprep.subr.mxu0 0.0
  %2439 = vmatpush1.msra.mxu0 %v2399
  %2440 = vmatprep.subr.mxu0 0.0
  %2441 = vmatpush2.msra.mxu0 0.0
  %2442 = vmatprep.subr.mxu0 0.0
  %2443 = vmatpush2.msra.mxu0 0.0
  %2444 = vmatprep.subr.mxu0 0.0
  %2445 = vmatpush2.msra.mxu0 0.0
  %2446 = vmatprep.subr.mxu0 0.0
  %2447 = vmatpush2.msra.mxu0 0.0
  %2448 = vmatprep.subr.mxu0 0.0
  %2449 = vmatpush2.msra.mxu0 0.0
  %2450 = vmatprep.subr.mxu0 0.0
  %2451 = vmatpush2.msra.mxu0 0.0
  %2452 = vmatprep.subr.mxu0 0.0
  %2453 = vmatpush2.msra.mxu0 0.0
  %2454 = vmatprep.subr.mxu0 0.0
  %2455 = vmatpush2.msra.mxu0 0.0
  %2456 = vmatprep.subr.mxu0 0.0
  %2457 = vmatpush2.msra.mxu0 0.0
  %2458 = vmatprep.subr.mxu0 0.0
  %2459 = vmatpush2.msra.mxu0 0.0
  %2460 = vmatprep.subr.mxu0 0.0
  %2461 = vmatpush2.msra.mxu0 0.0
  %2462 = vmatprep.subr.mxu0 0.0
  %2463 = vmatpush2.msra.mxu0 0.0
  %2464 = vmatprep.subr.mxu0 0.0
  %2465 = vmatpush2.msra.mxu0 0.0
  %2466 = vmatprep.subr.mxu0 0.0
  %2467 = vmatpush2.msra.mxu0 0.0
  %2468 = vmatprep.subr.mxu0 0.0
  %2469 = vmatpush2.msra.mxu0 0.0
  %2470 = vmatprep.subr.mxu0 0.0
  %2471 = vmatpush2.msra.mxu0 0.0
  %2472 = vmatprep.mubr.f32.mxu0 0.0
  %2473 = vmatmul.mubr.f32.gmra.mxu0 %v1735
  %v2474 = vpop.f32.mrf.mxu0
  %v2475 = vadd.f32 %v2407, %v2474
  %v2476 = vpop.f32.mrf.mxu0
  %2477 = vmatprep.mubr.f32.mxu0 0.0
  %2478 = vmatmul.mubr.f32.gmra.mxu0 %v1738
  %v2479 = vpop.f32.mrf.mxu0
  %v2480 = vadd.f32 %v2407, %v2479
  %v2481 = vpop.f32.mrf.mxu0
  %2482 = vdwg.mxu0
  %s2483 = scalar_lea.vmem %s7, 96
  %v2484 = vld [vmem:[%s2483] sm:$0xff]
  %v2485 = vld [vmem:[%s2483 + $0x8] sm:$0xff]
  %v2486 = vld [vmem:[%s2483 + $0x10] sm:$0xff]
  %v2487 = vld [vmem:[%s2483 + $0x18] sm:$0xff]
  %v2488 = vld [vmem:[%s2317 + $0x2] sm:$0x1]
  %v2489 = vlaneseq
  %v2490 = vshrl.u32 %v2489, 7
  %v2491 = vsub.s32 0, %v2490
  %v2492 = vrot.slane %v2488, %v2491
  %2493 = vmatprep.subr.mxu0 0.0
  %2494 = vmatpush1.msra.mxu0 0.0
  %2495 = vmatprep.subr.mxu0 0.0
  %2496 = vmatpush1.msra.mxu0 0.0
  %2497 = vmatprep.subr.mxu0 0.0
  %2498 = vmatpush1.msra.mxu0 0.0
  %2499 = vmatprep.subr.mxu0 0.0
  %2500 = vmatpush1.msra.mxu0 0.0
  %2501 = vmatprep.subr.mxu0 0.0
  %2502 = vmatpush1.msra.mxu0 0.0
  %2503 = vmatprep.subr.mxu0 0.0
  %2504 = vmatpush1.msra.mxu0 0.0
  %2505 = vmatprep.subr.mxu0 0.0
  %2506 = vmatpush1.msra.mxu0 0.0
  %2507 = vmatprep.subr.mxu0 0.0
  %2508 = vmatpush1.msra.mxu0 0.0
  %2509 = vmatprep.subr.mxu0 0.0
  %2510 = vmatpush1.msra.mxu0 0.0
  %2511 = vmatprep.subr.mxu0 0.0
  %2512 = vmatpush1.msra.mxu0 0.0
  %2513 = vmatprep.subr.mxu0 0.0
  %2514 = vmatpush1.msra.mxu0 0.0
  %2515 = vmatprep.subr.mxu0 0.0
  %2516 = vmatpush1.msra.mxu0 0.0
  %2517 = vmatprep.subr.mxu0 0.0
  %2518 = vmatpush1.msra.mxu0 %v2487
  %2519 = vmatprep.subr.mxu0 0.0
  %2520 = vmatpush1.msra.mxu0 %v2486
  %2521 = vmatprep.subr.mxu0 0.0
  %2522 = vmatpush1.msra.mxu0 %v2485
  %2523 = vmatprep.subr.mxu0 0.0
  %2524 = vmatpush1.msra.mxu0 %v2484
  %2525 = vmatprep.subr.mxu0 0.0
  %2526 = vmatpush2.msra.mxu0 0.0
  %2527 = vmatprep.subr.mxu0 0.0
  %2528 = vmatpush2.msra.mxu0 0.0
  %2529 = vmatprep.subr.mxu0 0.0
  %2530 = vmatpush2.msra.mxu0 0.0
  %2531 = vmatprep.subr.mxu0 0.0
  %2532 = vmatpush2.msra.mxu0 0.0
  %2533 = vmatprep.subr.mxu0 0.0
  %2534 = vmatpush2.msra.mxu0 0.0
  %2535 = vmatprep.subr.mxu0 0.0
  %2536 = vmatpush2.msra.mxu0 0.0
  %2537 = vmatprep.subr.mxu0 0.0
  %2538 = vmatpush2.msra.mxu0 0.0
  %2539 = vmatprep.subr.mxu0 0.0
  %2540 = vmatpush2.msra.mxu0 0.0
  %2541 = vmatprep.subr.mxu0 0.0
  %2542 = vmatpush2.msra.mxu0 0.0
  %2543 = vmatprep.subr.mxu0 0.0
  %2544 = vmatpush2.msra.mxu0 0.0
  %2545 = vmatprep.subr.mxu0 0.0
  %2546 = vmatpush2.msra.mxu0 0.0
  %2547 = vmatprep.subr.mxu0 0.0
  %2548 = vmatpush2.msra.mxu0 0.0
  %2549 = vmatprep.subr.mxu0 0.0
  %2550 = vmatpush2.msra.mxu0 0.0
  %2551 = vmatprep.subr.mxu0 0.0
  %2552 = vmatpush2.msra.mxu0 0.0
  %2553 = vmatprep.subr.mxu0 0.0
  %2554 = vmatpush2.msra.mxu0 0.0
  %2555 = vmatprep.subr.mxu0 0.0
  %2556 = vmatpush2.msra.mxu0 0.0
  %2557 = vmatprep.mubr.f32.mxu0 0.0
  %2558 = vmatmul.mubr.f32.gmra.mxu0 %v1735
  %v2559 = vpop.f32.mrf.mxu0
  %v2560 = vadd.f32 %v2492, %v2559
  %v2561 = vpop.f32.mrf.mxu0
  %2562 = vmatprep.mubr.f32.mxu0 0.0
  %2563 = vmatmul.mubr.f32.gmra.mxu0 %v1738
  %v2564 = vpop.f32.mrf.mxu0
  %v2565 = vadd.f32 %v2492, %v2564
  %v2566 = vpop.f32.mrf.mxu0
  %2567 = vdwg.mxu0
  %v2569 = vsel %vm342, %v2390, 0
  %v2572 = vsel %vm342, %v2475, 0
  %2574 = vmatprep.subr.mxu0 0.0
  %2575 = vmatpush1.xpose.msra.mxu0 0.0
  %2576 = vmatprep.subr.mxu0 0.0
  %2577 = vmatpush1.xpose.msra.mxu0 0.0
  %2578 = vmatprep.subr.mxu0 0.0
  %2579 = vmatpush1.xpose.msra.mxu0 0.0
  %2580 = vmatprep.subr.mxu0 0.0
  %2581 = vmatpush1.xpose.msra.mxu0 0.0
  %2582 = vmatprep.subr.mxu0 0.0
  %2583 = vmatpush1.xpose.msra.mxu0 0.0
  %2584 = vmatprep.subr.mxu0 0.0
  %2585 = vmatpush1.xpose.msra.mxu0 0.0
  %2586 = vmatprep.subr.mxu0 0.0
  %2587 = vmatpush1.xpose.msra.mxu0 0.0
  %2588 = vmatprep.subr.mxu0 0.0
  %2589 = vmatpush1.xpose.msra.mxu0 0.0
  %2590 = vmatprep.subr.mxu0 0.0
  %2591 = vmatpush1.xpose.msra.mxu0 0.0
  %2592 = vmatprep.subr.mxu0 0.0
  %2593 = vmatpush1.xpose.msra.mxu0 0.0
  %2594 = vmatprep.subr.mxu0 0.0
  %2595 = vmatpush1.xpose.msra.mxu0 0.0
  %2596 = vmatprep.subr.mxu0 0.0
  %2597 = vmatpush1.xpose.msra.mxu0 0.0
  %2598 = vmatprep.subr.mxu0 0.0
  %2599 = vmatpush1.xpose.msra.mxu0 0.0
  %2600 = vmatprep.subr.mxu0 0.0
  %2601 = vmatpush1.xpose.msra.mxu0 0.0
  %2602 = vmatprep.subr.mxu0 0.0
  %2603 = vmatpush1.xpose.msra.mxu0 0.0
  %2604 = vmatprep.subr.mxu0 0.0
  %2605 = vmatpush1.xpose.msra.mxu0 %v2572
  %2606 = vmatprep.subr.mxu0 0.0
  %2607 = vmatpush2.xpose.msra.mxu0 0.0
  %2608 = vmatprep.subr.mxu0 0.0
  %2609 = vmatpush2.xpose.msra.mxu0 0.0
  %2610 = vmatprep.subr.mxu0 0.0
  %2611 = vmatpush2.xpose.msra.mxu0 0.0
  %2612 = vmatprep.subr.mxu0 0.0
  %2613 = vmatpush2.xpose.msra.mxu0 0.0
  %2614 = vmatprep.subr.mxu0 0.0
  %2615 = vmatpush2.xpose.msra.mxu0 0.0
  %2616 = vmatprep.subr.mxu0 0.0
  %2617 = vmatpush2.xpose.msra.mxu0 0.0
  %2618 = vmatprep.subr.mxu0 0.0
  %2619 = vmatpush2.xpose.msra.mxu0 0.0
  %2620 = vmatprep.subr.mxu0 0.0
  %2621 = vmatpush2.xpose.msra.mxu0 0.0
  %2622 = vmatprep.subr.mxu0 0.0
  %2623 = vmatpush2.xpose.msra.mxu0 0.0
  %2624 = vmatprep.subr.mxu0 0.0
  %2625 = vmatpush2.xpose.msra.mxu0 0.0
  %2626 = vmatprep.subr.mxu0 0.0
  %2627 = vmatpush2.xpose.msra.mxu0 0.0
  %2628 = vmatprep.subr.mxu0 0.0
  %2629 = vmatpush2.xpose.msra.mxu0 0.0
  %2630 = vmatprep.subr.mxu0 0.0
  %2631 = vmatpush2.xpose.msra.mxu0 0.0
  %2632 = vmatprep.subr.mxu0 0.0
  %2633 = vmatpush2.xpose.msra.mxu0 0.0
  %2634 = vmatprep.subr.mxu0 0.0
  %2635 = vmatpush2.xpose.msra.mxu0 0.0
  %2636 = vmatprep.subr.mxu0 0.0
  %2637 = vmatpush2.xpose.msra.mxu0 0.0
  %2638 = vmatprep.mubr.f32.mxu0 0.0
  %2639 = vmatmul.mubr.f32.gmra.mxu0 %v2569
  %v2640 = vpop.f32.mrf.mxu0
  %v2641 = vadd.f32 0.0, %v2640
  %v2642 = vpop.f32.mrf.mxu0
  %2643 = vdwg.mxu0
  %v2645 = vsel %vm342, %v2395, 0
  %v2648 = vsel %vm342, %v2480, 0
  %2650 = vmatprep.subr.mxu0 0.0
  %2651 = vmatpush1.xpose.msra.mxu0 0.0
  %2652 = vmatprep.subr.mxu0 0.0
  %2653 = vmatpush1.xpose.msra.mxu0 0.0
  %2654 = vmatprep.subr.mxu0 0.0
  %2655 = vmatpush1.xpose.msra.mxu0 0.0
  %2656 = vmatprep.subr.mxu0 0.0
  %2657 = vmatpush1.xpose.msra.mxu0 0.0
  %2658 = vmatprep.subr.mxu0 0.0
  %2659 = vmatpush1.xpose.msra.mxu0 0.0
  %2660 = vmatprep.subr.mxu0 0.0
  %2661 = vmatpush1.xpose.msra.mxu0 0.0
  %2662 = vmatprep.subr.mxu0 0.0
  %2663 = vmatpush1.xpose.msra.mxu0 0.0
  %2664 = vmatprep.subr.mxu0 0.0
  %2665 = vmatpush1.xpose.msra.mxu0 0.0
  %2666 = vmatprep.subr.mxu0 0.0
  %2667 = vmatpush1.xpose.msra.mxu0 0.0
  %2668 = vmatprep.subr.mxu0 0.0
  %2669 = vmatpush1.xpose.msra.mxu0 0.0
  %2670 = vmatprep.subr.mxu0 0.0
  %2671 = vmatpush1.xpose.msra.mxu0 0.0
  %2672 = vmatprep.subr.mxu0 0.0
  %2673 = vmatpush1.xpose.msra.mxu0 0.0
  %2674 = vmatprep.subr.mxu0 0.0
  %2675 = vmatpush1.xpose.msra.mxu0 0.0
  %2676 = vmatprep.subr.mxu0 0.0
  %2677 = vmatpush1.xpose.msra.mxu0 0.0
  %2678 = vmatprep.subr.mxu0 0.0
  %2679 = vmatpush1.xpose.msra.mxu0 0.0
  %2680 = vmatprep.subr.mxu0 0.0
  %2681 = vmatpush1.xpose.msra.mxu0 %v2648
  %2682 = vmatprep.subr.mxu0 0.0
  %2683 = vmatpush2.xpose.msra.mxu0 0.0
  %2684 = vmatprep.subr.mxu0 0.0
  %2685 = vmatpush2.xpose.msra.mxu0 0.0
  %2686 = vmatprep.subr.mxu0 0.0
  %2687 = vmatpush2.xpose.msra.mxu0 0.0
  %2688 = vmatprep.subr.mxu0 0.0
  %2689 = vmatpush2.xpose.msra.mxu0 0.0
  %2690 = vmatprep.subr.mxu0 0.0
  %2691 = vmatpush2.xpose.msra.mxu0 0.0
  %2692 = vmatprep.subr.mxu0 0.0
  %2693 = vmatpush2.xpose.msra.mxu0 0.0
  %2694 = vmatprep.subr.mxu0 0.0
  %2695 = vmatpush2.xpose.msra.mxu0 0.0
  %2696 = vmatprep.subr.mxu0 0.0
  %2697 = vmatpush2.xpose.msra.mxu0 0.0
  %2698 = vmatprep.subr.mxu0 0.0
  %2699 = vmatpush2.xpose.msra.mxu0 0.0
  %2700 = vmatprep.subr.mxu0 0.0
  %2701 = vmatpush2.xpose.msra.mxu0 0.0
  %2702 = vmatprep.subr.mxu0 0.0
  %2703 = vmatpush2.xpose.msra.mxu0 0.0
  %2704 = vmatprep.subr.mxu0 0.0
  %2705 = vmatpush2.xpose.msra.mxu0 0.0
  %2706 = vmatprep.subr.mxu0 0.0
  %2707 = vmatpush2.xpose.msra.mxu0 0.0
  %2708 = vmatprep.subr.mxu0 0.0
  %2709 = vmatpush2.xpose.msra.mxu0 0.0
  %2710 = vmatprep.subr.mxu0 0.0
  %2711 = vmatpush2.xpose.msra.mxu0 0.0
  %2712 = vmatprep.subr.mxu0 0.0
  %2713 = vmatpush2.xpose.msra.mxu0 0.0
  %2714 = vmatprep.mubr.f32.mxu0 0.0
  %2715 = vmatmul.mubr.f32.gmra.mxu0 %v2645
  %v2716 = vpop.f32.mrf.mxu0
  %v2717 = vadd.f32 0.0, %v2716
  %v2718 = vpop.f32.mrf.mxu0
  %2719 = vdwg.mxu0
  %v2720 = vmul.f32 %v2641, 0.25
  %v2721 = vmul.f32 %v2717, 0.25
  %v2722 = vadd.f32 %v2720, %v502
  %v2723 = vadd.f32 %v2721, %v506
  %v2724 = vsel %vm511, %v2722, -inf
  %2725 = vmax.xlane.f32.xlu0 %v2724
  %v2726 = vpop.xlane.xlu0 %2725
  %v2727 = vsel %vm511, %v2723, -inf
  %2728 = vmax.xlane.f32.xlu0 %v2727
  %v2729 = vpop.xlane.xlu0 %2728
  %v2730 = vsub.f32 %v2722, %v2726
  %v2731 = vsub.f32 %v2723, %v2729
  %v2732 = vmul.f32 %v2730, 1.442695
  %v2733 = vpow.pop %v2732
  %v2734 = vmul.f32 %v2731, 1.442695
  %v2735 = vpow.pop %v2734
  %v2736 = vsel %vm511, %v2733, 0.0
  %2737 = vadd.xlane.f32.xlu0 %v2736
  %v2738 = vpop.xlane.xlu0 %2737
  %v2739 = vsel %vm511, %v2735, 0.0
  %2740 = vadd.xlane.f32.xlu0 %v2739
  %v2741 = vpop.xlane.xlu0 %2740
  %v2742 = vrcp.pop %v2738
  %v2743 = vrcp.pop %v2741
  %v2744 = vmul.f32 %v2733, %v2742
  %v2745 = vmul.f32 %v2735, %v2743
  %v2747 = vsel %vm511, %v2744, 0
  %2749 = vmatprep.subr.mxu0 0.0
  %2750 = vmatpush1.msra.mxu0 0.0
  %2751 = vmatprep.subr.mxu0 0.0
  %2752 = vmatpush1.msra.mxu0 0.0
  %2753 = vmatprep.subr.mxu0 0.0
  %2754 = vmatpush1.msra.mxu0 0.0
  %2755 = vmatprep.subr.mxu0 0.0
  %2756 = vmatpush1.msra.mxu0 0.0
  %2757 = vmatprep.subr.mxu0 0.0
  %2758 = vmatpush1.msra.mxu0 0.0
  %2759 = vmatprep.subr.mxu0 0.0
  %2760 = vmatpush1.msra.mxu0 0.0
  %2761 = vmatprep.subr.mxu0 0.0
  %2762 = vmatpush1.msra.mxu0 0.0
  %2763 = vmatprep.subr.mxu0 0.0
  %2764 = vmatpush1.msra.mxu0 0.0
  %2765 = vmatprep.subr.mxu0 0.0
  %2766 = vmatpush1.msra.mxu0 0.0
  %2767 = vmatprep.subr.mxu0 0.0
  %2768 = vmatpush1.msra.mxu0 0.0
  %2769 = vmatprep.subr.mxu0 0.0
  %2770 = vmatpush1.msra.mxu0 0.0
  %2771 = vmatprep.subr.mxu0 0.0
  %2772 = vmatpush1.msra.mxu0 0.0
  %2773 = vmatprep.subr.mxu0 0.0
  %2774 = vmatpush1.msra.mxu0 0.0
  %2775 = vmatprep.subr.mxu0 0.0
  %2776 = vmatpush1.msra.mxu0 0.0
  %2777 = vmatprep.subr.mxu0 0.0
  %2778 = vmatpush1.msra.mxu0 0.0
  %2779 = vmatprep.subr.mxu0 0.0
  %2780 = vmatpush1.msra.mxu0 %v2560
  %2781 = vmatprep.subr.mxu0 0.0
  %2782 = vmatpush2.msra.mxu0 0.0
  %2783 = vmatprep.subr.mxu0 0.0
  %2784 = vmatpush2.msra.mxu0 0.0
  %2785 = vmatprep.subr.mxu0 0.0
  %2786 = vmatpush2.msra.mxu0 0.0
  %2787 = vmatprep.subr.mxu0 0.0
  %2788 = vmatpush2.msra.mxu0 0.0
  %2789 = vmatprep.subr.mxu0 0.0
  %2790 = vmatpush2.msra.mxu0 0.0
  %2791 = vmatprep.subr.mxu0 0.0
  %2792 = vmatpush2.msra.mxu0 0.0
  %2793 = vmatprep.subr.mxu0 0.0
  %2794 = vmatpush2.msra.mxu0 0.0
  %2795 = vmatprep.subr.mxu0 0.0
  %2796 = vmatpush2.msra.mxu0 0.0
  %2797 = vmatprep.subr.mxu0 0.0
  %2798 = vmatpush2.msra.mxu0 0.0
  %2799 = vmatprep.subr.mxu0 0.0
  %2800 = vmatpush2.msra.mxu0 0.0
  %2801 = vmatprep.subr.mxu0 0.0
  %2802 = vmatpush2.msra.mxu0 0.0
  %2803 = vmatprep.subr.mxu0 0.0
  %2804 = vmatpush2.msra.mxu0 0.0
  %2805 = vmatprep.subr.mxu0 0.0
  %2806 = vmatpush2.msra.mxu0 0.0
  %2807 = vmatprep.subr.mxu0 0.0
  %2808 = vmatpush2.msra.mxu0 0.0
  %2809 = vmatprep.subr.mxu0 0.0
  %2810 = vmatpush2.msra.mxu0 0.0
  %2811 = vmatprep.subr.mxu0 0.0
  %2812 = vmatpush2.msra.mxu0 0.0
  %2813 = vmatprep.mubr.f32.mxu0 0.0
  %2814 = vmatmul.mubr.f32.gmra.mxu0 %v2747
  %v2815 = vpop.f32.mrf.mxu0
  %v2816 = vadd.f32 0.0, %v2815
  %v2817 = vpop.f32.mrf.mxu0
  %2818 = vdwg.mxu0
  %v2820 = vsel %vm511, %v2745, 0
  %2822 = vmatprep.subr.mxu0 0.0
  %2823 = vmatpush1.msra.mxu0 0.0
  %2824 = vmatprep.subr.mxu0 0.0
  %2825 = vmatpush1.msra.mxu0 0.0
  %2826 = vmatprep.subr.mxu0 0.0
  %2827 = vmatpush1.msra.mxu0 0.0
  %2828 = vmatprep.subr.mxu0 0.0
  %2829 = vmatpush1.msra.mxu0 0.0
  %2830 = vmatprep.subr.mxu0 0.0
  %2831 = vmatpush1.msra.mxu0 0.0
  %2832 = vmatprep.subr.mxu0 0.0
  %2833 = vmatpush1.msra.mxu0 0.0
  %2834 = vmatprep.subr.mxu0 0.0
  %2835 = vmatpush1.msra.mxu0 0.0
  %2836 = vmatprep.subr.mxu0 0.0
  %2837 = vmatpush1.msra.mxu0 0.0
  %2838 = vmatprep.subr.mxu0 0.0
  %2839 = vmatpush1.msra.mxu0 0.0
  %2840 = vmatprep.subr.mxu0 0.0
  %2841 = vmatpush1.msra.mxu0 0.0
  %2842 = vmatprep.subr.mxu0 0.0
  %2843 = vmatpush1.msra.mxu0 0.0
  %2844 = vmatprep.subr.mxu0 0.0
  %2845 = vmatpush1.msra.mxu0 0.0
  %2846 = vmatprep.subr.mxu0 0.0
  %2847 = vmatpush1.msra.mxu0 0.0
  %2848 = vmatprep.subr.mxu0 0.0
  %2849 = vmatpush1.msra.mxu0 0.0
  %2850 = vmatprep.subr.mxu0 0.0
  %2851 = vmatpush1.msra.mxu0 0.0
  %2852 = vmatprep.subr.mxu0 0.0
  %2853 = vmatpush1.msra.mxu0 %v2565
  %2854 = vmatprep.subr.mxu0 0.0
  %2855 = vmatpush2.msra.mxu0 0.0
  %2856 = vmatprep.subr.mxu0 0.0
  %2857 = vmatpush2.msra.mxu0 0.0
  %2858 = vmatprep.subr.mxu0 0.0
  %2859 = vmatpush2.msra.mxu0 0.0
  %2860 = vmatprep.subr.mxu0 0.0
  %2861 = vmatpush2.msra.mxu0 0.0
  %2862 = vmatprep.subr.mxu0 0.0
  %2863 = vmatpush2.msra.mxu0 0.0
  %2864 = vmatprep.subr.mxu0 0.0
  %2865 = vmatpush2.msra.mxu0 0.0
  %2866 = vmatprep.subr.mxu0 0.0
  %2867 = vmatpush2.msra.mxu0 0.0
  %2868 = vmatprep.subr.mxu0 0.0
  %2869 = vmatpush2.msra.mxu0 0.0
  %2870 = vmatprep.subr.mxu0 0.0
  %2871 = vmatpush2.msra.mxu0 0.0
  %2872 = vmatprep.subr.mxu0 0.0
  %2873 = vmatpush2.msra.mxu0 0.0
  %2874 = vmatprep.subr.mxu0 0.0
  %2875 = vmatpush2.msra.mxu0 0.0
  %2876 = vmatprep.subr.mxu0 0.0
  %2877 = vmatpush2.msra.mxu0 0.0
  %2878 = vmatprep.subr.mxu0 0.0
  %2879 = vmatpush2.msra.mxu0 0.0
  %2880 = vmatprep.subr.mxu0 0.0
  %2881 = vmatpush2.msra.mxu0 0.0
  %2882 = vmatprep.subr.mxu0 0.0
  %2883 = vmatpush2.msra.mxu0 0.0
  %2884 = vmatprep.subr.mxu0 0.0
  %2885 = vmatpush2.msra.mxu0 0.0
  %2886 = vmatprep.mubr.f32.mxu0 0.0
  %2887 = vmatmul.mubr.f32.gmra.mxu0 %v2820
  %v2888 = vpop.f32.mrf.mxu0
  %v2889 = vadd.f32 0.0, %v2888
  %v2890 = vpop.f32.mrf.mxu0
  %2891 = vdwg.mxu0
  %s2892 = scalar_lea.vmem %s8, 48
  %v2893 = vld [vmem:[%s2892] sm:$0xff]
  %v2894 = vld [vmem:[%s2892 + $0x8] sm:$0xff]
  %v2896 = vsel %vm342, %v2816, 0
  %v2899 = vsel %vm342, %v2889, 0
  %2901 = vmatprep.subr.mxu0 0.0
  %2902 = vmatpush1.msra.mxu0 0.0
  %2903 = vmatprep.subr.mxu0 0.0
  %2904 = vmatpush1.msra.mxu0 0.0
  %2905 = vmatprep.subr.mxu0 0.0
  %2906 = vmatpush1.msra.mxu0 0.0
  %2907 = vmatprep.subr.mxu0 0.0
  %2908 = vmatpush1.msra.mxu0 0.0
  %2909 = vmatprep.subr.mxu0 0.0
  %2910 = vmatpush1.msra.mxu0 0.0
  %2911 = vmatprep.subr.mxu0 0.0
  %2912 = vmatpush1.msra.mxu0 0.0
  %2913 = vmatprep.subr.mxu0 0.0
  %2914 = vmatpush1.msra.mxu0 0.0
  %2915 = vmatprep.subr.mxu0 0.0
  %2916 = vmatpush1.msra.mxu0 0.0
  %2917 = vmatprep.subr.mxu0 0.0
  %2918 = vmatpush1.msra.mxu0 0.0
  %2919 = vmatprep.subr.mxu0 0.0
  %2920 = vmatpush1.msra.mxu0 0.0
  %2921 = vmatprep.subr.mxu0 0.0
  %2922 = vmatpush1.msra.mxu0 0.0
  %2923 = vmatprep.subr.mxu0 0.0
  %2924 = vmatpush1.msra.mxu0 0.0
  %2925 = vmatprep.subr.mxu0 0.0
  %2926 = vmatpush1.msra.mxu0 0.0
  %2927 = vmatprep.subr.mxu0 0.0
  %2928 = vmatpush1.msra.mxu0 0.0
  %2929 = vmatprep.subr.mxu0 0.0
  %2930 = vmatpush1.msra.mxu0 %v2894
  %2931 = vmatprep.subr.mxu0 0.0
  %2932 = vmatpush1.msra.mxu0 %v2893
  %2933 = vmatprep.subr.mxu0 0.0
  %2934 = vmatpush2.msra.mxu0 0.0
  %2935 = vmatprep.subr.mxu0 0.0
  %2936 = vmatpush2.msra.mxu0 0.0
  %2937 = vmatprep.subr.mxu0 0.0
  %2938 = vmatpush2.msra.mxu0 0.0
  %2939 = vmatprep.subr.mxu0 0.0
  %2940 = vmatpush2.msra.mxu0 0.0
  %2941 = vmatprep.subr.mxu0 0.0
  %2942 = vmatpush2.msra.mxu0 0.0
  %2943 = vmatprep.subr.mxu0 0.0
  %2944 = vmatpush2.msra.mxu0 0.0
  %2945 = vmatprep.subr.mxu0 0.0
  %2946 = vmatpush2.msra.mxu0 0.0
  %2947 = vmatprep.subr.mxu0 0.0
  %2948 = vmatpush2.msra.mxu0 0.0
  %2949 = vmatprep.subr.mxu0 0.0
  %2950 = vmatpush2.msra.mxu0 0.0
  %2951 = vmatprep.subr.mxu0 0.0
  %2952 = vmatpush2.msra.mxu0 0.0
  %2953 = vmatprep.subr.mxu0 0.0
  %2954 = vmatpush2.msra.mxu0 0.0
  %2955 = vmatprep.subr.mxu0 0.0
  %2956 = vmatpush2.msra.mxu0 0.0
  %2957 = vmatprep.subr.mxu0 0.0
  %2958 = vmatpush2.msra.mxu0 0.0
  %2959 = vmatprep.subr.mxu0 0.0
  %2960 = vmatpush2.msra.mxu0 0.0
  %2961 = vmatprep.subr.mxu0 0.0
  %2962 = vmatpush2.msra.mxu0 0.0
  %2963 = vmatprep.subr.mxu0 0.0
  %2964 = vmatpush2.msra.mxu0 0.0
  %2965 = vmatprep.mubr.f32.mxu0 0.0
  %2966 = vmatmul.mubr.f32.gmra.mxu0 %v2896
  %v2967 = vpop.f32.mrf.mxu0
  %v2968 = vadd.f32 0.0, %v2967
  %v2969 = vpop.f32.mrf.mxu0
  %2970 = vmatprep.mubr.f32.mxu0 0.0
  %2971 = vmatmul.mubr.f32.gmra.mxu0 %v2899
  %v2972 = vpop.f32.mrf.mxu0
  %v2973 = vadd.f32 0.0, %v2972
  %v2974 = vpop.f32.mrf.mxu0
  %2975 = vdwg.mxu0
  %v2977 = vsel %vm342, %v2233, 0
  %v2980 = vsel %vm342, %v2306, 0
  %2982 = vmatprep.subr.mxu0 0.0
  %2983 = vmatpush1.msra.mxu0 0.0
  %2984 = vmatprep.subr.mxu0 0.0
  %2985 = vmatpush1.msra.mxu0 0.0
  %2986 = vmatprep.subr.mxu0 0.0
  %2987 = vmatpush1.msra.mxu0 0.0
  %2988 = vmatprep.subr.mxu0 0.0
  %2989 = vmatpush1.msra.mxu0 0.0
  %2990 = vmatprep.subr.mxu0 0.0
  %2991 = vmatpush1.msra.mxu0 0.0
  %2992 = vmatprep.subr.mxu0 0.0
  %2993 = vmatpush1.msra.mxu0 0.0
  %2994 = vmatprep.subr.mxu0 0.0
  %2995 = vmatpush1.msra.mxu0 0.0
  %2996 = vmatprep.subr.mxu0 0.0
  %2997 = vmatpush1.msra.mxu0 0.0
  %2998 = vmatprep.subr.mxu0 0.0
  %2999 = vmatpush1.msra.mxu0 0.0
  %3000 = vmatprep.subr.mxu0 0.0
  %3001 = vmatpush1.msra.mxu0 0.0
  %3002 = vmatprep.subr.mxu0 0.0
  %3003 = vmatpush1.msra.mxu0 0.0
  %3004 = vmatprep.subr.mxu0 0.0
  %3005 = vmatpush1.msra.mxu0 0.0
  %3006 = vmatprep.subr.mxu0 0.0
  %3007 = vmatpush1.msra.mxu0 0.0
  %3008 = vmatprep.subr.mxu0 0.0
  %3009 = vmatpush1.msra.mxu0 0.0
  %3010 = vmatprep.subr.mxu0 0.0
  %3011 = vmatpush1.msra.mxu0 %v2311
  %3012 = vmatprep.subr.mxu0 0.0
  %3013 = vmatpush1.msra.mxu0 %v2310
  %3014 = vmatprep.subr.mxu0 0.0
  %3015 = vmatpush2.msra.mxu0 0.0
  %3016 = vmatprep.subr.mxu0 0.0
  %3017 = vmatpush2.msra.mxu0 0.0
  %3018 = vmatprep.subr.mxu0 0.0
  %3019 = vmatpush2.msra.mxu0 0.0
  %3020 = vmatprep.subr.mxu0 0.0
  %3021 = vmatpush2.msra.mxu0 0.0
  %3022 = vmatprep.subr.mxu0 0.0
  %3023 = vmatpush2.msra.mxu0 0.0
  %3024 = vmatprep.subr.mxu0 0.0
  %3025 = vmatpush2.msra.mxu0 0.0
  %3026 = vmatprep.subr.mxu0 0.0
  %3027 = vmatpush2.msra.mxu0 0.0
  %3028 = vmatprep.subr.mxu0 0.0
  %3029 = vmatpush2.msra.mxu0 0.0
  %3030 = vmatprep.subr.mxu0 0.0
  %3031 = vmatpush2.msra.mxu0 0.0
  %3032 = vmatprep.subr.mxu0 0.0
  %3033 = vmatpush2.msra.mxu0 0.0
  %3034 = vmatprep.subr.mxu0 0.0
  %3035 = vmatpush2.msra.mxu0 0.0
  %3036 = vmatprep.subr.mxu0 0.0
  %3037 = vmatpush2.msra.mxu0 0.0
  %3038 = vmatprep.subr.mxu0 0.0
  %3039 = vmatpush2.msra.mxu0 0.0
  %3040 = vmatprep.subr.mxu0 0.0
  %3041 = vmatpush2.msra.mxu0 0.0
  %3042 = vmatprep.subr.mxu0 0.0
  %3043 = vmatpush2.msra.mxu0 0.0
  %3044 = vmatprep.subr.mxu0 0.0
  %3045 = vmatpush2.msra.mxu0 0.0
  %3046 = vmatprep.mubr.f32.mxu0 0.0
  %3047 = vmatmul.mubr.f32.gmra.mxu0 %v2977
  %v3048 = vpop.f32.mrf.mxu0
  %v3049 = vadd.f32 %v2968, %v3048
  %v3050 = vpop.f32.mrf.mxu0
  %3051 = vmatprep.mubr.f32.mxu0 0.0
  %3052 = vmatmul.mubr.f32.gmra.mxu0 %v2980
  %v3053 = vpop.f32.mrf.mxu0
  %v3054 = vadd.f32 %v2973, %v3053
  %v3055 = vpop.f32.mrf.mxu0
  %3056 = vdwg.mxu0
  %v3057 = vld [vmem:[%s2 + $0x8] sm:$0x1]
  %v3058 = vlaneseq
  %v3059 = vshrl.u32 %v3058, 7
  %v3060 = vsub.s32 0, %v3059
  %v3061 = vrot.slane %v3057, %v3060
  %v3062 = vadd.f32 %v3049, %v3061
  %v3063 = vadd.f32 %v3054, %v3061
  %v3064 = vadd.f32 %v1721, %v3062
  %v3065 = vadd.f32 %v1722, %v3063
  %v3066 = vld [vmem:[%s2 + $0x9] sm:$0x1]
  %v3067 = vld [vmem:[%s2 + $0xa] sm:$0x1]
  %v3068 = vsel %vm44, %v3064, 0.0
  %3069 = vadd.xlane.f32.xlu0 %v3068
  %v3070 = vpop.xlane.xlu0 %3069
  %v3071 = vsel %vm44, %v3065, 0.0
  %3072 = vadd.xlane.f32.xlu0 %v3071
  %v3073 = vpop.xlane.xlu0 %3072
  %v3074 = vmul.f32 %v3070, %v51
  %v3075 = vmul.f32 %v3073, %v51
  %v3076 = vsub.f32 %v3064, %v3074
  %v3077 = vsub.f32 %v3065, %v3075
  %v3078 = vmul.f32 %v3076, %v3076
  %v3079 = vmul.f32 %v3077, %v3077
  %v3080 = vsel %vm44, %v3078, 0.0
  %3081 = vadd.xlane.f32.xlu0 %v3080
  %v3082 = vpop.xlane.xlu0 %3081
  %v3083 = vsel %vm44, %v3079, 0.0
  %3084 = vadd.xlane.f32.xlu0 %v3083
  %v3085 = vpop.xlane.xlu0 %3084
  %v3086 = vmul.f32 %v3082, %v51
  %v3087 = vmul.f32 %v3085, %v51
  %v3088 = vadd.f32 %v3086, 1e-12
  %v3089 = vadd.f32 %v3087, 1e-12
  %v3090 = vrsqrt.pop %v3088
  %v3091 = vrsqrt.pop %v3089
  %v3092 = vmul.f32 %v3076, %v3090
  %v3093 = vmul.f32 %v3077, %v3091
  %v3094 = vlaneseq
  %v3095 = vshrl.u32 %v3094, 7
  %v3096 = vsub.s32 0, %v3095
  %v3097 = vrot.slane %v3066, %v3096
  %v3098 = vmul.f32 %v3092, %v3097
  %v3099 = vmul.f32 %v3093, %v3097
  %v3100 = vlaneseq
  %v3101 = vshrl.u32 %v3100, 7
  %v3102 = vsub.s32 0, %v3101
  %v3103 = vrot.slane %v3067, %v3102
  %v3104 = vadd.f32 %v3098, %v3103
  %v3105 = vadd.f32 %v3099, %v3103
  %s3106 = scalar_lea.vmem %s9, 32
  %v3107 = vld [vmem:[%s3106] sm:$0xff]
  %v3108 = vld [vmem:[%s3106 + $0x8] sm:$0xff]
  %v3109 = vld [vmem:[%s3106 + $0x10] sm:$0xff]
  %v3110 = vld [vmem:[%s3106 + $0x18] sm:$0xff]
  %s3111 = scalar_lea.vmem %s4, 1
  %v3112 = vld [vmem:[%s3111] sm:$0x1]
  %v3114 = vlaneseq
  %v3115 = vshrl.u32 %v3114, 7
  %v3116 = vsub.s32 0, %v3115
  %v3117 = vrot.slane %v3112, %v3116
  %v3120 = vsel %vm44, %v3104, 0
  %v3123 = vsel %vm44, %v3105, 0
  %3125 = vmatprep.subr.mxu0 0.0
  %3126 = vmatpush1.msra.mxu0 0.0
  %3127 = vmatprep.subr.mxu0 0.0
  %3128 = vmatpush1.msra.mxu0 0.0
  %3129 = vmatprep.subr.mxu0 0.0
  %3130 = vmatpush1.msra.mxu0 0.0
  %3131 = vmatprep.subr.mxu0 0.0
  %3132 = vmatpush1.msra.mxu0 0.0
  %3133 = vmatprep.subr.mxu0 0.0
  %3134 = vmatpush1.msra.mxu0 0.0
  %3135 = vmatprep.subr.mxu0 0.0
  %3136 = vmatpush1.msra.mxu0 0.0
  %3137 = vmatprep.subr.mxu0 0.0
  %3138 = vmatpush1.msra.mxu0 0.0
  %3139 = vmatprep.subr.mxu0 0.0
  %3140 = vmatpush1.msra.mxu0 0.0
  %3141 = vmatprep.subr.mxu0 0.0
  %3142 = vmatpush1.msra.mxu0 0.0
  %3143 = vmatprep.subr.mxu0 0.0
  %3144 = vmatpush1.msra.mxu0 0.0
  %3145 = vmatprep.subr.mxu0 0.0
  %3146 = vmatpush1.msra.mxu0 0.0
  %3147 = vmatprep.subr.mxu0 0.0
  %3148 = vmatpush1.msra.mxu0 0.0
  %3149 = vmatprep.subr.mxu0 0.0
  %3150 = vmatpush1.msra.mxu0 %v3110
  %3151 = vmatprep.subr.mxu0 0.0
  %3152 = vmatpush1.msra.mxu0 %v3109
  %3153 = vmatprep.subr.mxu0 0.0
  %3154 = vmatpush1.msra.mxu0 %v3108
  %3155 = vmatprep.subr.mxu0 0.0
  %3156 = vmatpush1.msra.mxu0 %v3107
  %3157 = vmatprep.subr.mxu0 0.0
  %3158 = vmatpush2.msra.mxu0 0.0
  %3159 = vmatprep.subr.mxu0 0.0
  %3160 = vmatpush2.msra.mxu0 0.0
  %3161 = vmatprep.subr.mxu0 0.0
  %3162 = vmatpush2.msra.mxu0 0.0
  %3163 = vmatprep.subr.mxu0 0.0
  %3164 = vmatpush2.msra.mxu0 0.0
  %3165 = vmatprep.subr.mxu0 0.0
  %3166 = vmatpush2.msra.mxu0 0.0
  %3167 = vmatprep.subr.mxu0 0.0
  %3168 = vmatpush2.msra.mxu0 0.0
  %3169 = vmatprep.subr.mxu0 0.0
  %3170 = vmatpush2.msra.mxu0 0.0
  %3171 = vmatprep.subr.mxu0 0.0
  %3172 = vmatpush2.msra.mxu0 0.0
  %3173 = vmatprep.subr.mxu0 0.0
  %3174 = vmatpush2.msra.mxu0 0.0
  %3175 = vmatprep.subr.mxu0 0.0
  %3176 = vmatpush2.msra.mxu0 0.0
  %3177 = vmatprep.subr.mxu0 0.0
  %3178 = vmatpush2.msra.mxu0 0.0
  %3179 = vmatprep.subr.mxu0 0.0
  %3180 = vmatpush2.msra.mxu0 0.0
  %3181 = vmatprep.subr.mxu0 0.0
  %3182 = vmatpush2.msra.mxu0 0.0
  %3183 = vmatprep.subr.mxu0 0.0
  %3184 = vmatpush2.msra.mxu0 0.0
  %3185 = vmatprep.subr.mxu0 0.0
  %3186 = vmatpush2.msra.mxu0 0.0
  %3187 = vmatprep.subr.mxu0 0.0
  %3188 = vmatpush2.msra.mxu0 0.0
  %3189 = vmatprep.mubr.f32.mxu0 0.0
  %3190 = vmatmul.mubr.f32.gmra.mxu0 %v3120
  %v3191 = vpop.f32.mrf.mxu0
  %v3192 = vadd.f32 %v3117, %v3191
  %v3193 = vpop.f32.mrf.mxu0
  %3194 = vmatprep.mubr.f32.mxu0 0.0
  %3195 = vmatmul.mubr.f32.gmra.mxu0 %v3123
  %v3196 = vpop.f32.mrf.mxu0
  %v3197 = vadd.f32 %v3117, %v3196
  %v3198 = vpop.f32.mrf.mxu0
  %3199 = vdwg.mxu0
  %v3200 = vmul.f32 %v3192, 0.5
  %v3201 = vmul.f32 %v3197, 0.5
  %v3202 = vmul.f32 %v3192, 0.044715
  %v3203 = vmul.f32 %v3197, 0.044715
  %v3204 = vmul.f32 %v3202, %v3192
  %v3205 = vmul.f32 %v3203, %v3197
  %v3206 = vmul.f32 %v3204, %v3192
  %v3207 = vmul.f32 %v3205, %v3197
  %v3208 = vadd.f32 %v3192, %v3206
  %v3209 = vadd.f32 %v3197, %v3207
  %v3210 = vmul.f32 %v3208, 0.7978846
  %v3211 = vmul.f32 %v3209, 0.7978846
  %v3212 = vtanh.pop %v3210
  %v3213 = vtanh.pop %v3211
  %v3214 = vadd.f32 %v3212, 1.0
  %v3215 = vadd.f32 %v3213, 1.0
  %v3216 = vmul.f32 %v3200, %v3214
  %v3217 = vmul.f32 %v3201, %v3215
  %s3218 = scalar_lea.vmem %s10, 64
  %v3219 = vld [vmem:[%s3218] sm:$0xff]
  %v3220 = vld [vmem:[%s3218 + $0x8] sm:$0xff]
  %v3221 = vld [vmem:[%s3218 + $0x10] sm:$0xff]
  %v3222 = vld [vmem:[%s3218 + $0x18] sm:$0xff]
  %v3223 = vld [vmem:[%s3218 + $0x20] sm:$0xff]
  %v3224 = vld [vmem:[%s3218 + $0x28] sm:$0xff]
  %v3225 = vld [vmem:[%s3218 + $0x30] sm:$0xff]
  %v3226 = vld [vmem:[%s3218 + $0x38] sm:$0xff]
  %v3227 = vld [vmem:[%s2 + $0xb] sm:$0x1]
  %v3228 = vlaneseq
  %v3229 = vshrl.u32 %v3228, 7
  %v3230 = vsub.s32 0, %v3229
  %v3231 = vrot.slane %v3227, %v3230
  %v3233 = vsel %vm1599, %v3216, 0
  %v3236 = vsel %vm1599, %v3217, 0
  %3238 = vmatprep.subr.mxu0 0.0
  %3239 = vmatpush1.msra.mxu0 0.0
  %3240 = vmatprep.subr.mxu0 0.0
  %3241 = vmatpush1.msra.mxu0 0.0
  %3242 = vmatprep.subr.mxu0 0.0
  %3243 = vmatpush1.msra.mxu0 0.0
  %3244 = vmatprep.subr.mxu0 0.0
  %3245 = vmatpush1.msra.mxu0 0.0
  %3246 = vmatprep.subr.mxu0 0.0
  %3247 = vmatpush1.msra.mxu0 0.0
  %3248 = vmatprep.subr.mxu0 0.0
  %3249 = vmatpush1.msra.mxu0 0.0
  %3250 = vmatprep.subr.mxu0 0.0
  %3251 = vmatpush1.msra.mxu0 0.0
  %3252 = vmatprep.subr.mxu0 0.0
  %3253 = vmatpush1.msra.mxu0 0.0
  %3254 = vmatprep.subr.mxu0 0.0
  %3255 = vmatpush1.msra.mxu0 %v3226
  %3256 = vmatprep.subr.mxu0 0.0
  %3257 = vmatpush1.msra.mxu0 %v3225
  %3258 = vmatprep.subr.mxu0 0.0
  %3259 = vmatpush1.msra.mxu0 %v3224
  %3260 = vmatprep.subr.mxu0 0.0
  %3261 = vmatpush1.msra.mxu0 %v3223
  %3262 = vmatprep.subr.mxu0 0.0
  %3263 = vmatpush1.msra.mxu0 %v3222
  %3264 = vmatprep.subr.mxu0 0.0
  %3265 = vmatpush1.msra.mxu0 %v3221
  %3266 = vmatprep.subr.mxu0 0.0
  %3267 = vmatpush1.msra.mxu0 %v3220
  %3268 = vmatprep.subr.mxu0 0.0
  %3269 = vmatpush1.msra.mxu0 %v3219
  %3270 = vmatprep.subr.mxu0 0.0
  %3271 = vmatpush2.msra.mxu0 0.0
  %3272 = vmatprep.subr.mxu0 0.0
  %3273 = vmatpush2.msra.mxu0 0.0
  %3274 = vmatprep.subr.mxu0 0.0
  %3275 = vmatpush2.msra.mxu0 0.0
  %3276 = vmatprep.subr.mxu0 0.0
  %3277 = vmatpush2.msra.mxu0 0.0
  %3278 = vmatprep.subr.mxu0 0.0
  %3279 = vmatpush2.msra.mxu0 0.0
  %3280 = vmatprep.subr.mxu0 0.0
  %3281 = vmatpush2.msra.mxu0 0.0
  %3282 = vmatprep.subr.mxu0 0.0
  %3283 = vmatpush2.msra.mxu0 0.0
  %3284 = vmatprep.subr.mxu0 0.0
  %3285 = vmatpush2.msra.mxu0 0.0
  %3286 = vmatprep.subr.mxu0 0.0
  %3287 = vmatpush2.msra.mxu0 0.0
  %3288 = vmatprep.subr.mxu0 0.0
  %3289 = vmatpush2.msra.mxu0 0.0
  %3290 = vmatprep.subr.mxu0 0.0
  %3291 = vmatpush2.msra.mxu0 0.0
  %3292 = vmatprep.subr.mxu0 0.0
  %3293 = vmatpush2.msra.mxu0 0.0
  %3294 = vmatprep.subr.mxu0 0.0
  %3295 = vmatpush2.msra.mxu0 0.0
  %3296 = vmatprep.subr.mxu0 0.0
  %3297 = vmatpush2.msra.mxu0 0.0
  %3298 = vmatprep.subr.mxu0 0.0
  %3299 = vmatpush2.msra.mxu0 0.0
  %3300 = vmatprep.subr.mxu0 0.0
  %3301 = vmatpush2.msra.mxu0 0.0
  %3302 = vmatprep.mubr.f32.mxu0 0.0
  %3303 = vmatmul.mubr.f32.gmra.mxu0 %v3233
  %v3304 = vpop.f32.mrf.mxu0
  %v3305 = vadd.f32 %v3231, %v3304
  %v3306 = vpop.f32.mrf.mxu0
  %3307 = vmatprep.mubr.f32.mxu0 0.0
  %3308 = vmatmul.mubr.f32.gmra.mxu0 %v3236
  %v3309 = vpop.f32.mrf.mxu0
  %v3310 = vadd.f32 %v3231, %v3309
  %v3311 = vpop.f32.mrf.mxu0
  %3312 = vdwg.mxu0
  %v3313 = vadd.f32 %v3104, %v3305
  %v3314 = vadd.f32 %v3105, %v3310
  %v3315 = vld [vmem:[%s2 + $0xc] sm:$0x1]
  %v3316 = vld [vmem:[%s2 + $0xd] sm:$0x1]
  %v3317 = vsel %vm44, %v3313, 0.0
  %3318 = vadd.xlane.f32.xlu0 %v3317
  %v3319 = vpop.xlane.xlu0 %3318
  %v3320 = vsel %vm44, %v3314, 0.0
  %3321 = vadd.xlane.f32.xlu0 %v3320
  %v3322 = vpop.xlane.xlu0 %3321
  %v3323 = vmul.f32 %v3319, %v51
  %v3324 = vmul.f32 %v3322, %v51
  %v3325 = vsub.f32 %v3313, %v3323
  %v3326 = vsub.f32 %v3314, %v3324
  %v3327 = vmul.f32 %v3325, %v3325
  %v3328 = vmul.f32 %v3326, %v3326
  %v3329 = vsel %vm44, %v3327, 0.0
  %3330 = vadd.xlane.f32.xlu0 %v3329
  %v3331 = vpop.xlane.xlu0 %3330
  %v3332 = vsel %vm44, %v3328, 0.0
  %3333 = vadd.xlane.f32.xlu0 %v3332
  %v3334 = vpop.xlane.xlu0 %3333
  %v3335 = vmul.f32 %v3331, %v51
  %v3336 = vmul.f32 %v3334, %v51
  %v3337 = vadd.f32 %v3335, 1e-12
  %v3338 = vadd.f32 %v3336, 1e-12
  %v3339 = vrsqrt.pop %v3337
  %v3340 = vrsqrt.pop %v3338
  %v3341 = vmul.f32 %v3325, %v3339
  %v3342 = vmul.f32 %v3326, %v3340
  %v3343 = vlaneseq
  %v3344 = vshrl.u32 %v3343, 7
  %v3345 = vsub.s32 0, %v3344
  %v3346 = vrot.slane %v3315, %v3345
  %v3347 = vmul.f32 %v3341, %v3346
  %v3348 = vmul.f32 %v3342, %v3346
  %v3349 = vlaneseq
  %v3350 = vshrl.u32 %v3349, 7
  %v3351 = vsub.s32 0, %v3350
  %v3352 = vrot.slane %v3316, %v3351
  %v3353 = vadd.f32 %v3347, %v3352
  %v3354 = vadd.f32 %v3348, %v3352
  %3355 = vst.msk [vmem:[%s11] sm:$0xff] %vm44, %v3353
  %3356 = vst.msk [vmem:[%s11 + $0x8] sm:$0xff] %vm44, %v3354
  // Predicated region
  $region46: #{stancex_textual_forward.1} parent=0 // pred_check
    _
  $region47: #{stancex_textual_forward.1} parent=0 // pred_check_branch
    %3358 = sbr.rel (0) target = $region49
  $region48: #{stancex_textual_forward.1} parent=0 // pred_region
    _
  $region49: #{stancex_textual_forward.1} parent=0 // pred_fallthru
    _
  // Predicated region
  $region50: #{stancex_textual_forward.1} parent=0 // pred_check
    _
  $region51: #{stancex_textual_forward.1} parent=0 // pred_check_branch
    %3360 = sbr.rel (0) target = $region53
  $region52: #{stancex_textual_forward.1} parent=0 // pred_region
    _
  $region53: #{stancex_textual_forward.1} parent=0 // pred_fallthru
    _

</llo_original>
